<compile_context>
chip_gen: v5e
topology: v5e:2x2
jax: 0.10.0
libtpu: 0.0.40
codegen_flags: <defaults>
</compile_context>

<pallas_src>
import functools

import numpy as np
import jax
import jax.numpy as jnp
from jax.experimental import pallas as pl
from jax.experimental.pallas import tpu as pltpu

_VMEM_LIMIT_BYTES = 48 * 1024 * 1024   # < 64 MiB physical (v7x), << 128 MiB (v5e/v6e)
_VMEM_TILE_BUDGET = 16 * 1024 * 1024   # per-step working set target (incl. 2x buffering)
_FLAT_SLACK = 8                        # zero rows so the (dy=2,dx=2) tap never reads OOB
_NEG_SLOPE = 0.01                      # nn.LeakyReLU default negative slope


# ---------------------------------------------------------------------------
# Pallas kernel: fused 3x3 conv (padding=1) + BN scale/shift + LeakyReLU
# ---------------------------------------------------------------------------
def _conv3x3_bn_lrelu_kernel(x_ref, w_ref, s_ref, b_ref, o_ref, *,
                             tile_h, W, cin, cout, leaky):
    """One haloed row-tile.

    x_ref : ((tile_h+2)*(W+2)+slack, cin)  bf16  flattened haloed input tile
    w_ref : (9, cin, cout)                 bf16  taps in (dy, dx) order
    s_ref : (1, cout)  f32  folded BN scale
    b_ref : (1, cout)  f32  folded conv-bias + BN shift
    o_ref : (tile_h*(W+2), cout)  output over the padded width; wrapper drops
            the 2 junk columns per row.
    """
    Wp = W + 2
    M = tile_h * Wp
    acc = jnp.zeros((M, cout), jnp.float32)
    for dy in range(3):
        for dx in range(3):
            patch = x_ref[pl.ds(dy * Wp + dx, M), :]            # (M, cin) bf16
            acc = acc + jnp.dot(patch, w_ref[dy * 3 + dx],
                                preferred_element_type=jnp.float32)

    y = acc * s_ref[...] + b_ref[...]                           # folded BatchNorm
    if leaky:
        y = jnp.where(y >= 0, y, jnp.float32(_NEG_SLOPE) * y)   # LeakyReLU(0.01)
    o_ref[...] = y.astype(o_ref.dtype)


def _pick_tile_h(H, W, cin, cout, out_itemsize, budget=_VMEM_TILE_BUDGET):
    """Largest row-tile dividing H whose double-buffered working set fits VMEM."""
    Wp = W + 2
    best = 1
    for th in range(1, H + 1):
        if H % th:
            continue
        flat = (th + 2) * Wp + _FLAT_SLACK
        m = th * Wp
        need = (2 * flat * cin * 2              # double-buffered bf16 input tile
                + 2 * m * cout * out_itemsize   # double-buffered output tile
                + m * cout * 4                  # f32 accumulator value
                + m * cin * 2                   # in-flight bf16 patch value
                + 2 * 9 * cin * cout * 2        # bf16 weights
                + 4 * cout * 4)                 # scale / shift
        if need <= budget:
            best = th
    return best


def conv3x3_bn_lrelu(x, w, scale, shift, *, leaky=True, out_dtype=jnp.float32):
    """x: (N,H,W,Cin) NHWC.  w: (3,3,Cin,Cout) HWIO.  Returns (N,H,W,Cout)."""
    N, H, W, Cin = x.shape
    Cout = w.shape[-1]
    Wp = W + 2
    tile_h = _pick_tile_h(H, W, Cin, Cout, jnp.dtype(out_dtype).itemsize)
    R = H // tile_h
    M = tile_h * Wp
    flat_core = (tile_h + 2) * Wp
    flat_len = flat_core + _FLAT_SLACK

    # Padded input -> haloed row tiles, flattened to 2-D per tile.
    xpad = jnp.pad(x, ((0, 0), (1, 1), (1, 1), (0, 0))).astype(jnp.bfloat16)
    if R == 1:
        tiles = xpad[:, None]                                    # (N,1,H+2,W+2,Cin)
    else:
        rows = jnp.arange(R)[:, None] * tile_h + jnp.arange(tile_h + 2)[None, :]
        tiles = xpad[:, rows]                                    # (N,R,tile_h+2,W+2,Cin)
    tiles = tiles.reshape(N, R, flat_core, Cin)
    tiles = jnp.pad(tiles, ((0, 0), (0, 0), (0, flat_len - flat_core), (0, 0)))

    wb = w.reshape(9, Cin, Cout).astype(jnp.bfloat16)
    s2 = scale.reshape(1, Cout).astype(jnp.float32)
    b2 = shift.reshape(1, Cout).astype(jnp.float32)

    kernel = functools.partial(_conv3x3_bn_lrelu_kernel, tile_h=tile_h, W=W,
                               cin=Cin, cout=Cout, leaky=leaky)

    out = pl.pallas_call(
        kernel,
        out_shape=jax.ShapeDtypeStruct((N, R, M, Cout), out_dtype),
        grid_spec=pltpu.PrefetchScalarGridSpec(
            num_scalar_prefetch=0,
            grid=(N, R),
            in_specs=[
                pl.BlockSpec((None, None, flat_len, Cin), lambda n, r: (n, r, 0, 0)),
                pl.BlockSpec((9, Cin, Cout), lambda n, r: (0, 0, 0)),   # resident weights
                pl.BlockSpec((1, Cout), lambda n, r: (0, 0)),           # BN scale
                pl.BlockSpec((1, Cout), lambda n, r: (0, 0)),           # BN shift (+bias)
            ],
            out_specs=pl.BlockSpec((None, None, M, Cout), lambda n, r: (n, r, 0, 0)),
        ),
        compiler_params=pltpu.CompilerParams(
            dimension_semantics=("parallel", "parallel"),
            vmem_limit_bytes=_VMEM_LIMIT_BYTES),
    )(tiles, wb, s2, b2)

    out = out.reshape(N, R, tile_h, Wp, Cout)[:, :, :, :W, :]    # drop junk columns
    return out.reshape(N, H, W, Cout)


# ---------------------------------------------------------------------------
# ConvBlock forward (NCHW in / out, matching the PyTorch module)
# ---------------------------------------------------------------------------
def conv_block_forward(params, x_nchw):
    x = jnp.transpose(x_nchw, (0, 2, 3, 1))                      # NCHW -> NHWC
    h = conv3x3_bn_lrelu(x, params['c1']['w'], params['c1']['scale'],
                         params['c1']['shift'], leaky=True,
                         out_dtype=jnp.bfloat16)                 # bf16 inter-conv activation
    # nn.Dropout(dropout_p): identity in eval mode.
    y = conv3x3_bn_lrelu(h, params['c2']['w'], params['c2']['scale'],
                         params['c2']['shift'], leaky=True,
                         out_dtype=jnp.float32)
    return jnp.transpose(y, (0, 3, 1, 2))                        # NHWC -> NCHW


def conv_block_reference(params, x_nchw):
    """Pure-JAX f32 reference for correctness checking."""
    x = jnp.transpose(x_nchw, (0, 2, 3, 1)).astype(jnp.float32)

    def one(p, x):
        y = jax.lax.conv_general_dilated(
            x, p['w'].astype(jnp.float32), (1, 1), ((1, 1), (1, 1)),
            dimension_numbers=('NHWC', 'HWIO', 'NHWC'))
        y = y * p['scale'] + p['shift']
        return jnp.where(y >= 0, y, _NEG_SLOPE * y)

    y = one(params['c2'], one(params['c1'], x))
    return jnp.transpose(y, (0, 3, 1, 2))


# ---------------------------------------------------------------------------
# Parameter construction (deterministic, synthetic; BN folded in eval mode)
# ---------------------------------------------------------------------------
class KeyGen:
    def __init__(self, seed):
        self.key = jax.random.PRNGKey(seed)

    def __call__(self):
        self.key, sub = jax.random.split(self.key)
        return sub


def conv_bn_params(kg, cin, cout):
    w = jax.random.normal(kg(), (3, 3, cin, cout), jnp.float32) / np.sqrt(9.0 * cin)
    b = 0.01 * jax.random.normal(kg(), (cout,), jnp.float32)
    gamma = 1.0 + 0.1 * jax.random.normal(kg(), (cout,), jnp.float32)
    beta = 0.1 * jax.random.normal(kg(), (cout,), jnp.float32)
    rmean = 0.05 * jax.random.normal(kg(), (cout,), jnp.float32)
    rvar = 1.0 + 0.1 * jax.random.uniform(kg(), (cout,), jnp.float32)
    scale = gamma / jnp.sqrt(rvar + 1e-5)
    shift = (b - rmean) * scale + beta          # fold conv-bias + eval-mode BN
    return {'w': w, 'scale': scale, 'shift': shift}


def convblock_params(kg, cin, cout):
    return {'c1': conv_bn_params(kg, cin, cout),
            'c2': conv_bn_params(kg, cout, cout)}


# ---------------------------------------------------------------------------
if __name__ == "__main__":
    in_channels, out_channels, dropout_p = 4, 32, 0.3
    N, H, W = 2, 16, 16

    params = convblock_params(KeyGen(0), in_channels, out_channels)
    x = jax.random.normal(jax.random.PRNGKey(0), (N, in_channels, H, W), jnp.float32)

    fwd = jax.jit(conv_block_forward)
    out = jax.block_until_ready(fwd(params, x))

    assert out.shape == (N, out_channels, H, W), out.shape
    assert bool(jnp.all(jnp.isfinite(out)))

    ref = jax.block_until_ready(conv_block_reference(params, x))
    np.testing.assert_allclose(np.asarray(out), np.asarray(ref), rtol=5e-2, atol=1e-1)

    print("KERNEL_OK")
</pallas_src>

<mosaic_0001>
module attributes {stable_mosaic.version = 11 : i64} {
  func.func @_conv3x3_bn_lrelu_kernel(%arg0: i32, %arg1: i32, %arg2: memref<1x1x332x4xbf16, #tpu.memory_space<vmem>>, %arg3: memref<9x4x32xbf16, #tpu.memory_space<vmem>>, %arg4: memref<1x32xf32, #tpu.memory_space<vmem>>, %arg5: memref<1x32xf32, #tpu.memory_space<vmem>>, %arg6: memref<1x1x288x32xbf16, #tpu.memory_space<vmem>>) attributes {dimension_semantics = [#tpu.dimension_semantics<parallel>, #tpu.dimension_semantics<parallel>], iteration_bounds = array<i64: 2, 1>, scalar_prefetch = 0 : i64, scratch_operands = 0 : i64, tpu.core_type = #tpu.core_type<tc>, window_params = [{transform_indices = @transform_0, window_bounds = array<i64: 1, 1, 332, 4>}, {pipeline_mode = #tpu.pipeline_mode<synchronous>, transform_indices = @transform_1, window_bounds = array<i64: 9, 4, 32>}, {pipeline_mode = #tpu.pipeline_mode<synchronous>, transform_indices = @transform_2, window_bounds = array<i64: 1, 32>}, {pipeline_mode = #tpu.pipeline_mode<synchronous>, transform_indices = @transform_3, window_bounds = array<i64: 1, 32>}, {transform_indices = @transform_4, window_bounds = array<i64: 1, 1, 288, 32>}]} {
    %cst = arith.constant 0.000000e+00 : f32
    %0 = vector.broadcast %cst : f32 to vector<288x32xf32>
    %c0 = arith.constant 0 : index
    %c0_0 = arith.constant 0 : index
    %c0_1 = arith.constant 0 : index
    %c0_2 = arith.constant 0 : index
    %1 = vector.load %arg2[%c0, %c0_0, %c0_1, %c0_2] : memref<1x1x332x4xbf16, #tpu.memory_space<vmem>>, vector<1x1x288x4xbf16>
    %2 = vector.shape_cast %1 : vector<1x1x288x4xbf16> to vector<288x4xbf16>
    %c0_3 = arith.constant 0 : index
    %c0_4 = arith.constant 0 : index
    %c0_5 = arith.constant 0 : index
    %3 = vector.load %arg3[%c0_3, %c0_4, %c0_5] : memref<9x4x32xbf16, #tpu.memory_space<vmem>>, vector<1x4x32xbf16>
    %4 = vector.shape_cast %3 : vector<1x4x32xbf16> to vector<4x32xbf16>
    %cst_6 = arith.constant dense<0.000000e+00> : vector<288x32xf32>
    %5 = tpu.matmul %2, %4, %cst_6 {dimension_numbers = #tpu.dot_dimension_numbers<[1], [0], [0], [1], [0, 0, 1, 1], [], []>} : vector<288x4xbf16>, vector<4x32xbf16>, vector<288x32xf32> -> vector<288x32xf32>
    %6 = arith.addf %0, %5 : vector<288x32xf32>
    %c0_7 = arith.constant 0 : index
    %c0_8 = arith.constant 0 : index
    %c1 = arith.constant 1 : index
    %c0_9 = arith.constant 0 : index
    %7 = vector.load %arg2[%c0_7, %c0_8, %c1, %c0_9] : memref<1x1x332x4xbf16, #tpu.memory_space<vmem>>, vector<1x1x288x4xbf16>
    %8 = vector.shape_cast %7 : vector<1x1x288x4xbf16> to vector<288x4xbf16>
    %c1_10 = arith.constant 1 : index
    %c0_11 = arith.constant 0 : index
    %c0_12 = arith.constant 0 : index
    %9 = vector.load %arg3[%c1_10, %c0_11, %c0_12] : memref<9x4x32xbf16, #tpu.memory_space<vmem>>, vector<1x4x32xbf16>
    %10 = vector.shape_cast %9 : vector<1x4x32xbf16> to vector<4x32xbf16>
    %cst_13 = arith.constant dense<0.000000e+00> : vector<288x32xf32>
    %11 = tpu.matmul %8, %10, %cst_13 {dimension_numbers = #tpu.dot_dimension_numbers<[1], [0], [0], [1], [0, 0, 1, 1], [], []>} : vector<288x4xbf16>, vector<4x32xbf16>, vector<288x32xf32> -> vector<288x32xf32>
    %12 = arith.addf %6, %11 : vector<288x32xf32>
    %c0_14 = arith.constant 0 : index
    %c0_15 = arith.constant 0 : index
    %c2 = arith.constant 2 : index
    %c0_16 = arith.constant 0 : index
    %13 = vector.load %arg2[%c0_14, %c0_15, %c2, %c0_16] : memref<1x1x332x4xbf16, #tpu.memory_space<vmem>>, vector<1x1x288x4xbf16>
    %14 = vector.shape_cast %13 : vector<1x1x288x4xbf16> to vector<288x4xbf16>
    %c2_17 = arith.constant 2 : index
    %c0_18 = arith.constant 0 : index
    %c0_19 = arith.constant 0 : index
    %15 = vector.load %arg3[%c2_17, %c0_18, %c0_19] : memref<9x4x32xbf16, #tpu.memory_space<vmem>>, vector<1x4x32xbf16>
    %16 = vector.shape_cast %15 : vector<1x4x32xbf16> to vector<4x32xbf16>
    %cst_20 = arith.constant dense<0.000000e+00> : vector<288x32xf32>
    %17 = tpu.matmul %14, %16, %cst_20 {dimension_numbers = #tpu.dot_dimension_numbers<[1], [0], [0], [1], [0, 0, 1, 1], [], []>} : vector<288x4xbf16>, vector<4x32xbf16>, vector<288x32xf32> -> vector<288x32xf32>
    %18 = arith.addf %12, %17 : vector<288x32xf32>
    %c0_21 = arith.constant 0 : index
    %c0_22 = arith.constant 0 : index
    %c18 = arith.constant 18 : index
    %c0_23 = arith.constant 0 : index
    %19 = vector.load %arg2[%c0_21, %c0_22, %c18, %c0_23] : memref<1x1x332x4xbf16, #tpu.memory_space<vmem>>, vector<1x1x288x4xbf16>
    %20 = vector.shape_cast %19 : vector<1x1x288x4xbf16> to vector<288x4xbf16>
    %c3 = arith.constant 3 : index
    %c0_24 = arith.constant 0 : index
    %c0_25 = arith.constant 0 : index
    %21 = vector.load %arg3[%c3, %c0_24, %c0_25] : memref<9x4x32xbf16, #tpu.memory_space<vmem>>, vector<1x4x32xbf16>
    %22 = vector.shape_cast %21 : vector<1x4x32xbf16> to vector<4x32xbf16>
    %cst_26 = arith.constant dense<0.000000e+00> : vector<288x32xf32>
    %23 = tpu.matmul %20, %22, %cst_26 {dimension_numbers = #tpu.dot_dimension_numbers<[1], [0], [0], [1], [0, 0, 1, 1], [], []>} : vector<288x4xbf16>, vector<4x32xbf16>, vector<288x32xf32> -> vector<288x32xf32>
    %24 = arith.addf %18, %23 : vector<288x32xf32>
    %c0_27 = arith.constant 0 : index
    %c0_28 = arith.constant 0 : index
    %c19 = arith.constant 19 : index
    %c0_29 = arith.constant 0 : index
    %25 = vector.load %arg2[%c0_27, %c0_28, %c19, %c0_29] : memref<1x1x332x4xbf16, #tpu.memory_space<vmem>>, vector<1x1x288x4xbf16>
    %26 = vector.shape_cast %25 : vector<1x1x288x4xbf16> to vector<288x4xbf16>
    %c4 = arith.constant 4 : index
    %c0_30 = arith.constant 0 : index
    %c0_31 = arith.constant 0 : index
    %27 = vector.load %arg3[%c4, %c0_30, %c0_31] : memref<9x4x32xbf16, #tpu.memory_space<vmem>>, vector<1x4x32xbf16>
    %28 = vector.shape_cast %27 : vector<1x4x32xbf16> to vector<4x32xbf16>
    %cst_32 = arith.constant dense<0.000000e+00> : vector<288x32xf32>
    %29 = tpu.matmul %26, %28, %cst_32 {dimension_numbers = #tpu.dot_dimension_numbers<[1], [0], [0], [1], [0, 0, 1, 1], [], []>} : vector<288x4xbf16>, vector<4x32xbf16>, vector<288x32xf32> -> vector<288x32xf32>
    %30 = arith.addf %24, %29 : vector<288x32xf32>
    %c0_33 = arith.constant 0 : index
    %c0_34 = arith.constant 0 : index
    %c20 = arith.constant 20 : index
    %c0_35 = arith.constant 0 : index
    %31 = vector.load %arg2[%c0_33, %c0_34, %c20, %c0_35] : memref<1x1x332x4xbf16, #tpu.memory_space<vmem>>, vector<1x1x288x4xbf16>
    %32 = vector.shape_cast %31 : vector<1x1x288x4xbf16> to vector<288x4xbf16>
    %c5 = arith.constant 5 : index
    %c0_36 = arith.constant 0 : index
    %c0_37 = arith.constant 0 : index
    %33 = vector.load %arg3[%c5, %c0_36, %c0_37] : memref<9x4x32xbf16, #tpu.memory_space<vmem>>, vector<1x4x32xbf16>
    %34 = vector.shape_cast %33 : vector<1x4x32xbf16> to vector<4x32xbf16>
    %cst_38 = arith.constant dense<0.000000e+00> : vector<288x32xf32>
    %35 = tpu.matmul %32, %34, %cst_38 {dimension_numbers = #tpu.dot_dimension_numbers<[1], [0], [0], [1], [0, 0, 1, 1], [], []>} : vector<288x4xbf16>, vector<4x32xbf16>, vector<288x32xf32> -> vector<288x32xf32>
    %36 = arith.addf %30, %35 : vector<288x32xf32>
    %c0_39 = arith.constant 0 : index
    %c0_40 = arith.constant 0 : index
    %c36 = arith.constant 36 : index
    %c0_41 = arith.constant 0 : index
    %37 = vector.load %arg2[%c0_39, %c0_40, %c36, %c0_41] : memref<1x1x332x4xbf16, #tpu.memory_space<vmem>>, vector<1x1x288x4xbf16>
    %38 = vector.shape_cast %37 : vector<1x1x288x4xbf16> to vector<288x4xbf16>
    %c6 = arith.constant 6 : index
    %c0_42 = arith.constant 0 : index
    %c0_43 = arith.constant 0 : index
    %39 = vector.load %arg3[%c6, %c0_42, %c0_43] : memref<9x4x32xbf16, #tpu.memory_space<vmem>>, vector<1x4x32xbf16>
    %40 = vector.shape_cast %39 : vector<1x4x32xbf16> to vector<4x32xbf16>
    %cst_44 = arith.constant dense<0.000000e+00> : vector<288x32xf32>
    %41 = tpu.matmul %38, %40, %cst_44 {dimension_numbers = #tpu.dot_dimension_numbers<[1], [0], [0], [1], [0, 0, 1, 1], [], []>} : vector<288x4xbf16>, vector<4x32xbf16>, vector<288x32xf32> -> vector<288x32xf32>
    %42 = arith.addf %36, %41 : vector<288x32xf32>
    %c0_45 = arith.constant 0 : index
    %c0_46 = arith.constant 0 : index
    %c37 = arith.constant 37 : index
    %c0_47 = arith.constant 0 : index
    %43 = vector.load %arg2[%c0_45, %c0_46, %c37, %c0_47] : memref<1x1x332x4xbf16, #tpu.memory_space<vmem>>, vector<1x1x288x4xbf16>
    %44 = vector.shape_cast %43 : vector<1x1x288x4xbf16> to vector<288x4xbf16>
    %c7 = arith.constant 7 : index
    %c0_48 = arith.constant 0 : index
    %c0_49 = arith.constant 0 : index
    %45 = vector.load %arg3[%c7, %c0_48, %c0_49] : memref<9x4x32xbf16, #tpu.memory_space<vmem>>, vector<1x4x32xbf16>
    %46 = vector.shape_cast %45 : vector<1x4x32xbf16> to vector<4x32xbf16>
    %cst_50 = arith.constant dense<0.000000e+00> : vector<288x32xf32>
    %47 = tpu.matmul %44, %46, %cst_50 {dimension_numbers = #tpu.dot_dimension_numbers<[1], [0], [0], [1], [0, 0, 1, 1], [], []>} : vector<288x4xbf16>, vector<4x32xbf16>, vector<288x32xf32> -> vector<288x32xf32>
    %48 = arith.addf %42, %47 : vector<288x32xf32>
    %c0_51 = arith.constant 0 : index
    %c0_52 = arith.constant 0 : index
    %c38 = arith.constant 38 : index
    %c0_53 = arith.constant 0 : index
    %49 = vector.load %arg2[%c0_51, %c0_52, %c38, %c0_53] : memref<1x1x332x4xbf16, #tpu.memory_space<vmem>>, vector<1x1x288x4xbf16>
    %50 = vector.shape_cast %49 : vector<1x1x288x4xbf16> to vector<288x4xbf16>
    %c8 = arith.constant 8 : index
    %c0_54 = arith.constant 0 : index
    %c0_55 = arith.constant 0 : index
    %51 = vector.load %arg3[%c8, %c0_54, %c0_55] : memref<9x4x32xbf16, #tpu.memory_space<vmem>>, vector<1x4x32xbf16>
    %52 = vector.shape_cast %51 : vector<1x4x32xbf16> to vector<4x32xbf16>
    %cst_56 = arith.constant dense<0.000000e+00> : vector<288x32xf32>
    %53 = tpu.matmul %50, %52, %cst_56 {dimension_numbers = #tpu.dot_dimension_numbers<[1], [0], [0], [1], [0, 0, 1, 1], [], []>} : vector<288x4xbf16>, vector<4x32xbf16>, vector<288x32xf32> -> vector<288x32xf32>
    %54 = arith.addf %48, %53 : vector<288x32xf32>
    %c0_57 = arith.constant 0 : index
    %c0_58 = arith.constant 0 : index
    %55 = vector.load %arg4[%c0_57, %c0_58] : memref<1x32xf32, #tpu.memory_space<vmem>>, vector<1x32xf32>
    %56 = vector.broadcast %55 : vector<1x32xf32> to vector<288x32xf32>
    %57 = arith.mulf %54, %56 : vector<288x32xf32>
    %c0_59 = arith.constant 0 : index
    %c0_60 = arith.constant 0 : index
    %58 = vector.load %arg5[%c0_59, %c0_60] : memref<1x32xf32, #tpu.memory_space<vmem>>, vector<1x32xf32>
    %59 = vector.broadcast %58 : vector<1x32xf32> to vector<288x32xf32>
    %60 = arith.addf %57, %59 : vector<288x32xf32>
    %cst_61 = arith.constant 0.000000e+00 : f32
    %61 = vector.broadcast %cst_61 : f32 to vector<288x32xf32>
    %62 = arith.cmpf oge, %60, %61 : vector<288x32xf32>
    %cst_62 = arith.constant 0.00999999977 : f32
    %63 = vector.broadcast %cst_62 : f32 to vector<288x32xf32>
    %64 = arith.mulf %63, %60 : vector<288x32xf32>
    %65 = arith.select %62, %60, %64 : vector<288x32xi1>, vector<288x32xf32>
    %66 = arith.truncf %65 : vector<288x32xf32> to vector<288x32xbf16>
    %c0_63 = arith.constant 0 : index
    %c0_64 = arith.constant 0 : index
    %c0_65 = arith.constant 0 : index
    %c0_66 = arith.constant 0 : index
    %67 = vector.load %arg6[%c0_63, %c0_64, %c0_65, %c0_66] : memref<1x1x288x32xbf16, #tpu.memory_space<vmem>>, vector<1x1x288x32xbf16>
    %68 = vector.shape_cast %67 : vector<1x1x288x32xbf16> to vector<288x32xbf16>
    %69 = vector.shape_cast %66 : vector<288x32xbf16> to vector<1x1x288x32xbf16>
    tpu.vector_store %arg6[%c0_63, %c0_64, %c0_65, %c0_66], %69 {strides = array<i32>} : memref<1x1x288x32xbf16, #tpu.memory_space<vmem>>, vector<1x1x288x32xbf16>,
    return
  }
  func.func @transform_0(%arg0: i32, %arg1: i32) -> (i32, i32, i32, i32) {
    %c0_i32 = arith.constant 0 : i32
    %c0_i32_0 = arith.constant 0 : i32
    %c0_i32_1 = arith.constant 0 : i32
    return %arg0, %arg1, %c0_i32, %c0_i32_0 : i32, i32, i32, i32
  }
  func.func @transform_1(%arg0: i32, %arg1: i32) -> (i32, i32, i32) {
    %c0_i32 = arith.constant 0 : i32
    %c0_i32_0 = arith.constant 0 : i32
    %c0_i32_1 = arith.constant 0 : i32
    %c0_i32_2 = arith.constant 0 : i32
    return %c0_i32, %c0_i32_0, %c0_i32_1 : i32, i32, i32
  }
  func.func @transform_2(%arg0: i32, %arg1: i32) -> (i32, i32) {
    %c0_i32 = arith.constant 0 : i32
    %c0_i32_0 = arith.constant 0 : i32
    %c0_i32_1 = arith.constant 0 : i32
    return %c0_i32, %c0_i32_0 : i32, i32
  }
  func.func @transform_3(%arg0: i32, %arg1: i32) -> (i32, i32) {
    %c0_i32 = arith.constant 0 : i32
    %c0_i32_0 = arith.constant 0 : i32
    %c0_i32_1 = arith.constant 0 : i32
    return %c0_i32, %c0_i32_0 : i32, i32
  }
  func.func @transform_4(%arg0: i32, %arg1: i32) -> (i32, i32, i32, i32) {
    %c0_i32 = arith.constant 0 : i32
    %c0_i32_0 = arith.constant 0 : i32
    %c0_i32_1 = arith.constant 0 : i32
    return %arg0, %arg1, %c0_i32, %c0_i32_0 : i32, i32, i32, i32
  }
}

module attributes {stable_mosaic.version = 11 : i64} {
  func.func @_conv3x3_bn_lrelu_kernel(%arg0: i32, %arg1: i32, %arg2: memref<1x1x332x32xbf16, #tpu.memory_space<vmem>>, %arg3: memref<9x32x32xbf16, #tpu.memory_space<vmem>>, %arg4: memref<1x32xf32, #tpu.memory_space<vmem>>, %arg5: memref<1x32xf32, #tpu.memory_space<vmem>>, %arg6: memref<1x1x288x32xf32, #tpu.memory_space<vmem>>) attributes {dimension_semantics = [#tpu.dimension_semantics<parallel>, #tpu.dimension_semantics<parallel>], iteration_bounds = array<i64: 2, 1>, scalar_prefetch = 0 : i64, scratch_operands = 0 : i64, tpu.core_type = #tpu.core_type<tc>, window_params = [{transform_indices = @transform_0, window_bounds = array<i64: 1, 1, 332, 32>}, {pipeline_mode = #tpu.pipeline_mode<synchronous>, transform_indices = @transform_1, window_bounds = array<i64: 9, 32, 32>}, {pipeline_mode = #tpu.pipeline_mode<synchronous>, transform_indices = @transform_2, window_bounds = array<i64: 1, 32>}, {pipeline_mode = #tpu.pipeline_mode<synchronous>, transform_indices = @transform_3, window_bounds = array<i64: 1, 32>}, {transform_indices = @transform_4, window_bounds = array<i64: 1, 1, 288, 32>}]} {
    %cst = arith.constant 0.000000e+00 : f32
    %0 = vector.broadcast %cst : f32 to vector<288x32xf32>
    %c0 = arith.constant 0 : index
    %c0_0 = arith.constant 0 : index
    %c0_1 = arith.constant 0 : index
    %c0_2 = arith.constant 0 : index
    %1 = vector.load %arg2[%c0, %c0_0, %c0_1, %c0_2] : memref<1x1x332x32xbf16, #tpu.memory_space<vmem>>, vector<1x1x288x32xbf16>
    %2 = vector.shape_cast %1 : vector<1x1x288x32xbf16> to vector<288x32xbf16>
    %c0_3 = arith.constant 0 : index
    %c0_4 = arith.constant 0 : index
    %c0_5 = arith.constant 0 : index
    %3 = vector.load %arg3[%c0_3, %c0_4, %c0_5] : memref<9x32x32xbf16, #tpu.memory_space<vmem>>, vector<1x32x32xbf16>
    %4 = vector.shape_cast %3 : vector<1x32x32xbf16> to vector<32x32xbf16>
    %cst_6 = arith.constant dense<0.000000e+00> : vector<288x32xf32>
    %5 = tpu.matmul %2, %4, %cst_6 {dimension_numbers = #tpu.dot_dimension_numbers<[1], [0], [0], [1], [0, 0, 1, 1], [], []>} : vector<288x32xbf16>, vector<32x32xbf16>, vector<288x32xf32> -> vector<288x32xf32>
    %6 = arith.addf %0, %5 : vector<288x32xf32>
    %c0_7 = arith.constant 0 : index
    %c0_8 = arith.constant 0 : index
    %c1 = arith.constant 1 : index
    %c0_9 = arith.constant 0 : index
    %7 = vector.load %arg2[%c0_7, %c0_8, %c1, %c0_9] : memref<1x1x332x32xbf16, #tpu.memory_space<vmem>>, vector<1x1x288x32xbf16>
    %8 = vector.shape_cast %7 : vector<1x1x288x32xbf16> to vector<288x32xbf16>
    %c1_10 = arith.constant 1 : index
    %c0_11 = arith.constant 0 : index
    %c0_12 = arith.constant 0 : index
    %9 = vector.load %arg3[%c1_10, %c0_11, %c0_12] : memref<9x32x32xbf16, #tpu.memory_space<vmem>>, vector<1x32x32xbf16>
    %10 = vector.shape_cast %9 : vector<1x32x32xbf16> to vector<32x32xbf16>
    %cst_13 = arith.constant dense<0.000000e+00> : vector<288x32xf32>
    %11 = tpu.matmul %8, %10, %cst_13 {dimension_numbers = #tpu.dot_dimension_numbers<[1], [0], [0], [1], [0, 0, 1, 1], [], []>} : vector<288x32xbf16>, vector<32x32xbf16>, vector<288x32xf32> -> vector<288x32xf32>
    %12 = arith.addf %6, %11 : vector<288x32xf32>
    %c0_14 = arith.constant 0 : index
    %c0_15 = arith.constant 0 : index
    %c2 = arith.constant 2 : index
    %c0_16 = arith.constant 0 : index
    %13 = vector.load %arg2[%c0_14, %c0_15, %c2, %c0_16] : memref<1x1x332x32xbf16, #tpu.memory_space<vmem>>, vector<1x1x288x32xbf16>
    %14 = vector.shape_cast %13 : vector<1x1x288x32xbf16> to vector<288x32xbf16>
    %c2_17 = arith.constant 2 : index
    %c0_18 = arith.constant 0 : index
    %c0_19 = arith.constant 0 : index
    %15 = vector.load %arg3[%c2_17, %c0_18, %c0_19] : memref<9x32x32xbf16, #tpu.memory_space<vmem>>, vector<1x32x32xbf16>
    %16 = vector.shape_cast %15 : vector<1x32x32xbf16> to vector<32x32xbf16>
    %cst_20 = arith.constant dense<0.000000e+00> : vector<288x32xf32>
    %17 = tpu.matmul %14, %16, %cst_20 {dimension_numbers = #tpu.dot_dimension_numbers<[1], [0], [0], [1], [0, 0, 1, 1], [], []>} : vector<288x32xbf16>, vector<32x32xbf16>, vector<288x32xf32> -> vector<288x32xf32>
    %18 = arith.addf %12, %17 : vector<288x32xf32>
    %c0_21 = arith.constant 0 : index
    %c0_22 = arith.constant 0 : index
    %c18 = arith.constant 18 : index
    %c0_23 = arith.constant 0 : index
    %19 = vector.load %arg2[%c0_21, %c0_22, %c18, %c0_23] : memref<1x1x332x32xbf16, #tpu.memory_space<vmem>>, vector<1x1x288x32xbf16>
    %20 = vector.shape_cast %19 : vector<1x1x288x32xbf16> to vector<288x32xbf16>
    %c3 = arith.constant 3 : index
    %c0_24 = arith.constant 0 : index
    %c0_25 = arith.constant 0 : index
    %21 = vector.load %arg3[%c3, %c0_24, %c0_25] : memref<9x32x32xbf16, #tpu.memory_space<vmem>>, vector<1x32x32xbf16>
    %22 = vector.shape_cast %21 : vector<1x32x32xbf16> to vector<32x32xbf16>
    %cst_26 = arith.constant dense<0.000000e+00> : vector<288x32xf32>
    %23 = tpu.matmul %20, %22, %cst_26 {dimension_numbers = #tpu.dot_dimension_numbers<[1], [0], [0], [1], [0, 0, 1, 1], [], []>} : vector<288x32xbf16>, vector<32x32xbf16>, vector<288x32xf32> -> vector<288x32xf32>
    %24 = arith.addf %18, %23 : vector<288x32xf32>
    %c0_27 = arith.constant 0 : index
    %c0_28 = arith.constant 0 : index
    %c19 = arith.constant 19 : index
    %c0_29 = arith.constant 0 : index
    %25 = vector.load %arg2[%c0_27, %c0_28, %c19, %c0_29] : memref<1x1x332x32xbf16, #tpu.memory_space<vmem>>, vector<1x1x288x32xbf16>
    %26 = vector.shape_cast %25 : vector<1x1x288x32xbf16> to vector<288x32xbf16>
    %c4 = arith.constant 4 : index
    %c0_30 = arith.constant 0 : index
    %c0_31 = arith.constant 0 : index
    %27 = vector.load %arg3[%c4, %c0_30, %c0_31] : memref<9x32x32xbf16, #tpu.memory_space<vmem>>, vector<1x32x32xbf16>
    %28 = vector.shape_cast %27 : vector<1x32x32xbf16> to vector<32x32xbf16>
    %cst_32 = arith.constant dense<0.000000e+00> : vector<288x32xf32>
    %29 = tpu.matmul %26, %28, %cst_32 {dimension_numbers = #tpu.dot_dimension_numbers<[1], [0], [0], [1], [0, 0, 1, 1], [], []>} : vector<288x32xbf16>, vector<32x32xbf16>, vector<288x32xf32> -> vector<288x32xf32>
    %30 = arith.addf %24, %29 : vector<288x32xf32>
    %c0_33 = arith.constant 0 : index
    %c0_34 = arith.constant 0 : index
    %c20 = arith.constant 20 : index
    %c0_35 = arith.constant 0 : index
    %31 = vector.load %arg2[%c0_33, %c0_34, %c20, %c0_35] : memref<1x1x332x32xbf16, #tpu.memory_space<vmem>>, vector<1x1x288x32xbf16>
    %32 = vector.shape_cast %31 : vector<1x1x288x32xbf16> to vector<288x32xbf16>
    %c5 = arith.constant 5 : index
    %c0_36 = arith.constant 0 : index
    %c0_37 = arith.constant 0 : index
    %33 = vector.load %arg3[%c5, %c0_36, %c0_37] : memref<9x32x32xbf16, #tpu.memory_space<vmem>>, vector<1x32x32xbf16>
    %34 = vector.shape_cast %33 : vector<1x32x32xbf16> to vector<32x32xbf16>
    %cst_38 = arith.constant dense<0.000000e+00> : vector<288x32xf32>
    %35 = tpu.matmul %32, %34, %cst_38 {dimension_numbers = #tpu.dot_dimension_numbers<[1], [0], [0], [1], [0, 0, 1, 1], [], []>} : vector<288x32xbf16>, vector<32x32xbf16>, vector<288x32xf32> -> vector<288x32xf32>
    %36 = arith.addf %30, %35 : vector<288x32xf32>
    %c0_39 = arith.constant 0 : index
    %c0_40 = arith.constant 0 : index
    %c36 = arith.constant 36 : index
    %c0_41 = arith.constant 0 : index
    %37 = vector.load %arg2[%c0_39, %c0_40, %c36, %c0_41] : memref<1x1x332x32xbf16, #tpu.memory_space<vmem>>, vector<1x1x288x32xbf16>
    %38 = vector.shape_cast %37 : vector<1x1x288x32xbf16> to vector<288x32xbf16>
    %c6 = arith.constant 6 : index
    %c0_42 = arith.constant 0 : index
    %c0_43 = arith.constant 0 : index
    %39 = vector.load %arg3[%c6, %c0_42, %c0_43] : memref<9x32x32xbf16, #tpu.memory_space<vmem>>, vector<1x32x32xbf16>
    %40 = vector.shape_cast %39 : vector<1x32x32xbf16> to vector<32x32xbf16>
    %cst_44 = arith.constant dense<0.000000e+00> : vector<288x32xf32>
    %41 = tpu.matmul %38, %40, %cst_44 {dimension_numbers = #tpu.dot_dimension_numbers<[1], [0], [0], [1], [0, 0, 1, 1], [], []>} : vector<288x32xbf16>, vector<32x32xbf16>, vector<288x32xf32> -> vector<288x32xf32>
    %42 = arith.addf %36, %41 : vector<288x32xf32>
    %c0_45 = arith.constant 0 : index
    %c0_46 = arith.constant 0 : index
    %c37 = arith.constant 37 : index
    %c0_47 = arith.constant 0 : index
    %43 = vector.load %arg2[%c0_45, %c0_46, %c37, %c0_47] : memref<1x1x332x32xbf16, #tpu.memory_space<vmem>>, vector<1x1x288x32xbf16>
    %44 = vector.shape_cast %43 : vector<1x1x288x32xbf16> to vector<288x32xbf16>
    %c7 = arith.constant 7 : index
    %c0_48 = arith.constant 0 : index
    %c0_49 = arith.constant 0 : index
    %45 = vector.load %arg3[%c7, %c0_48, %c0_49] : memref<9x32x32xbf16, #tpu.memory_space<vmem>>, vector<1x32x32xbf16>
    %46 = vector.shape_cast %45 : vector<1x32x32xbf16> to vector<32x32xbf16>
    %cst_50 = arith.constant dense<0.000000e+00> : vector<288x32xf32>
    %47 = tpu.matmul %44, %46, %cst_50 {dimension_numbers = #tpu.dot_dimension_numbers<[1], [0], [0], [1], [0, 0, 1, 1], [], []>} : vector<288x32xbf16>, vector<32x32xbf16>, vector<288x32xf32> -> vector<288x32xf32>
    %48 = arith.addf %42, %47 : vector<288x32xf32>
    %c0_51 = arith.constant 0 : index
    %c0_52 = arith.constant 0 : index
    %c38 = arith.constant 38 : index
    %c0_53 = arith.constant 0 : index
    %49 = vector.load %arg2[%c0_51, %c0_52, %c38, %c0_53] : memref<1x1x332x32xbf16, #tpu.memory_space<vmem>>, vector<1x1x288x32xbf16>
    %50 = vector.shape_cast %49 : vector<1x1x288x32xbf16> to vector<288x32xbf16>
    %c8 = arith.constant 8 : index
    %c0_54 = arith.constant 0 : index
    %c0_55 = arith.constant 0 : index
    %51 = vector.load %arg3[%c8, %c0_54, %c0_55] : memref<9x32x32xbf16, #tpu.memory_space<vmem>>, vector<1x32x32xbf16>
    %52 = vector.shape_cast %51 : vector<1x32x32xbf16> to vector<32x32xbf16>
    %cst_56 = arith.constant dense<0.000000e+00> : vector<288x32xf32>
    %53 = tpu.matmul %50, %52, %cst_56 {dimension_numbers = #tpu.dot_dimension_numbers<[1], [0], [0], [1], [0, 0, 1, 1], [], []>} : vector<288x32xbf16>, vector<32x32xbf16>, vector<288x32xf32> -> vector<288x32xf32>
    %54 = arith.addf %48, %53 : vector<288x32xf32>
    %c0_57 = arith.constant 0 : index
    %c0_58 = arith.constant 0 : index
    %55 = vector.load %arg4[%c0_57, %c0_58] : memref<1x32xf32, #tpu.memory_space<vmem>>, vector<1x32xf32>
    %56 = vector.broadcast %55 : vector<1x32xf32> to vector<288x32xf32>
    %57 = arith.mulf %54, %56 : vector<288x32xf32>
    %c0_59 = arith.constant 0 : index
    %c0_60 = arith.constant 0 : index
    %58 = vector.load %arg5[%c0_59, %c0_60] : memref<1x32xf32, #tpu.memory_space<vmem>>, vector<1x32xf32>
    %59 = vector.broadcast %58 : vector<1x32xf32> to vector<288x32xf32>
    %60 = arith.addf %57, %59 : vector<288x32xf32>
    %cst_61 = arith.constant 0.000000e+00 : f32
    %61 = vector.broadcast %cst_61 : f32 to vector<288x32xf32>
    %62 = arith.cmpf oge, %60, %61 : vector<288x32xf32>
    %cst_62 = arith.constant 0.00999999977 : f32
    %63 = vector.broadcast %cst_62 : f32 to vector<288x32xf32>
    %64 = arith.mulf %63, %60 : vector<288x32xf32>
    %65 = arith.select %62, %60, %64 : vector<288x32xi1>, vector<288x32xf32>
    %c0_63 = arith.constant 0 : index
    %c0_64 = arith.constant 0 : index
    %c0_65 = arith.constant 0 : index
    %c0_66 = arith.constant 0 : index
    %66 = vector.load %arg6[%c0_63, %c0_64, %c0_65, %c0_66] : memref<1x1x288x32xf32, #tpu.memory_space<vmem>>, vector<1x1x288x32xf32>
    %67 = vector.shape_cast %66 : vector<1x1x288x32xf32> to vector<288x32xf32>
    %68 = vector.shape_cast %65 : vector<288x32xf32> to vector<1x1x288x32xf32>
    tpu.vector_store %arg6[%c0_63, %c0_64, %c0_65, %c0_66], %68 {strides = array<i32>} : memref<1x1x288x32xf32, #tpu.memory_space<vmem>>, vector<1x1x288x32xf32>,
    return
  }
  func.func @transform_0(%arg0: i32, %arg1: i32) -> (i32, i32, i32, i32) {
    %c0_i32 = arith.constant 0 : i32
    %c0_i32_0 = arith.constant 0 : i32
    %c0_i32_1 = arith.constant 0 : i32
    return %arg0, %arg1, %c0_i32, %c0_i32_0 : i32, i32, i32, i32
  }
  func.func @transform_1(%arg0: i32, %arg1: i32) -> (i32, i32, i32) {
    %c0_i32 = arith.constant 0 : i32
    %c0_i32_0 = arith.constant 0 : i32
    %c0_i32_1 = arith.constant 0 : i32
    %c0_i32_2 = arith.constant 0 : i32
    return %c0_i32, %c0_i32_0, %c0_i32_1 : i32, i32, i32
  }
  func.func @transform_2(%arg0: i32, %arg1: i32) -> (i32, i32) {
    %c0_i32 = arith.constant 0 : i32
    %c0_i32_0 = arith.constant 0 : i32
    %c0_i32_1 = arith.constant 0 : i32
    return %c0_i32, %c0_i32_0 : i32, i32
  }
  func.func @transform_3(%arg0: i32, %arg1: i32) -> (i32, i32) {
    %c0_i32 = arith.constant 0 : i32
    %c0_i32_0 = arith.constant 0 : i32
    %c0_i32_1 = arith.constant 0 : i32
    return %c0_i32, %c0_i32_0 : i32, i32
  }
  func.func @transform_4(%arg0: i32, %arg1: i32) -> (i32, i32, i32, i32) {
    %c0_i32 = arith.constant 0 : i32
    %c0_i32_0 = arith.constant 0 : i32
    %c0_i32_1 = arith.constant 0 : i32
    return %arg0, %arg1, %c0_i32, %c0_i32_0 : i32, i32, i32, i32
  }
}

</mosaic_0001>

<llo_original>
// kernel: conv_block_forward.2
$region0: #{conv_block_forward.2}
  #allocation0 [shape = 'u32[]', space=smem, size = 0x4, offset = 0x4, fixed_abs, tag = 'smem constant byte address 0x4 - core index']
  #allocation1 [shape = 'u32[72,128]{1,0:T(1,128)}', space=vmem, size = 0x9000, scoped, tag = 'internal scratch']
  %s0 = inlined_call_operand.vmem [shape: bf16[2,1,332,4], index: 0, kind: input, shape index: {}]
  %s1 = inlined_call_operand.vmem [shape: bf16[9,4,32], index: 1, kind: input, shape index: {}]
  %s2 = inlined_call_operand.vmem [shape: f32[1,32], index: 2, kind: input, shape index: {}]
  %s3 = inlined_call_operand.vmem [shape: f32[1,32], index: 3, kind: input, shape index: {}]
  %s4 = inlined_call_operand.vmem [shape: bf16[2,1,288,32], index: 4, kind: output, shape index: {}]
  %s5 = sld [smem:[#allocation0]]
  $region49: #{conv_block_forward.2} parent=0
    _
  %s7 = ssub.s32 1, %s5
  %s8 = scalar_select 0, %s7, %s5
  loop: start=0, step=1, limit=4
  $region2: #{conv_block_forward.2} parent=0 // loop_pre_header
    _
  $region3: #{conv_block_forward.2} parent=0 // loop_header
    %s10 = sphi 0, %s14
    %p11 = scmp.ge.s32.totalorder %s10, 4
    %s17 = sphi 0, %s29
    %s18 = sphi 0, %s25
    %s19 = sphi 0, %s17
    %s20 = sphi 0, %s18
    %s21 = sphi 0, %s19
    %s22 = sphi 0, %s20
    %s34 = sphi 0, %s36
    %s37 = sphi 0, %s34
    %s38 = sphi 0, %s37
    %s54 = sphi 0, %s38
    %s58 = sphi 0, %s58
    %s60 = sphi 0, %s58
    %s61 = sphi 0, %s60
    %s75 = sphi 0, %s61
    %s79 = sphi 0, %s79
    %s81 = sphi 0, %s79
    %s82 = sphi 0, %s81
    %s96 = sphi 0, %s82
    %s100 = sphi 0, %s100
    %s102 = sphi 0, %s100
    %s103 = sphi 0, %s102
    %s117 = sphi 0, %s103
    %s125 = sphi 0, %s127
    %s128 = sphi 0, %s125
    %s129 = sphi 0, %s128
    %s145 = sphi 0, %s129
  $region4: #{conv_block_forward.2} parent=0 // loop_header_branch
    %13 = sbr.rel (%p11) target = $region8
  $region5: #{conv_block_forward.2} parent=0 // loop_body
    %s15 = ssub.s32 %s10, 1
    %s16 = ssub.s32 %s10, 2
    %s23 = sadd.s32 1, %s18
    %p24 = scmp.ge.s32.totalorder %s23, 1
    %s25 = scalar_select %p24, 0, %s23
    %s26 = sadd.s32 1, %s17
    %s27 = scalar_select %p24, %s26, %s17
    %p28 = scmp.ge.s32.totalorder %s27, 2
    %s29 = scalar_select %p28, 0, %s27
    %s30 = ssub.s32 %s17, %s29
    %s31 = ssub.s32 %s18, %s25
    %s32 = sor.u32 %s30, %s31
    %p33 = scmp.eq.s32.totalorder %s32, 0
    %s35 = sadd.s32 %s34, 1
    %s36 = scalar_select %p33, %s34, %s35
    %p39 = pneg %p33
    %p40 = scmp.eq.s32.totalorder %s10, 1
    %p41 = por %p39, %p40
    %p42 = scmp.ne.s32.totalorder %s34, %s37
    %p43 = scmp.eq.s32.totalorder %s10, 0
    %p44 = por %p42, %p43
    %p45 = scmp.ne.s32.totalorder %s34, %s37
    %p46 = scmp.eq.s32.totalorder %s15, 1
    %p47 = por %p45, %p46
    %p48 = scmp.ne.s32.totalorder %s37, %s38
    %p49 = scmp.eq.s32.totalorder %s15, 0
    %p50 = por %p48, %p49
    %p51 = scmp.ne.s32.totalorder %s37, %s38
    %p52 = scmp.eq.s32.totalorder %s16, 1
    %p53 = por %p51, %p52
    %p55 = scmp.ne.s32.totalorder %s38, %s54
    %p56 = scmp.eq.s32.totalorder %s16, 0
    %p57 = por %p55, %p56
    %s59 = sadd.s32 %s58, 1
    %p62 = scmp.eq.s32.totalorder %s10, 1
    %p63 = scmp.ne.s32.totalorder %s58, %s60
    %p64 = scmp.eq.s32.totalorder %s10, 0
    %p65 = por %p63, %p64
    %p66 = scmp.ne.s32.totalorder %s58, %s60
    %p67 = scmp.eq.s32.totalorder %s15, 1
    %p68 = por %p66, %p67
    %p69 = scmp.ne.s32.totalorder %s60, %s61
    %p70 = scmp.eq.s32.totalorder %s15, 0
    %p71 = por %p69, %p70
    %p72 = scmp.ne.s32.totalorder %s60, %s61
    %p73 = scmp.eq.s32.totalorder %s16, 1
    %p74 = por %p72, %p73
    %p76 = scmp.ne.s32.totalorder %s61, %s75
    %p77 = scmp.eq.s32.totalorder %s16, 0
    %p78 = por %p76, %p77
    %s80 = sadd.s32 %s79, 1
    %p83 = scmp.eq.s32.totalorder %s10, 1
    %p84 = scmp.ne.s32.totalorder %s79, %s81
    %p85 = scmp.eq.s32.totalorder %s10, 0
    %p86 = por %p84, %p85
    %p87 = scmp.ne.s32.totalorder %s79, %s81
    %p88 = scmp.eq.s32.totalorder %s15, 1
    %p89 = por %p87, %p88
    %p90 = scmp.ne.s32.totalorder %s81, %s82
    %p91 = scmp.eq.s32.totalorder %s15, 0
    %p92 = por %p90, %p91
    %p93 = scmp.ne.s32.totalorder %s81, %s82
    %p94 = scmp.eq.s32.totalorder %s16, 1
    %p95 = por %p93, %p94
    %p97 = scmp.ne.s32.totalorder %s82, %s96
    %p98 = scmp.eq.s32.totalorder %s16, 0
    %p99 = por %p97, %p98
    %s101 = sadd.s32 %s100, 1
    %p104 = scmp.eq.s32.totalorder %s10, 1
    %p105 = scmp.ne.s32.totalorder %s100, %s102
    %p106 = scmp.eq.s32.totalorder %s10, 0
    %p107 = por %p105, %p106
    %p108 = scmp.ne.s32.totalorder %s100, %s102
    %p109 = scmp.eq.s32.totalorder %s15, 1
    %p110 = por %p108, %p109
    %p111 = scmp.ne.s32.totalorder %s102, %s103
    %p112 = scmp.eq.s32.totalorder %s15, 0
    %p113 = por %p111, %p112
    %p114 = scmp.ne.s32.totalorder %s102, %s103
    %p115 = scmp.eq.s32.totalorder %s16, 1
    %p116 = por %p114, %p115
    %p118 = scmp.ne.s32.totalorder %s103, %s117
    %p119 = scmp.eq.s32.totalorder %s16, 0
    %p120 = por %p118, %p119
    %s121 = ssub.s32 %s17, %s29
    %s122 = ssub.s32 %s18, %s25
    %s123 = sor.u32 %s121, %s122
    %p124 = scmp.eq.s32.totalorder %s123, 0
    %s126 = sadd.s32 %s125, 1
    %s127 = scalar_select %p124, %s125, %s126
    %p130 = pneg %p124
    %p131 = scmp.eq.s32.totalorder %s10, 1
    %p132 = por %p130, %p131
    %p133 = scmp.ne.s32.totalorder %s125, %s128
    %p134 = scmp.eq.s32.totalorder %s10, 0
    %p135 = por %p133, %p134
    %p136 = scmp.ne.s32.totalorder %s125, %s128
    %p137 = scmp.eq.s32.totalorder %s15, 1
    %p138 = por %p136, %p137
    %p139 = scmp.ne.s32.totalorder %s128, %s129
    %p140 = scmp.eq.s32.totalorder %s15, 0
    %p141 = por %p139, %p140
    %p142 = scmp.ne.s32.totalorder %s128, %s129
    %p143 = scmp.eq.s32.totalorder %s16, 1
    %p144 = por %p142, %p143
    %p146 = scmp.ne.s32.totalorder %s129, %s145
    %p147 = scmp.eq.s32.totalorder %s16, 0
    %p148 = por %p146, %p147
    %p149 = scmp.le.s32.totalorder 1, %s10
    %p150 = scmp.lt.s32.totalorder %s10, 3
    %p151 = pnand %p149, %p150
    %p152 = pneg %p151
    // Predicated region
    $region9: #{conv_block_forward.2} parent=5 // pred_check
      _
    $region10: #{conv_block_forward.2} parent=5 // pred_check_branch
      %154 = sbr.rel (%p151) target = $region12
    $region11: #{conv_block_forward.2} parent=5 // pred_region
      %s155 = ssub.s32 %s10, 1
      // Predicated region
      $region13: #{conv_block_forward.2} parent=11 // pred_check
        %p156 = pneg %p71
      $region14: #{conv_block_forward.2} parent=11 // pred_check_branch
        %158 = sbr.rel (%p156) target = $region16
      $region15: #{conv_block_forward.2} parent=11 // pred_region
        _
      $region16: #{conv_block_forward.2} parent=11 // pred_fallthru
        _
      // Predicated region
      $region17: #{conv_block_forward.2} parent=11 // pred_check
        %p159 = pneg %p92
      $region18: #{conv_block_forward.2} parent=11 // pred_check_branch
        %161 = sbr.rel (%p159) target = $region20
      $region19: #{conv_block_forward.2} parent=11 // pred_region
        _
      $region20: #{conv_block_forward.2} parent=11 // pred_fallthru
        _
      // Predicated region
      $region21: #{conv_block_forward.2} parent=11 // pred_check
        %p162 = pneg %p113
      $region22: #{conv_block_forward.2} parent=11 // pred_check_branch
        %164 = sbr.rel (%p162) target = $region24
      $region23: #{conv_block_forward.2} parent=11 // pred_region
        _
      $region24: #{conv_block_forward.2} parent=11 // pred_fallthru
        _
    $region12: #{conv_block_forward.2} parent=5 // pred_fallthru
      _
    %p165 = scmp.lt.s32.totalorder %s10, 2
    // Predicated region
    $region25: #{conv_block_forward.2} parent=5 // pred_check
      %p166 = pneg %p165
    $region26: #{conv_block_forward.2} parent=5 // pred_check_branch
      %168 = sbr.rel (%p166) target = $region28
    $region27: #{conv_block_forward.2} parent=5 // pred_region
      // Predicated region
      $region29: #{conv_block_forward.2} parent=27 // pred_check
        %p169 = pneg %p44
      $region30: #{conv_block_forward.2} parent=27 // pred_check_branch
        %171 = sbr.rel (%p169) target = $region32
      $region31: #{conv_block_forward.2} parent=27 // pred_region
        %p172 = scmp.lt.s32.totalorder %s17, 1
        %s173 = scalar_select %p172, %s17, 1
        %p174 = scmp.lt.s32.totalorder %s18, 0
        %s175 = scalar_select %p174, %s18, 0
        %s176 = smul.addr %s175, 42
        %s177 = smul.addr %s173, 42
        %s178 = sadd.s32 %s176, %s177
        %s179 = smul.addr %s178, 4
        %s180 = scalar_lea.vmem %s0, %s179
      $region32: #{conv_block_forward.2} parent=27 // pred_fallthru
        _
    $region28: #{conv_block_forward.2} parent=5 // pred_fallthru
      _
    %p181 = scmp.le.s32.totalorder 1, %s10
    %p182 = scmp.lt.s32.totalorder %s10, 3
    %p183 = pnand %p181, %p182
    %p184 = pneg %p183
    // Predicated region
    $region33: #{conv_block_forward.2} parent=5 // pred_check
      _
    $region34: #{conv_block_forward.2} parent=5 // pred_check_branch
      %186 = sbr.rel (%p183) target = $region36
    $region35: #{conv_block_forward.2} parent=5 // pred_region
      %s187 = ssub.s32 %s10, 1
      %p188 = scmp.lt.s32.totalorder %s19, 1
      %s189 = scalar_select %p188, %s19, 1
      %p190 = scmp.lt.s32.totalorder %s20, 0
      %s191 = scalar_select %p190, %s20, 0
      %s192 = smul.addr %s191, 42
      %s193 = smul.addr %s189, 42
      %s194 = sadd.s32 %s192, %s193
      %s195 = smul.addr %s194, 4
      %s196 = scalar_lea.vmem %s0, %s195
      %p197 = pneg %p50
      %p198 = pneg %p47
      %p199 = pneg %p71
      %p200 = pneg %p68
      %p201 = pneg %p92
      %p202 = pneg %p89
      %p203 = pneg %p113
      %p204 = pneg %p110
      %p205 = pneg %p141
      %p206 = pneg %p138
      %p207 = scmp.lt.s32.totalorder %s19, 1
      %s208 = scalar_select %p207, %s19, 1
      %p209 = scmp.lt.s32.totalorder %s20, 0
      %s210 = scalar_select %p209, %s20, 0
      %s211 = smul.addr %s210, 36
      %s212 = smul.addr %s208, 36
      %s213 = sadd.s32 %s211, %s212
      %s214 = smul.addr %s213, 4
      %s215 = scalar_lea.vmem %s4, %s214
      %p216 = scmp.lt.s32.totalorder %s19, 1
      %s217 = scalar_select %p216, %s19, 1
      %p218 = scmp.lt.s32.totalorder %s20, 0
      %s219 = scalar_select %p218, %s20, 0
      %s220 = smul.addr %s219, 42
      %s221 = smul.addr %s217, 42
      %s222 = sadd.s32 %s220, %s221
      %s223 = smul.addr %s222, 4
      %s224 = scalar_lea.vmem %s0, %s223
      %p225 = scmp.lt.s32.totalorder %s19, 1
      %s226 = scalar_select %p225, %s19, 1
      %p227 = scmp.lt.s32.totalorder %s20, 0
      %s228 = scalar_select %p227, %s20, 0
      %s229 = smul.addr %s228, 36
      %s230 = smul.addr %s226, 36
      %s231 = sadd.s32 %s229, %s230
      %s232 = smul.addr %s231, 4
      %s233 = scalar_lea.vmem %s4, %s232
      %v235 = vld [vmem:[%s224] sm:$0xf]
      %v236 = vld [vmem:[%s224 + $0x4] sm:$0xf]
      %v237 = vld [vmem:[%s224 + $0x8] sm:$0xf]
      %v238 = vld [vmem:[%s224 + $0xc] sm:$0xf]
      %v239 = vld [vmem:[%s224 + $0x10] sm:$0xf]
      %v240 = vld [vmem:[%s224 + $0x14] sm:$0xf]
      %v241 = vld [vmem:[%s224 + $0x18] sm:$0xf]
      %v242 = vld [vmem:[%s224 + $0x1c] sm:$0xf]
      %v243 = vld [vmem:[%s224 + $0x20] sm:$0xf]
      %v244 = vld [vmem:[%s224 + $0x24] sm:$0xf]
      %v245 = vld [vmem:[%s224 + $0x28] sm:$0xf]
      %v246 = vld [vmem:[%s224 + $0x2c] sm:$0xf]
      %v247 = vld [vmem:[%s224 + $0x30] sm:$0xf]
      %v248 = vld [vmem:[%s224 + $0x34] sm:$0xf]
      %v249 = vld [vmem:[%s224 + $0x38] sm:$0xf]
      %v250 = vld [vmem:[%s224 + $0x3c] sm:$0xf]
      %v251 = vld [vmem:[%s224 + $0x40] sm:$0xf]
      %v252 = vld [vmem:[%s224 + $0x44] sm:$0xf]
      %v253 = vld [vmem:[%s224 + $0x48] sm:$0xf]
      %v254 = vld [vmem:[%s224 + $0x4c] sm:$0xf]
      %v255 = vld [vmem:[%s224 + $0x50] sm:$0xf]
      %v256 = vld [vmem:[%s224 + $0x54] sm:$0xf]
      %v257 = vld [vmem:[%s224 + $0x58] sm:$0xf]
      %v258 = vld [vmem:[%s224 + $0x5c] sm:$0xf]
      %v259 = vld [vmem:[%s224 + $0x60] sm:$0xf]
      %v260 = vld [vmem:[%s224 + $0x64] sm:$0xf]
      %v261 = vld [vmem:[%s224 + $0x68] sm:$0xf]
      %v262 = vld [vmem:[%s224 + $0x6c] sm:$0xf]
      %v263 = vld [vmem:[%s224 + $0x70] sm:$0xf]
      %v264 = vld [vmem:[%s224 + $0x74] sm:$0xf]
      %v265 = vld [vmem:[%s224 + $0x78] sm:$0xf]
      %v266 = vld [vmem:[%s224 + $0x7c] sm:$0xf]
      %v267 = vld [vmem:[%s224 + $0x80] sm:$0xf]
      %v268 = vld [vmem:[%s224 + $0x84] sm:$0xf]
      %v269 = vld [vmem:[%s224 + $0x88] sm:$0xf]
      %v270 = vld [vmem:[%s224 + $0x8c] sm:$0xf]
      %v271 = vld [vmem:[%s1] sm:$0x3]
      %v272 = vld [vmem:[%s224 + $0x90] sm:$0x1]
      %s273 = scalar_lea.vmem %s1, 2
      %v274 = vld [vmem:[%s273] sm:$0x3]
      %v312 = vunpack.c.l.b16 %v235
      %v313 = vunpack.c.l.b16 %v236
      %v314 = vunpack.c.l.b16 %v237
      %v315 = vunpack.c.l.b16 %v238
      %v316 = vunpack.c.l.b16 %v239
      %v317 = vunpack.c.l.b16 %v240
      %v318 = vunpack.c.l.b16 %v241
      %v319 = vunpack.c.l.b16 %v242
      %v320 = vunpack.c.l.b16 %v243
      %v321 = vunpack.c.l.b16 %v244
      %v322 = vunpack.c.l.b16 %v245
      %v323 = vunpack.c.l.b16 %v246
      %v324 = vunpack.c.l.b16 %v247
      %v325 = vunpack.c.l.b16 %v248
      %v326 = vunpack.c.l.b16 %v249
      %v327 = vunpack.c.l.b16 %v250
      %v328 = vunpack.c.l.b16 %v251
      %v329 = vunpack.c.l.b16 %v252
      %v330 = vunpack.c.l.b16 %v253
      %v331 = vunpack.c.l.b16 %v254
      %v332 = vunpack.c.l.b16 %v255
      %v333 = vunpack.c.l.b16 %v256
      %v334 = vunpack.c.l.b16 %v257
      %v335 = vunpack.c.l.b16 %v258
      %v336 = vunpack.c.l.b16 %v259
      %v337 = vunpack.c.l.b16 %v260
      %v338 = vunpack.c.l.b16 %v261
      %v339 = vunpack.c.l.b16 %v262
      %v340 = vunpack.c.l.b16 %v263
      %v341 = vunpack.c.l.b16 %v264
      %v342 = vunpack.c.l.b16 %v265
      %v343 = vunpack.c.l.b16 %v266
      %v344 = vunpack.c.l.b16 %v267
      %v345 = vunpack.c.l.b16 %v268
      %v346 = vunpack.c.l.b16 %v269
      %v347 = vunpack.c.l.b16 %v270
      %v348 = vunpack.c.l.b16 %v272
      %v349 = vpack.c.b16 %v313, %v312
      %v350 = vpack.c.b16 %v315, %v314
      %v351 = vpack.c.b16 %v317, %v316
      %v352 = vpack.c.b16 %v319, %v318
      %v353 = vpack.c.b16 %v321, %v320
      %v354 = vpack.c.b16 %v323, %v322
      %v355 = vpack.c.b16 %v325, %v324
      %v356 = vpack.c.b16 %v327, %v326
      %v357 = vpack.c.b16 %v329, %v328
      %v358 = vpack.c.b16 %v331, %v330
      %v359 = vpack.c.b16 %v333, %v332
      %v360 = vpack.c.b16 %v335, %v334
      %v361 = vpack.c.b16 %v337, %v336
      %v362 = vpack.c.b16 %v339, %v338
      %v363 = vpack.c.b16 %v341, %v340
      %v364 = vpack.c.b16 %v343, %v342
      %v365 = vpack.c.b16 %v345, %v344
      %v366 = vpack.c.b16 %v347, %v346
      %v367 = vpack.c.b16 %v348, %v348
      %vm368 = vsmask.f32 7424
      %v370 = vshrl.u32 %v349, 16
      %v372 = vshll.u32 %v349, 16
      %v374 = vrot.slane %v372, 1
      %v375 = vor.u32 %v370, %v374
      %v377 = vshll.u32 %v350, 16
      %v379 = vrot.slane %v377, 1
      %v380 = vsel %vm368, %v375, %v379
      %v381 = vshrl.u32 %v350, 16
      %v383 = vor.u32 %v381, %v379
      %v385 = vshll.u32 %v351, 16
      %v387 = vrot.slane %v385, 1
      %v388 = vsel %vm368, %v383, %v387
      %v389 = vshrl.u32 %v351, 16
      %v391 = vor.u32 %v389, %v387
      %v393 = vshll.u32 %v352, 16
      %v395 = vrot.slane %v393, 1
      %v396 = vsel %vm368, %v391, %v395
      %v397 = vshrl.u32 %v352, 16
      %v399 = vor.u32 %v397, %v395
      %v401 = vshll.u32 %v353, 16
      %v403 = vrot.slane %v401, 1
      %v404 = vsel %vm368, %v399, %v403
      %v405 = vshrl.u32 %v353, 16
      %v407 = vor.u32 %v405, %v403
      %v409 = vshll.u32 %v354, 16
      %v411 = vrot.slane %v409, 1
      %v412 = vsel %vm368, %v407, %v411
      %v413 = vshrl.u32 %v354, 16
      %v415 = vor.u32 %v413, %v411
      %v417 = vshll.u32 %v355, 16
      %v419 = vrot.slane %v417, 1
      %v420 = vsel %vm368, %v415, %v419
      %v421 = vshrl.u32 %v355, 16
      %v423 = vor.u32 %v421, %v419
      %v425 = vshll.u32 %v356, 16
      %v427 = vrot.slane %v425, 1
      %v428 = vsel %vm368, %v423, %v427
      %v429 = vshrl.u32 %v356, 16
      %v431 = vor.u32 %v429, %v427
      %v433 = vshll.u32 %v357, 16
      %v435 = vrot.slane %v433, 1
      %v436 = vsel %vm368, %v431, %v435
      %v437 = vshrl.u32 %v357, 16
      %v439 = vor.u32 %v437, %v435
      %v441 = vshll.u32 %v358, 16
      %v443 = vrot.slane %v441, 1
      %v444 = vsel %vm368, %v439, %v443
      %v445 = vshrl.u32 %v358, 16
      %v447 = vor.u32 %v445, %v443
      %v449 = vshll.u32 %v359, 16
      %v451 = vrot.slane %v449, 1
      %v452 = vsel %vm368, %v447, %v451
      %v453 = vshrl.u32 %v359, 16
      %v455 = vor.u32 %v453, %v451
      %v457 = vshll.u32 %v360, 16
      %v459 = vrot.slane %v457, 1
      %v460 = vsel %vm368, %v455, %v459
      %v461 = vshrl.u32 %v360, 16
      %v463 = vor.u32 %v461, %v459
      %v465 = vshll.u32 %v361, 16
      %v467 = vrot.slane %v465, 1
      %v468 = vsel %vm368, %v463, %v467
      %v469 = vshrl.u32 %v361, 16
      %v471 = vor.u32 %v469, %v467
      %v473 = vshll.u32 %v362, 16
      %v475 = vrot.slane %v473, 1
      %v476 = vsel %vm368, %v471, %v475
      %v477 = vshrl.u32 %v362, 16
      %v479 = vor.u32 %v477, %v475
      %v481 = vshll.u32 %v363, 16
      %v483 = vrot.slane %v481, 1
      %v484 = vsel %vm368, %v479, %v483
      %v485 = vshrl.u32 %v363, 16
      %v487 = vor.u32 %v485, %v483
      %v489 = vshll.u32 %v364, 16
      %v491 = vrot.slane %v489, 1
      %v492 = vsel %vm368, %v487, %v491
      %v493 = vshrl.u32 %v364, 16
      %v495 = vor.u32 %v493, %v491
      %v497 = vshll.u32 %v365, 16
      %v499 = vrot.slane %v497, 1
      %v500 = vsel %vm368, %v495, %v499
      %v501 = vshrl.u32 %v365, 16
      %v503 = vor.u32 %v501, %v499
      %v505 = vshll.u32 %v366, 16
      %v507 = vrot.slane %v505, 1
      %v508 = vsel %vm368, %v503, %v507
      %v509 = vshrl.u32 %v366, 16
      %v511 = vor.u32 %v509, %v507
      %v513 = vshll.u32 %v367, 16
      %v515 = vrot.slane %v513, 1
      %v516 = vsel %vm368, %v511, %v515
      %vm517 = vcmask 31744
      %v519 = vsel %vm517, %v380, 0
      %v522 = vsel %vm517, %v388, 0
      %v525 = vsel %vm517, %v396, 0
      %v528 = vsel %vm517, %v404, 0
      %v531 = vsel %vm517, %v412, 0
      %v534 = vsel %vm517, %v420, 0
      %v537 = vsel %vm517, %v428, 0
      %v540 = vsel %vm517, %v436, 0
      %v543 = vsel %vm517, %v444, 0
      %v546 = vsel %vm517, %v452, 0
      %v549 = vsel %vm517, %v460, 0
      %v552 = vsel %vm517, %v468, 0
      %v555 = vsel %vm517, %v476, 0
      %v558 = vsel %vm517, %v484, 0
      %v561 = vsel %vm517, %v492, 0
      %v564 = vsel %vm517, %v500, 0
      %v567 = vsel %vm517, %v508, 0
      %v570 = vsel %vm517, %v516, 0
      %vm572 = vcmask 1041408
      %v574 = vsel %vm572, %v274, 0
      %576 = vmatpush.bf16.msra.mxu0 0
      %577 = vmatpush.bf16.msra.mxu0 0
      %578 = vmatpush.bf16.msra.mxu0 0
      %579 = vmatpush.bf16.msra.mxu0 0
      %580 = vmatpush.bf16.msra.mxu0 0
      %581 = vmatpush.bf16.msra.mxu0 0
      %582 = vmatpush.bf16.msra.mxu0 0
      %583 = vmatpush.bf16.msra.mxu0 %v574
      %584 = vmatmul.bf16.gmra.mxu0 %v519
      %v585 = vpop.f32.mrf.mxu0
      %v586 = vadd.f32 0.0, %v585
      %v587 = vpop.f32.mrf.mxu0
      %v588 = vadd.f32 0.0, %v587
      %589 = vmatmul.bf16.gmra.mxu0 %v522
      %v590 = vpop.f32.mrf.mxu0
      %v591 = vadd.f32 0.0, %v590
      %v592 = vpop.f32.mrf.mxu0
      %v593 = vadd.f32 0.0, %v592
      %594 = vmatmul.bf16.gmra.mxu0 %v525
      %v595 = vpop.f32.mrf.mxu0
      %v596 = vadd.f32 0.0, %v595
      %v597 = vpop.f32.mrf.mxu0
      %v598 = vadd.f32 0.0, %v597
      %599 = vmatmul.bf16.gmra.mxu0 %v528
      %v600 = vpop.f32.mrf.mxu0
      %v601 = vadd.f32 0.0, %v600
      %v602 = vpop.f32.mrf.mxu0
      %v603 = vadd.f32 0.0, %v602
      %604 = vmatmul.bf16.gmra.mxu0 %v531
      %v605 = vpop.f32.mrf.mxu0
      %v606 = vadd.f32 0.0, %v605
      %v607 = vpop.f32.mrf.mxu0
      %v608 = vadd.f32 0.0, %v607
      %609 = vmatmul.bf16.gmra.mxu0 %v534
      %v610 = vpop.f32.mrf.mxu0
      %v611 = vadd.f32 0.0, %v610
      %v612 = vpop.f32.mrf.mxu0
      %v613 = vadd.f32 0.0, %v612
      %614 = vmatmul.bf16.gmra.mxu0 %v537
      %v615 = vpop.f32.mrf.mxu0
      %v616 = vadd.f32 0.0, %v615
      %v617 = vpop.f32.mrf.mxu0
      %v618 = vadd.f32 0.0, %v617
      %619 = vmatmul.bf16.gmra.mxu0 %v540
      %v620 = vpop.f32.mrf.mxu0
      %v621 = vadd.f32 0.0, %v620
      %v622 = vpop.f32.mrf.mxu0
      %v623 = vadd.f32 0.0, %v622
      %624 = vmatmul.bf16.gmra.mxu0 %v543
      %v625 = vpop.f32.mrf.mxu0
      %v626 = vadd.f32 0.0, %v625
      %v627 = vpop.f32.mrf.mxu0
      %v628 = vadd.f32 0.0, %v627
      %629 = vmatmul.bf16.gmra.mxu0 %v546
      %v630 = vpop.f32.mrf.mxu0
      %v631 = vadd.f32 0.0, %v630
      %v632 = vpop.f32.mrf.mxu0
      %v633 = vadd.f32 0.0, %v632
      %634 = vmatmul.bf16.gmra.mxu0 %v549
      %v635 = vpop.f32.mrf.mxu0
      %v636 = vadd.f32 0.0, %v635
      %v637 = vpop.f32.mrf.mxu0
      %v638 = vadd.f32 0.0, %v637
      %639 = vmatmul.bf16.gmra.mxu0 %v552
      %v640 = vpop.f32.mrf.mxu0
      %v641 = vadd.f32 0.0, %v640
      %v642 = vpop.f32.mrf.mxu0
      %v643 = vadd.f32 0.0, %v642
      %644 = vmatmul.bf16.gmra.mxu0 %v555
      %v645 = vpop.f32.mrf.mxu0
      %v646 = vadd.f32 0.0, %v645
      %v647 = vpop.f32.mrf.mxu0
      %v648 = vadd.f32 0.0, %v647
      %649 = vmatmul.bf16.gmra.mxu0 %v558
      %v650 = vpop.f32.mrf.mxu0
      %v651 = vadd.f32 0.0, %v650
      %v652 = vpop.f32.mrf.mxu0
      %v653 = vadd.f32 0.0, %v652
      %654 = vmatmul.bf16.gmra.mxu0 %v561
      %v655 = vpop.f32.mrf.mxu0
      %v656 = vadd.f32 0.0, %v655
      %v657 = vpop.f32.mrf.mxu0
      %v658 = vadd.f32 0.0, %v657
      %659 = vmatmul.bf16.gmra.mxu0 %v564
      %v660 = vpop.f32.mrf.mxu0
      %v661 = vadd.f32 0.0, %v660
      %v662 = vpop.f32.mrf.mxu0
      %v663 = vadd.f32 0.0, %v662
      %664 = vmatmul.bf16.gmra.mxu0 %v567
      %v665 = vpop.f32.mrf.mxu0
      %v666 = vadd.f32 0.0, %v665
      %v667 = vpop.f32.mrf.mxu0
      %v668 = vadd.f32 0.0, %v667
      %669 = vmatmul.bf16.gmra.mxu0 %v570
      %v670 = vpop.f32.mrf.mxu0
      %v671 = vadd.f32 0.0, %v670
      %v672 = vpop.f32.mrf.mxu0
      %v673 = vadd.f32 0.0, %v672
      %674 = vdwg.mxu0
      %v675 = vsel %vm517, %v349, 0
      %v677 = vsel %vm517, %v350, 0
      %v679 = vsel %vm517, %v351, 0
      %v681 = vsel %vm517, %v352, 0
      %v683 = vsel %vm517, %v353, 0
      %v685 = vsel %vm517, %v354, 0
      %v687 = vsel %vm517, %v355, 0
      %v689 = vsel %vm517, %v356, 0
      %v691 = vsel %vm517, %v357, 0
      %v693 = vsel %vm517, %v358, 0
      %v695 = vsel %vm517, %v359, 0
      %v697 = vsel %vm517, %v360, 0
      %v699 = vsel %vm517, %v361, 0
      %v701 = vsel %vm517, %v362, 0
      %v703 = vsel %vm517, %v363, 0
      %v705 = vsel %vm517, %v364, 0
      %v707 = vsel %vm517, %v365, 0
      %v709 = vsel %vm517, %v366, 0
      %v712 = vsel %vm572, %v271, 0
      %714 = vmatpush.bf16.msra.mxu0 0
      %715 = vmatpush.bf16.msra.mxu0 0
      %716 = vmatpush.bf16.msra.mxu0 0
      %717 = vmatpush.bf16.msra.mxu0 0
      %718 = vmatpush.bf16.msra.mxu0 0
      %719 = vmatpush.bf16.msra.mxu0 0
      %720 = vmatpush.bf16.msra.mxu0 0
      %721 = vmatpush.bf16.msra.mxu0 %v712
      %722 = vmatmul.bf16.gmra.mxu0 %v675
      %v723 = vpop.f32.mrf.mxu0
      %v724 = vadd.f32 %v586, %v723
      %v725 = vpop.f32.mrf.mxu0
      %v726 = vadd.f32 %v588, %v725
      %727 = vmatmul.bf16.gmra.mxu0 %v677
      %v728 = vpop.f32.mrf.mxu0
      %v729 = vadd.f32 %v591, %v728
      %v730 = vpop.f32.mrf.mxu0
      %v731 = vadd.f32 %v593, %v730
      %732 = vmatmul.bf16.gmra.mxu0 %v679
      %v733 = vpop.f32.mrf.mxu0
      %v734 = vadd.f32 %v596, %v733
      %v735 = vpop.f32.mrf.mxu0
      %v736 = vadd.f32 %v598, %v735
      %737 = vmatmul.bf16.gmra.mxu0 %v681
      %v738 = vpop.f32.mrf.mxu0
      %v739 = vadd.f32 %v601, %v738
      %v740 = vpop.f32.mrf.mxu0
      %v741 = vadd.f32 %v603, %v740
      %742 = vmatmul.bf16.gmra.mxu0 %v683
      %v743 = vpop.f32.mrf.mxu0
      %v744 = vadd.f32 %v606, %v743
      %v745 = vpop.f32.mrf.mxu0
      %v746 = vadd.f32 %v608, %v745
      %747 = vmatmul.bf16.gmra.mxu0 %v685
      %v748 = vpop.f32.mrf.mxu0
      %v749 = vadd.f32 %v611, %v748
      %v750 = vpop.f32.mrf.mxu0
      %v751 = vadd.f32 %v613, %v750
      %752 = vmatmul.bf16.gmra.mxu0 %v687
      %v753 = vpop.f32.mrf.mxu0
      %v754 = vadd.f32 %v616, %v753
      %v755 = vpop.f32.mrf.mxu0
      %v756 = vadd.f32 %v618, %v755
      %757 = vmatmul.bf16.gmra.mxu0 %v689
      %v758 = vpop.f32.mrf.mxu0
      %v759 = vadd.f32 %v621, %v758
      %v760 = vpop.f32.mrf.mxu0
      %v761 = vadd.f32 %v623, %v760
      %762 = vmatmul.bf16.gmra.mxu0 %v691
      %v763 = vpop.f32.mrf.mxu0
      %v764 = vadd.f32 %v626, %v763
      %v765 = vpop.f32.mrf.mxu0
      %v766 = vadd.f32 %v628, %v765
      %767 = vmatmul.bf16.gmra.mxu0 %v693
      %v768 = vpop.f32.mrf.mxu0
      %v769 = vadd.f32 %v631, %v768
      %v770 = vpop.f32.mrf.mxu0
      %v771 = vadd.f32 %v633, %v770
      %772 = vmatmul.bf16.gmra.mxu0 %v695
      %v773 = vpop.f32.mrf.mxu0
      %v774 = vadd.f32 %v636, %v773
      %v775 = vpop.f32.mrf.mxu0
      %v776 = vadd.f32 %v638, %v775
      %777 = vmatmul.bf16.gmra.mxu0 %v697
      %v778 = vpop.f32.mrf.mxu0
      %v779 = vadd.f32 %v641, %v778
      %v780 = vpop.f32.mrf.mxu0
      %v781 = vadd.f32 %v643, %v780
      %782 = vmatmul.bf16.gmra.mxu0 %v699
      %v783 = vpop.f32.mrf.mxu0
      %v784 = vadd.f32 %v646, %v783
      %v785 = vpop.f32.mrf.mxu0
      %v786 = vadd.f32 %v648, %v785
      %787 = vmatmul.bf16.gmra.mxu0 %v701
      %v788 = vpop.f32.mrf.mxu0
      %v789 = vadd.f32 %v651, %v788
      %v790 = vpop.f32.mrf.mxu0
      %v791 = vadd.f32 %v653, %v790
      %792 = vmatmul.bf16.gmra.mxu0 %v703
      %v793 = vpop.f32.mrf.mxu0
      %v794 = vadd.f32 %v656, %v793
      %v795 = vpop.f32.mrf.mxu0
      %v796 = vadd.f32 %v658, %v795
      %797 = vmatmul.bf16.gmra.mxu0 %v705
      %v798 = vpop.f32.mrf.mxu0
      %v799 = vadd.f32 %v661, %v798
      %v800 = vpop.f32.mrf.mxu0
      %v801 = vadd.f32 %v663, %v800
      %802 = vmatmul.bf16.gmra.mxu0 %v707
      %v803 = vpop.f32.mrf.mxu0
      %v804 = vadd.f32 %v666, %v803
      %v805 = vpop.f32.mrf.mxu0
      %v806 = vadd.f32 %v668, %v805
      %807 = vmatmul.bf16.gmra.mxu0 %v709
      %v808 = vpop.f32.mrf.mxu0
      %v809 = vadd.f32 %v671, %v808
      %v810 = vpop.f32.mrf.mxu0
      %v811 = vadd.f32 %v673, %v810
      %812 = vdwg.mxu0
      %v813 = vld [vmem:[%s224] sm:$0xe]
      %s814 = scalar_lea.vmem %s1, 4
      %v815 = vld [vmem:[%s814] sm:$0x3]
      %v817 = vunpack.c.l.b16 %v813
      %v818 = vpack.c.b16 %v313, %v817
      %vm819 = vcmask 1046528
      %v820 = vrot.slane %v818, 1
      %v821 = vrot.slane %v350, 1
      %v822 = vsel %vm819, %v820, %v821
      %v823 = vrot.slane %v351, 1
      %v824 = vsel %vm819, %v821, %v823
      %v825 = vrot.slane %v352, 1
      %v826 = vsel %vm819, %v823, %v825
      %v827 = vrot.slane %v353, 1
      %v828 = vsel %vm819, %v825, %v827
      %v829 = vrot.slane %v354, 1
      %v830 = vsel %vm819, %v827, %v829
      %v831 = vrot.slane %v355, 1
      %v832 = vsel %vm819, %v829, %v831
      %v833 = vrot.slane %v356, 1
      %v834 = vsel %vm819, %v831, %v833
      %v835 = vrot.slane %v357, 1
      %v836 = vsel %vm819, %v833, %v835
      %v837 = vrot.slane %v358, 1
      %v838 = vsel %vm819, %v835, %v837
      %v839 = vrot.slane %v359, 1
      %v840 = vsel %vm819, %v837, %v839
      %v841 = vrot.slane %v360, 1
      %v842 = vsel %vm819, %v839, %v841
      %v843 = vrot.slane %v361, 1
      %v844 = vsel %vm819, %v841, %v843
      %v845 = vrot.slane %v362, 1
      %v846 = vsel %vm819, %v843, %v845
      %v847 = vrot.slane %v363, 1
      %v848 = vsel %vm819, %v845, %v847
      %v849 = vrot.slane %v364, 1
      %v850 = vsel %vm819, %v847, %v849
      %v851 = vrot.slane %v365, 1
      %v852 = vsel %vm819, %v849, %v851
      %v853 = vrot.slane %v366, 1
      %v854 = vsel %vm819, %v851, %v853
      %v855 = vrot.slane %v367, 1
      %v856 = vsel %vm819, %v853, %v855
      %v858 = vsel %vm517, %v822, 0
      %v861 = vsel %vm517, %v824, 0
      %v864 = vsel %vm517, %v826, 0
      %v867 = vsel %vm517, %v828, 0
      %v870 = vsel %vm517, %v830, 0
      %v873 = vsel %vm517, %v832, 0
      %v876 = vsel %vm517, %v834, 0
      %v879 = vsel %vm517, %v836, 0
      %v882 = vsel %vm517, %v838, 0
      %v885 = vsel %vm517, %v840, 0
      %v888 = vsel %vm517, %v842, 0
      %v891 = vsel %vm517, %v844, 0
      %v894 = vsel %vm517, %v846, 0
      %v897 = vsel %vm517, %v848, 0
      %v900 = vsel %vm517, %v850, 0
      %v903 = vsel %vm517, %v852, 0
      %v906 = vsel %vm517, %v854, 0
      %v909 = vsel %vm517, %v856, 0
      %v912 = vsel %vm572, %v815, 0
      %914 = vmatpush.bf16.msra.mxu0 0
      %915 = vmatpush.bf16.msra.mxu0 0
      %916 = vmatpush.bf16.msra.mxu0 0
      %917 = vmatpush.bf16.msra.mxu0 0
      %918 = vmatpush.bf16.msra.mxu0 0
      %919 = vmatpush.bf16.msra.mxu0 0
      %920 = vmatpush.bf16.msra.mxu0 0
      %921 = vmatpush.bf16.msra.mxu0 %v912
      %922 = vmatmul.bf16.gmra.mxu0 %v858
      %v923 = vpop.f32.mrf.mxu0
      %v924 = vadd.f32 0.0, %v923
      %v925 = vpop.f32.mrf.mxu0
      %v926 = vadd.f32 0.0, %v925
      %927 = vmatmul.bf16.gmra.mxu0 %v861
      %v928 = vpop.f32.mrf.mxu0
      %v929 = vadd.f32 0.0, %v928
      %v930 = vpop.f32.mrf.mxu0
      %v931 = vadd.f32 0.0, %v930
      %932 = vmatmul.bf16.gmra.mxu0 %v864
      %v933 = vpop.f32.mrf.mxu0
      %v934 = vadd.f32 0.0, %v933
      %v935 = vpop.f32.mrf.mxu0
      %v936 = vadd.f32 0.0, %v935
      %937 = vmatmul.bf16.gmra.mxu0 %v867
      %v938 = vpop.f32.mrf.mxu0
      %v939 = vadd.f32 0.0, %v938
      %v940 = vpop.f32.mrf.mxu0
      %v941 = vadd.f32 0.0, %v940
      %942 = vmatmul.bf16.gmra.mxu0 %v870
      %v943 = vpop.f32.mrf.mxu0
      %v944 = vadd.f32 0.0, %v943
      %v945 = vpop.f32.mrf.mxu0
      %v946 = vadd.f32 0.0, %v945
      %947 = vmatmul.bf16.gmra.mxu0 %v873
      %v948 = vpop.f32.mrf.mxu0
      %v949 = vadd.f32 0.0, %v948
      %v950 = vpop.f32.mrf.mxu0
      %v951 = vadd.f32 0.0, %v950
      %952 = vmatmul.bf16.gmra.mxu0 %v876
      %v953 = vpop.f32.mrf.mxu0
      %v954 = vadd.f32 0.0, %v953
      %v955 = vpop.f32.mrf.mxu0
      %v956 = vadd.f32 0.0, %v955
      %957 = vmatmul.bf16.gmra.mxu0 %v879
      %v958 = vpop.f32.mrf.mxu0
      %v959 = vadd.f32 0.0, %v958
      %v960 = vpop.f32.mrf.mxu0
      %v961 = vadd.f32 0.0, %v960
      %962 = vmatmul.bf16.gmra.mxu0 %v882
      %v963 = vpop.f32.mrf.mxu0
      %v964 = vadd.f32 0.0, %v963
      %v965 = vpop.f32.mrf.mxu0
      %v966 = vadd.f32 0.0, %v965
      %967 = vmatmul.bf16.gmra.mxu0 %v885
      %v968 = vpop.f32.mrf.mxu0
      %v969 = vadd.f32 0.0, %v968
      %v970 = vpop.f32.mrf.mxu0
      %v971 = vadd.f32 0.0, %v970
      %972 = vmatmul.bf16.gmra.mxu0 %v888
      %v973 = vpop.f32.mrf.mxu0
      %v974 = vadd.f32 0.0, %v973
      %v975 = vpop.f32.mrf.mxu0
      %v976 = vadd.f32 0.0, %v975
      %977 = vmatmul.bf16.gmra.mxu0 %v891
      %v978 = vpop.f32.mrf.mxu0
      %v979 = vadd.f32 0.0, %v978
      %v980 = vpop.f32.mrf.mxu0
      %v981 = vadd.f32 0.0, %v980
      %982 = vmatmul.bf16.gmra.mxu0 %v894
      %v983 = vpop.f32.mrf.mxu0
      %v984 = vadd.f32 0.0, %v983
      %v985 = vpop.f32.mrf.mxu0
      %v986 = vadd.f32 0.0, %v985
      %987 = vmatmul.bf16.gmra.mxu0 %v897
      %v988 = vpop.f32.mrf.mxu0
      %v989 = vadd.f32 0.0, %v988
      %v990 = vpop.f32.mrf.mxu0
      %v991 = vadd.f32 0.0, %v990
      %992 = vmatmul.bf16.gmra.mxu0 %v900
      %v993 = vpop.f32.mrf.mxu0
      %v994 = vadd.f32 0.0, %v993
      %v995 = vpop.f32.mrf.mxu0
      %v996 = vadd.f32 0.0, %v995
      %997 = vmatmul.bf16.gmra.mxu0 %v903
      %v998 = vpop.f32.mrf.mxu0
      %v999 = vadd.f32 0.0, %v998
      %v1000 = vpop.f32.mrf.mxu0
      %v1001 = vadd.f32 0.0, %v1000
      %1002 = vmatmul.bf16.gmra.mxu0 %v906
      %v1003 = vpop.f32.mrf.mxu0
      %v1004 = vadd.f32 0.0, %v1003
      %v1005 = vpop.f32.mrf.mxu0
      %v1006 = vadd.f32 0.0, %v1005
      %1007 = vmatmul.bf16.gmra.mxu0 %v909
      %v1008 = vpop.f32.mrf.mxu0
      %v1009 = vadd.f32 0.0, %v1008
      %v1010 = vpop.f32.mrf.mxu0
      %v1011 = vadd.f32 0.0, %v1010
      %1012 = vdwg.mxu0
      %v1013 = vadd.f32 %v724, %v924
      %v1014 = vadd.f32 %v726, %v926
      %v1015 = vadd.f32 %v729, %v929
      %v1016 = vadd.f32 %v731, %v931
      %v1017 = vadd.f32 %v734, %v934
      %v1018 = vadd.f32 %v736, %v936
      %v1019 = vadd.f32 %v739, %v939
      %v1020 = vadd.f32 %v741, %v941
      %v1021 = vadd.f32 %v744, %v944
      %v1022 = vadd.f32 %v746, %v946
      %v1023 = vadd.f32 %v749, %v949
      %v1024 = vadd.f32 %v751, %v951
      %v1025 = vadd.f32 %v754, %v954
      %v1026 = vadd.f32 %v756, %v956
      %v1027 = vadd.f32 %v759, %v959
      %v1028 = vadd.f32 %v761, %v961
      %v1029 = vadd.f32 %v764, %v964
      %v1030 = vadd.f32 %v766, %v966
      %v1031 = vadd.f32 %v769, %v969
      %v1032 = vadd.f32 %v771, %v971
      %v1033 = vadd.f32 %v774, %v974
      %v1034 = vadd.f32 %v776, %v976
      %v1035 = vadd.f32 %v779, %v979
      %v1036 = vadd.f32 %v781, %v981
      %v1037 = vadd.f32 %v784, %v984
      %v1038 = vadd.f32 %v786, %v986
      %v1039 = vadd.f32 %v789, %v989
      %v1040 = vadd.f32 %v791, %v991
      %v1041 = vadd.f32 %v794, %v994
      %v1042 = vadd.f32 %v796, %v996
      %v1043 = vadd.f32 %v799, %v999
      %v1044 = vadd.f32 %v801, %v1001
      %v1045 = vadd.f32 %v804, %v1004
      %v1046 = vadd.f32 %v806, %v1006
      %v1047 = vadd.f32 %v809, %v1009
      %v1048 = vadd.f32 %v811, %v1011
      %v1049 = vld [vmem:[%s224 + $0x8] sm:$0xe]
      %v1050 = vld [vmem:[%s224 + $0xc] sm:$0xf]
      %v1051 = vld [vmem:[%s224 + $0x10] sm:$0xf]
      %v1052 = vld [vmem:[%s224 + $0x14] sm:$0xf]
      %v1053 = vld [vmem:[%s224 + $0x18] sm:$0xf]
      %v1054 = vld [vmem:[%s224 + $0x1c] sm:$0xf]
      %v1055 = vld [vmem:[%s224 + $0x20] sm:$0xf]
      %v1056 = vld [vmem:[%s224 + $0x24] sm:$0xf]
      %v1057 = vld [vmem:[%s224 + $0x28] sm:$0xf]
      %v1058 = vld [vmem:[%s224 + $0x2c] sm:$0xf]
      %v1059 = vld [vmem:[%s224 + $0x30] sm:$0xf]
      %v1060 = vld [vmem:[%s224 + $0x34] sm:$0xf]
      %v1061 = vld [vmem:[%s224 + $0x38] sm:$0xf]
      %v1062 = vld [vmem:[%s224 + $0x3c] sm:$0xf]
      %v1063 = vld [vmem:[%s224 + $0x40] sm:$0xf]
      %v1064 = vld [vmem:[%s224 + $0x44] sm:$0xf]
      %v1065 = vld [vmem:[%s224 + $0x48] sm:$0xf]
      %v1066 = vld [vmem:[%s224 + $0x4c] sm:$0xf]
      %v1067 = vld [vmem:[%s224 + $0x50] sm:$0xf]
      %v1068 = vld [vmem:[%s224 + $0x54] sm:$0xf]
      %v1069 = vld [vmem:[%s224 + $0x58] sm:$0xf]
      %v1070 = vld [vmem:[%s224 + $0x5c] sm:$0xf]
      %v1071 = vld [vmem:[%s224 + $0x60] sm:$0xf]
      %v1072 = vld [vmem:[%s224 + $0x64] sm:$0xf]
      %v1073 = vld [vmem:[%s224 + $0x68] sm:$0xf]
      %v1074 = vld [vmem:[%s224 + $0x6c] sm:$0xf]
      %v1075 = vld [vmem:[%s224 + $0x70] sm:$0xf]
      %v1076 = vld [vmem:[%s224 + $0x74] sm:$0xf]
      %v1077 = vld [vmem:[%s224 + $0x78] sm:$0xf]
      %v1078 = vld [vmem:[%s224 + $0x7c] sm:$0xf]
      %v1079 = vld [vmem:[%s224 + $0x80] sm:$0xf]
      %v1080 = vld [vmem:[%s224 + $0x84] sm:$0xf]
      %v1081 = vld [vmem:[%s224 + $0x88] sm:$0xf]
      %v1082 = vld [vmem:[%s224 + $0x8c] sm:$0xf]
      %v1083 = vld [vmem:[%s224 + $0x90] sm:$0xf]
      %v1084 = vld [vmem:[%s224 + $0x94] sm:$0xf]
      %v1085 = vld [vmem:[%s224 + $0x98] sm:$0x1]
      %s1086 = scalar_lea.vmem %s1, 6
      %v1087 = vld [vmem:[%s1086] sm:$0x3]
      %v1125 = vunpack.c.l.b16 %v1049
      %v1126 = vunpack.c.l.b16 %v1050
      %v1127 = vunpack.c.l.b16 %v1051
      %v1128 = vunpack.c.l.b16 %v1052
      %v1129 = vunpack.c.l.b16 %v1053
      %v1130 = vunpack.c.l.b16 %v1054
      %v1131 = vunpack.c.l.b16 %v1055
      %v1132 = vunpack.c.l.b16 %v1056
      %v1133 = vunpack.c.l.b16 %v1057
      %v1134 = vunpack.c.l.b16 %v1058
      %v1135 = vunpack.c.l.b16 %v1059
      %v1136 = vunpack.c.l.b16 %v1060
      %v1137 = vunpack.c.l.b16 %v1061
      %v1138 = vunpack.c.l.b16 %v1062
      %v1139 = vunpack.c.l.b16 %v1063
      %v1140 = vunpack.c.l.b16 %v1064
      %v1141 = vunpack.c.l.b16 %v1065
      %v1142 = vunpack.c.l.b16 %v1066
      %v1143 = vunpack.c.l.b16 %v1067
      %v1144 = vunpack.c.l.b16 %v1068
      %v1145 = vunpack.c.l.b16 %v1069
      %v1146 = vunpack.c.l.b16 %v1070
      %v1147 = vunpack.c.l.b16 %v1071
      %v1148 = vunpack.c.l.b16 %v1072
      %v1149 = vunpack.c.l.b16 %v1073
      %v1150 = vunpack.c.l.b16 %v1074
      %v1151 = vunpack.c.l.b16 %v1075
      %v1152 = vunpack.c.l.b16 %v1076
      %v1153 = vunpack.c.l.b16 %v1077
      %v1154 = vunpack.c.l.b16 %v1078
      %v1155 = vunpack.c.l.b16 %v1079
      %v1156 = vunpack.c.l.b16 %v1080
      %v1157 = vunpack.c.l.b16 %v1081
      %v1158 = vunpack.c.l.b16 %v1082
      %v1159 = vunpack.c.l.b16 %v1083
      %v1160 = vunpack.c.l.b16 %v1084
      %v1161 = vunpack.c.l.b16 %v1085
      %v1162 = vpack.c.b16 %v1126, %v1125
      %v1163 = vpack.c.b16 %v1128, %v1127
      %v1164 = vpack.c.b16 %v1130, %v1129
      %v1165 = vpack.c.b16 %v1132, %v1131
      %v1166 = vpack.c.b16 %v1134, %v1133
      %v1167 = vpack.c.b16 %v1136, %v1135
      %v1168 = vpack.c.b16 %v1138, %v1137
      %v1169 = vpack.c.b16 %v1140, %v1139
      %v1170 = vpack.c.b16 %v1142, %v1141
      %v1171 = vpack.c.b16 %v1144, %v1143
      %v1172 = vpack.c.b16 %v1146, %v1145
      %v1173 = vpack.c.b16 %v1148, %v1147
      %v1174 = vpack.c.b16 %v1150, %v1149
      %v1175 = vpack.c.b16 %v1152, %v1151
      %v1176 = vpack.c.b16 %v1154, %v1153
      %v1177 = vpack.c.b16 %v1156, %v1155
      %v1178 = vpack.c.b16 %v1158, %v1157
      %v1179 = vpack.c.b16 %v1160, %v1159
      %v1180 = vpack.c.b16 %v1161, %v1161
      %v1181 = vrot.slane %v1162, 1
      %v1182 = vrot.slane %v1163, 1
      %v1183 = vsel %vm819, %v1181, %v1182
      %v1184 = vrot.slane %v1164, 1
      %v1185 = vsel %vm819, %v1182, %v1184
      %v1186 = vrot.slane %v1165, 1
      %v1187 = vsel %vm819, %v1184, %v1186
      %v1188 = vrot.slane %v1166, 1
      %v1189 = vsel %vm819, %v1186, %v1188
      %v1190 = vrot.slane %v1167, 1
      %v1191 = vsel %vm819, %v1188, %v1190
      %v1192 = vrot.slane %v1168, 1
      %v1193 = vsel %vm819, %v1190, %v1192
      %v1194 = vrot.slane %v1169, 1
      %v1195 = vsel %vm819, %v1192, %v1194
      %v1196 = vrot.slane %v1170, 1
      %v1197 = vsel %vm819, %v1194, %v1196
      %v1198 = vrot.slane %v1171, 1
      %v1199 = vsel %vm819, %v1196, %v1198
      %v1200 = vrot.slane %v1172, 1
      %v1201 = vsel %vm819, %v1198, %v1200
      %v1202 = vrot.slane %v1173, 1
      %v1203 = vsel %vm819, %v1200, %v1202
      %v1204 = vrot.slane %v1174, 1
      %v1205 = vsel %vm819, %v1202, %v1204
      %v1206 = vrot.slane %v1175, 1
      %v1207 = vsel %vm819, %v1204, %v1206
      %v1208 = vrot.slane %v1176, 1
      %v1209 = vsel %vm819, %v1206, %v1208
      %v1210 = vrot.slane %v1177, 1
      %v1211 = vsel %vm819, %v1208, %v1210
      %v1212 = vrot.slane %v1178, 1
      %v1213 = vsel %vm819, %v1210, %v1212
      %v1214 = vrot.slane %v1179, 1
      %v1215 = vsel %vm819, %v1212, %v1214
      %v1216 = vrot.slane %v1180, 1
      %v1217 = vsel %vm819, %v1214, %v1216
      %v1219 = vsel %vm517, %v1183, 0
      %v1222 = vsel %vm517, %v1185, 0
      %v1225 = vsel %vm517, %v1187, 0
      %v1228 = vsel %vm517, %v1189, 0
      %v1231 = vsel %vm517, %v1191, 0
      %v1234 = vsel %vm517, %v1193, 0
      %v1237 = vsel %vm517, %v1195, 0
      %v1240 = vsel %vm517, %v1197, 0
      %v1243 = vsel %vm517, %v1199, 0
      %v1246 = vsel %vm517, %v1201, 0
      %v1249 = vsel %vm517, %v1203, 0
      %v1252 = vsel %vm517, %v1205, 0
      %v1255 = vsel %vm517, %v1207, 0
      %v1258 = vsel %vm517, %v1209, 0
      %v1261 = vsel %vm517, %v1211, 0
      %v1264 = vsel %vm517, %v1213, 0
      %v1267 = vsel %vm517, %v1215, 0
      %v1270 = vsel %vm517, %v1217, 0
      %v1273 = vsel %vm572, %v1087, 0
      %1275 = vmatpush.bf16.msra.mxu0 0
      %1276 = vmatpush.bf16.msra.mxu0 0
      %1277 = vmatpush.bf16.msra.mxu0 0
      %1278 = vmatpush.bf16.msra.mxu0 0
      %1279 = vmatpush.bf16.msra.mxu0 0
      %1280 = vmatpush.bf16.msra.mxu0 0
      %1281 = vmatpush.bf16.msra.mxu0 0
      %1282 = vmatpush.bf16.msra.mxu0 %v1273
      %1283 = vmatmul.bf16.gmra.mxu0 %v1219
      %v1284 = vpop.f32.mrf.mxu0
      %v1285 = vadd.f32 0.0, %v1284
      %v1286 = vpop.f32.mrf.mxu0
      %v1287 = vadd.f32 0.0, %v1286
      %1288 = vmatmul.bf16.gmra.mxu0 %v1222
      %v1289 = vpop.f32.mrf.mxu0
      %v1290 = vadd.f32 0.0, %v1289
      %v1291 = vpop.f32.mrf.mxu0
      %v1292 = vadd.f32 0.0, %v1291
      %1293 = vmatmul.bf16.gmra.mxu0 %v1225
      %v1294 = vpop.f32.mrf.mxu0
      %v1295 = vadd.f32 0.0, %v1294
      %v1296 = vpop.f32.mrf.mxu0
      %v1297 = vadd.f32 0.0, %v1296
      %1298 = vmatmul.bf16.gmra.mxu0 %v1228
      %v1299 = vpop.f32.mrf.mxu0
      %v1300 = vadd.f32 0.0, %v1299
      %v1301 = vpop.f32.mrf.mxu0
      %v1302 = vadd.f32 0.0, %v1301
      %1303 = vmatmul.bf16.gmra.mxu0 %v1231
      %v1304 = vpop.f32.mrf.mxu0
      %v1305 = vadd.f32 0.0, %v1304
      %v1306 = vpop.f32.mrf.mxu0
      %v1307 = vadd.f32 0.0, %v1306
      %1308 = vmatmul.bf16.gmra.mxu0 %v1234
      %v1309 = vpop.f32.mrf.mxu0
      %v1310 = vadd.f32 0.0, %v1309
      %v1311 = vpop.f32.mrf.mxu0
      %v1312 = vadd.f32 0.0, %v1311
      %1313 = vmatmul.bf16.gmra.mxu0 %v1237
      %v1314 = vpop.f32.mrf.mxu0
      %v1315 = vadd.f32 0.0, %v1314
      %v1316 = vpop.f32.mrf.mxu0
      %v1317 = vadd.f32 0.0, %v1316
      %1318 = vmatmul.bf16.gmra.mxu0 %v1240
      %v1319 = vpop.f32.mrf.mxu0
      %v1320 = vadd.f32 0.0, %v1319
      %v1321 = vpop.f32.mrf.mxu0
      %v1322 = vadd.f32 0.0, %v1321
      %1323 = vmatmul.bf16.gmra.mxu0 %v1243
      %v1324 = vpop.f32.mrf.mxu0
      %v1325 = vadd.f32 0.0, %v1324
      %v1326 = vpop.f32.mrf.mxu0
      %v1327 = vadd.f32 0.0, %v1326
      %1328 = vmatmul.bf16.gmra.mxu0 %v1246
      %v1329 = vpop.f32.mrf.mxu0
      %v1330 = vadd.f32 0.0, %v1329
      %v1331 = vpop.f32.mrf.mxu0
      %v1332 = vadd.f32 0.0, %v1331
      %1333 = vmatmul.bf16.gmra.mxu0 %v1249
      %v1334 = vpop.f32.mrf.mxu0
      %v1335 = vadd.f32 0.0, %v1334
      %v1336 = vpop.f32.mrf.mxu0
      %v1337 = vadd.f32 0.0, %v1336
      %1338 = vmatmul.bf16.gmra.mxu0 %v1252
      %v1339 = vpop.f32.mrf.mxu0
      %v1340 = vadd.f32 0.0, %v1339
      %v1341 = vpop.f32.mrf.mxu0
      %v1342 = vadd.f32 0.0, %v1341
      %1343 = vmatmul.bf16.gmra.mxu0 %v1255
      %v1344 = vpop.f32.mrf.mxu0
      %v1345 = vadd.f32 0.0, %v1344
      %v1346 = vpop.f32.mrf.mxu0
      %v1347 = vadd.f32 0.0, %v1346
      %1348 = vmatmul.bf16.gmra.mxu0 %v1258
      %v1349 = vpop.f32.mrf.mxu0
      %v1350 = vadd.f32 0.0, %v1349
      %v1351 = vpop.f32.mrf.mxu0
      %v1352 = vadd.f32 0.0, %v1351
      %1353 = vmatmul.bf16.gmra.mxu0 %v1261
      %v1354 = vpop.f32.mrf.mxu0
      %v1355 = vadd.f32 0.0, %v1354
      %v1356 = vpop.f32.mrf.mxu0
      %v1357 = vadd.f32 0.0, %v1356
      %1358 = vmatmul.bf16.gmra.mxu0 %v1264
      %v1359 = vpop.f32.mrf.mxu0
      %v1360 = vadd.f32 0.0, %v1359
      %v1361 = vpop.f32.mrf.mxu0
      %v1362 = vadd.f32 0.0, %v1361
      %1363 = vmatmul.bf16.gmra.mxu0 %v1267
      %v1364 = vpop.f32.mrf.mxu0
      %v1365 = vadd.f32 0.0, %v1364
      %v1366 = vpop.f32.mrf.mxu0
      %v1367 = vadd.f32 0.0, %v1366
      %1368 = vmatmul.bf16.gmra.mxu0 %v1270
      %v1369 = vpop.f32.mrf.mxu0
      %v1370 = vadd.f32 0.0, %v1369
      %v1371 = vpop.f32.mrf.mxu0
      %v1372 = vadd.f32 0.0, %v1371
      %1373 = vdwg.mxu0
      %v1374 = vadd.f32 %v1013, %v1285
      %v1375 = vadd.f32 %v1014, %v1287
      %v1376 = vadd.f32 %v1015, %v1290
      %v1377 = vadd.f32 %v1016, %v1292
      %v1378 = vadd.f32 %v1017, %v1295
      %v1379 = vadd.f32 %v1018, %v1297
      %v1380 = vadd.f32 %v1019, %v1300
      %v1381 = vadd.f32 %v1020, %v1302
      %v1382 = vadd.f32 %v1021, %v1305
      %v1383 = vadd.f32 %v1022, %v1307
      %v1384 = vadd.f32 %v1023, %v1310
      %v1385 = vadd.f32 %v1024, %v1312
      %v1386 = vadd.f32 %v1025, %v1315
      %v1387 = vadd.f32 %v1026, %v1317
      %v1388 = vadd.f32 %v1027, %v1320
      %v1389 = vadd.f32 %v1028, %v1322
      %v1390 = vadd.f32 %v1029, %v1325
      %v1391 = vadd.f32 %v1030, %v1327
      %v1392 = vadd.f32 %v1031, %v1330
      %v1393 = vadd.f32 %v1032, %v1332
      %v1394 = vadd.f32 %v1033, %v1335
      %v1395 = vadd.f32 %v1034, %v1337
      %v1396 = vadd.f32 %v1035, %v1340
      %v1397 = vadd.f32 %v1036, %v1342
      %v1398 = vadd.f32 %v1037, %v1345
      %v1399 = vadd.f32 %v1038, %v1347
      %v1400 = vadd.f32 %v1039, %v1350
      %v1401 = vadd.f32 %v1040, %v1352
      %v1402 = vadd.f32 %v1041, %v1355
      %v1403 = vadd.f32 %v1042, %v1357
      %v1404 = vadd.f32 %v1043, %v1360
      %v1405 = vadd.f32 %v1044, %v1362
      %v1406 = vadd.f32 %v1045, %v1365
      %v1407 = vadd.f32 %v1046, %v1367
      %v1408 = vadd.f32 %v1047, %v1370
      %v1409 = vadd.f32 %v1048, %v1372
      %v1410 = vld [vmem:[%s224 + $0x98] sm:$0x3]
      %s1411 = scalar_lea.vmem %s1, 8
      %v1412 = vld [vmem:[%s1411] sm:$0x3]
      %v1414 = vunpack.c.l.b16 %v1410
      %v1415 = vpack.c.b16 %v1414, %v1414
      %vm1416 = vsmask.f32 6400
      %v1418 = vshrl.u32 %v1162, 16
      %v1420 = vrot.slane %v1418, 1
      %v1421 = vshll.u32 %v1162, 16
      %v1423 = vrot.slane %v1421, 2
      %v1424 = vor.u32 %v1420, %v1423
      %v1426 = vshrl.u32 %v1163, 16
      %v1428 = vrot.slane %v1426, 1
      %v1429 = vshll.u32 %v1163, 16
      %v1431 = vrot.slane %v1429, 2
      %v1432 = vor.u32 %v1428, %v1431
      %v1433 = vsel %vm1416, %v1424, %v1432
      %v1435 = vshrl.u32 %v1164, 16
      %v1437 = vrot.slane %v1435, 1
      %v1438 = vshll.u32 %v1164, 16
      %v1440 = vrot.slane %v1438, 2
      %v1441 = vor.u32 %v1437, %v1440
      %v1442 = vsel %vm1416, %v1432, %v1441
      %v1444 = vshrl.u32 %v1165, 16
      %v1446 = vrot.slane %v1444, 1
      %v1447 = vshll.u32 %v1165, 16
      %v1449 = vrot.slane %v1447, 2
      %v1450 = vor.u32 %v1446, %v1449
      %v1451 = vsel %vm1416, %v1441, %v1450
      %v1453 = vshrl.u32 %v1166, 16
      %v1455 = vrot.slane %v1453, 1
      %v1456 = vshll.u32 %v1166, 16
      %v1458 = vrot.slane %v1456, 2
      %v1459 = vor.u32 %v1455, %v1458
      %v1460 = vsel %vm1416, %v1450, %v1459
      %v1462 = vshrl.u32 %v1167, 16
      %v1464 = vrot.slane %v1462, 1
      %v1465 = vshll.u32 %v1167, 16
      %v1467 = vrot.slane %v1465, 2
      %v1468 = vor.u32 %v1464, %v1467
      %v1469 = vsel %vm1416, %v1459, %v1468
      %v1471 = vshrl.u32 %v1168, 16
      %v1473 = vrot.slane %v1471, 1
      %v1474 = vshll.u32 %v1168, 16
      %v1476 = vrot.slane %v1474, 2
      %v1477 = vor.u32 %v1473, %v1476
      %v1478 = vsel %vm1416, %v1468, %v1477
      %v1480 = vshrl.u32 %v1169, 16
      %v1482 = vrot.slane %v1480, 1
      %v1483 = vshll.u32 %v1169, 16
      %v1485 = vrot.slane %v1483, 2
      %v1486 = vor.u32 %v1482, %v1485
      %v1487 = vsel %vm1416, %v1477, %v1486
      %v1489 = vshrl.u32 %v1170, 16
      %v1491 = vrot.slane %v1489, 1
      %v1492 = vshll.u32 %v1170, 16
      %v1494 = vrot.slane %v1492, 2
      %v1495 = vor.u32 %v1491, %v1494
      %v1496 = vsel %vm1416, %v1486, %v1495
      %v1498 = vshrl.u32 %v1171, 16
      %v1500 = vrot.slane %v1498, 1
      %v1501 = vshll.u32 %v1171, 16
      %v1503 = vrot.slane %v1501, 2
      %v1504 = vor.u32 %v1500, %v1503
      %v1505 = vsel %vm1416, %v1495, %v1504
      %v1507 = vshrl.u32 %v1172, 16
      %v1509 = vrot.slane %v1507, 1
      %v1510 = vshll.u32 %v1172, 16
      %v1512 = vrot.slane %v1510, 2
      %v1513 = vor.u32 %v1509, %v1512
      %v1514 = vsel %vm1416, %v1504, %v1513
      %v1516 = vshrl.u32 %v1173, 16
      %v1518 = vrot.slane %v1516, 1
      %v1519 = vshll.u32 %v1173, 16
      %v1521 = vrot.slane %v1519, 2
      %v1522 = vor.u32 %v1518, %v1521
      %v1523 = vsel %vm1416, %v1513, %v1522
      %v1525 = vshrl.u32 %v1174, 16
      %v1527 = vrot.slane %v1525, 1
      %v1528 = vshll.u32 %v1174, 16
      %v1530 = vrot.slane %v1528, 2
      %v1531 = vor.u32 %v1527, %v1530
      %v1532 = vsel %vm1416, %v1522, %v1531
      %v1534 = vshrl.u32 %v1175, 16
      %v1536 = vrot.slane %v1534, 1
      %v1537 = vshll.u32 %v1175, 16
      %v1539 = vrot.slane %v1537, 2
      %v1540 = vor.u32 %v1536, %v1539
      %v1541 = vsel %vm1416, %v1531, %v1540
      %v1543 = vshrl.u32 %v1176, 16
      %v1545 = vrot.slane %v1543, 1
      %v1546 = vshll.u32 %v1176, 16
      %v1548 = vrot.slane %v1546, 2
      %v1549 = vor.u32 %v1545, %v1548
      %v1550 = vsel %vm1416, %v1540, %v1549
      %v1552 = vshrl.u32 %v1177, 16
      %v1554 = vrot.slane %v1552, 1
      %v1555 = vshll.u32 %v1177, 16
      %v1557 = vrot.slane %v1555, 2
      %v1558 = vor.u32 %v1554, %v1557
      %v1559 = vsel %vm1416, %v1549, %v1558
      %v1561 = vshrl.u32 %v1178, 16
      %v1563 = vrot.slane %v1561, 1
      %v1564 = vshll.u32 %v1178, 16
      %v1566 = vrot.slane %v1564, 2
      %v1567 = vor.u32 %v1563, %v1566
      %v1568 = vsel %vm1416, %v1558, %v1567
      %v1570 = vshrl.u32 %v1179, 16
      %v1572 = vrot.slane %v1570, 1
      %v1573 = vshll.u32 %v1179, 16
      %v1575 = vrot.slane %v1573, 2
      %v1576 = vor.u32 %v1572, %v1575
      %v1577 = vsel %vm1416, %v1567, %v1576
      %v1579 = vshrl.u32 %v1415, 16
      %v1581 = vrot.slane %v1579, 1
      %v1582 = vshll.u32 %v1415, 16
      %v1584 = vrot.slane %v1582, 2
      %v1585 = vor.u32 %v1581, %v1584
      %v1586 = vsel %vm1416, %v1576, %v1585
      %v1588 = vsel %vm517, %v1433, 0
      %v1591 = vsel %vm517, %v1442, 0
      %v1594 = vsel %vm517, %v1451, 0
      %v1597 = vsel %vm517, %v1460, 0
      %v1600 = vsel %vm517, %v1469, 0
      %v1603 = vsel %vm517, %v1478, 0
      %v1606 = vsel %vm517, %v1487, 0
      %v1609 = vsel %vm517, %v1496, 0
      %v1612 = vsel %vm517, %v1505, 0
      %v1615 = vsel %vm517, %v1514, 0
      %v1618 = vsel %vm517, %v1523, 0
      %v1621 = vsel %vm517, %v1532, 0
      %v1624 = vsel %vm517, %v1541, 0
      %v1627 = vsel %vm517, %v1550, 0
      %v1630 = vsel %vm517, %v1559, 0
      %v1633 = vsel %vm517, %v1568, 0
      %v1636 = vsel %vm517, %v1577, 0
      %v1639 = vsel %vm517, %v1586, 0
      %v1642 = vsel %vm572, %v1412, 0
      %1644 = vmatpush.bf16.msra.mxu0 0
      %1645 = vmatpush.bf16.msra.mxu0 0
      %1646 = vmatpush.bf16.msra.mxu0 0
      %1647 = vmatpush.bf16.msra.mxu0 0
      %1648 = vmatpush.bf16.msra.mxu0 0
      %1649 = vmatpush.bf16.msra.mxu0 0
      %1650 = vmatpush.bf16.msra.mxu0 0
      %1651 = vmatpush.bf16.msra.mxu0 %v1642
      %1652 = vmatmul.bf16.gmra.mxu0 %v1588
      %v1653 = vpop.f32.mrf.mxu0
      %v1654 = vadd.f32 0.0, %v1653
      %v1655 = vpop.f32.mrf.mxu0
      %v1656 = vadd.f32 0.0, %v1655
      %1657 = vmatmul.bf16.gmra.mxu0 %v1591
      %v1658 = vpop.f32.mrf.mxu0
      %v1659 = vadd.f32 0.0, %v1658
      %v1660 = vpop.f32.mrf.mxu0
      %v1661 = vadd.f32 0.0, %v1660
      %1662 = vmatmul.bf16.gmra.mxu0 %v1594
      %v1663 = vpop.f32.mrf.mxu0
      %v1664 = vadd.f32 0.0, %v1663
      %v1665 = vpop.f32.mrf.mxu0
      %v1666 = vadd.f32 0.0, %v1665
      %1667 = vmatmul.bf16.gmra.mxu0 %v1597
      %v1668 = vpop.f32.mrf.mxu0
      %v1669 = vadd.f32 0.0, %v1668
      %v1670 = vpop.f32.mrf.mxu0
      %v1671 = vadd.f32 0.0, %v1670
      %1672 = vmatmul.bf16.gmra.mxu0 %v1600
      %v1673 = vpop.f32.mrf.mxu0
      %v1674 = vadd.f32 0.0, %v1673
      %v1675 = vpop.f32.mrf.mxu0
      %v1676 = vadd.f32 0.0, %v1675
      %1677 = vmatmul.bf16.gmra.mxu0 %v1603
      %v1678 = vpop.f32.mrf.mxu0
      %v1679 = vadd.f32 0.0, %v1678
      %v1680 = vpop.f32.mrf.mxu0
      %v1681 = vadd.f32 0.0, %v1680
      %1682 = vmatmul.bf16.gmra.mxu0 %v1606
      %v1683 = vpop.f32.mrf.mxu0
      %v1684 = vadd.f32 0.0, %v1683
      %v1685 = vpop.f32.mrf.mxu0
      %v1686 = vadd.f32 0.0, %v1685
      %1687 = vmatmul.bf16.gmra.mxu0 %v1609
      %v1688 = vpop.f32.mrf.mxu0
      %v1689 = vadd.f32 0.0, %v1688
      %v1690 = vpop.f32.mrf.mxu0
      %v1691 = vadd.f32 0.0, %v1690
      %1692 = vmatmul.bf16.gmra.mxu0 %v1612
      %v1693 = vpop.f32.mrf.mxu0
      %v1694 = vadd.f32 0.0, %v1693
      %v1695 = vpop.f32.mrf.mxu0
      %v1696 = vadd.f32 0.0, %v1695
      %1697 = vmatmul.bf16.gmra.mxu0 %v1615
      %v1698 = vpop.f32.mrf.mxu0
      %v1699 = vadd.f32 0.0, %v1698
      %v1700 = vpop.f32.mrf.mxu0
      %v1701 = vadd.f32 0.0, %v1700
      %1702 = vmatmul.bf16.gmra.mxu0 %v1618
      %v1703 = vpop.f32.mrf.mxu0
      %v1704 = vadd.f32 0.0, %v1703
      %v1705 = vpop.f32.mrf.mxu0
      %v1706 = vadd.f32 0.0, %v1705
      %1707 = vmatmul.bf16.gmra.mxu0 %v1621
      %v1708 = vpop.f32.mrf.mxu0
      %v1709 = vadd.f32 0.0, %v1708
      %v1710 = vpop.f32.mrf.mxu0
      %v1711 = vadd.f32 0.0, %v1710
      %1712 = vmatmul.bf16.gmra.mxu0 %v1624
      %v1713 = vpop.f32.mrf.mxu0
      %v1714 = vadd.f32 0.0, %v1713
      %v1715 = vpop.f32.mrf.mxu0
      %v1716 = vadd.f32 0.0, %v1715
      %1717 = vmatmul.bf16.gmra.mxu0 %v1627
      %v1718 = vpop.f32.mrf.mxu0
      %v1719 = vadd.f32 0.0, %v1718
      %v1720 = vpop.f32.mrf.mxu0
      %v1721 = vadd.f32 0.0, %v1720
      %1722 = vmatmul.bf16.gmra.mxu0 %v1630
      %v1723 = vpop.f32.mrf.mxu0
      %v1724 = vadd.f32 0.0, %v1723
      %v1725 = vpop.f32.mrf.mxu0
      %v1726 = vadd.f32 0.0, %v1725
      %1727 = vmatmul.bf16.gmra.mxu0 %v1633
      %v1728 = vpop.f32.mrf.mxu0
      %v1729 = vadd.f32 0.0, %v1728
      %v1730 = vpop.f32.mrf.mxu0
      %v1731 = vadd.f32 0.0, %v1730
      %1732 = vmatmul.bf16.gmra.mxu0 %v1636
      %v1733 = vpop.f32.mrf.mxu0
      %v1734 = vadd.f32 0.0, %v1733
      %v1735 = vpop.f32.mrf.mxu0
      %v1736 = vadd.f32 0.0, %v1735
      %1737 = vmatmul.bf16.gmra.mxu0 %v1639
      %v1738 = vpop.f32.mrf.mxu0
      %v1739 = vadd.f32 0.0, %v1738
      %v1740 = vpop.f32.mrf.mxu0
      %v1741 = vadd.f32 0.0, %v1740
      %1742 = vdwg.mxu0
      %v1743 = vadd.f32 %v1374, %v1654
      %v1744 = vadd.f32 %v1375, %v1656
      %v1745 = vadd.f32 %v1376, %v1659
      %v1746 = vadd.f32 %v1377, %v1661
      %v1747 = vadd.f32 %v1378, %v1664
      %v1748 = vadd.f32 %v1379, %v1666
      %v1749 = vadd.f32 %v1380, %v1669
      %v1750 = vadd.f32 %v1381, %v1671
      %v1751 = vadd.f32 %v1382, %v1674
      %v1752 = vadd.f32 %v1383, %v1676
      %v1753 = vadd.f32 %v1384, %v1679
      %v1754 = vadd.f32 %v1385, %v1681
      %v1755 = vadd.f32 %v1386, %v1684
      %v1756 = vadd.f32 %v1387, %v1686
      %v1757 = vadd.f32 %v1388, %v1689
      %v1758 = vadd.f32 %v1389, %v1691
      %v1759 = vadd.f32 %v1390, %v1694
      %v1760 = vadd.f32 %v1391, %v1696
      %v1761 = vadd.f32 %v1392, %v1699
      %v1762 = vadd.f32 %v1393, %v1701
      %v1763 = vadd.f32 %v1394, %v1704
      %v1764 = vadd.f32 %v1395, %v1706
      %v1765 = vadd.f32 %v1396, %v1709
      %v1766 = vadd.f32 %v1397, %v1711
      %v1767 = vadd.f32 %v1398, %v1714
      %v1768 = vadd.f32 %v1399, %v1716
      %v1769 = vadd.f32 %v1400, %v1719
      %v1770 = vadd.f32 %v1401, %v1721
      %v1771 = vadd.f32 %v1402, %v1724
      %v1772 = vadd.f32 %v1403, %v1726
      %v1773 = vadd.f32 %v1404, %v1729
      %v1774 = vadd.f32 %v1405, %v1731
      %v1775 = vadd.f32 %v1406, %v1734
      %v1776 = vadd.f32 %v1407, %v1736
      %v1777 = vadd.f32 %v1408, %v1739
      %v1778 = vadd.f32 %v1409, %v1741
      %v1779 = vld [vmem:[%s224 + $0x8] sm:$0xc]
      %s1780 = scalar_lea.vmem %s1, 10
      %v1781 = vld [vmem:[%s1780] sm:$0x3]
      %v1783 = vunpack.c.l.b16 %v1779
      %v1784 = vpack.c.b16 %v1126, %v1783
      %vm1785 = vcmask 1045504
      %v1786 = vrot.slane %v1784, 2
      %v1787 = vrot.slane %v1163, 2
      %v1788 = vsel %vm1785, %v1786, %v1787
      %v1789 = vrot.slane %v1164, 2
      %v1790 = vsel %vm1785, %v1787, %v1789
      %v1791 = vrot.slane %v1165, 2
      %v1792 = vsel %vm1785, %v1789, %v1791
      %v1793 = vrot.slane %v1166, 2
      %v1794 = vsel %vm1785, %v1791, %v1793
      %v1795 = vrot.slane %v1167, 2
      %v1796 = vsel %vm1785, %v1793, %v1795
      %v1797 = vrot.slane %v1168, 2
      %v1798 = vsel %vm1785, %v1795, %v1797
      %v1799 = vrot.slane %v1169, 2
      %v1800 = vsel %vm1785, %v1797, %v1799
      %v1801 = vrot.slane %v1170, 2
      %v1802 = vsel %vm1785, %v1799, %v1801
      %v1803 = vrot.slane %v1171, 2
      %v1804 = vsel %vm1785, %v1801, %v1803
      %v1805 = vrot.slane %v1172, 2
      %v1806 = vsel %vm1785, %v1803, %v1805
      %v1807 = vrot.slane %v1173, 2
      %v1808 = vsel %vm1785, %v1805, %v1807
      %v1809 = vrot.slane %v1174, 2
      %v1810 = vsel %vm1785, %v1807, %v1809
      %v1811 = vrot.slane %v1175, 2
      %v1812 = vsel %vm1785, %v1809, %v1811
      %v1813 = vrot.slane %v1176, 2
      %v1814 = vsel %vm1785, %v1811, %v1813
      %v1815 = vrot.slane %v1177, 2
      %v1816 = vsel %vm1785, %v1813, %v1815
      %v1817 = vrot.slane %v1178, 2
      %v1818 = vsel %vm1785, %v1815, %v1817
      %v1819 = vrot.slane %v1179, 2
      %v1820 = vsel %vm1785, %v1817, %v1819
      %v1821 = vrot.slane %v1415, 2
      %v1822 = vsel %vm1785, %v1819, %v1821
      %v1824 = vsel %vm517, %v1788, 0
      %v1827 = vsel %vm517, %v1790, 0
      %v1830 = vsel %vm517, %v1792, 0
      %v1833 = vsel %vm517, %v1794, 0
      %v1836 = vsel %vm517, %v1796, 0
      %v1839 = vsel %vm517, %v1798, 0
      %v1842 = vsel %vm517, %v1800, 0
      %v1845 = vsel %vm517, %v1802, 0
      %v1848 = vsel %vm517, %v1804, 0
      %v1851 = vsel %vm517, %v1806, 0
      %v1854 = vsel %vm517, %v1808, 0
      %v1857 = vsel %vm517, %v1810, 0
      %v1860 = vsel %vm517, %v1812, 0
      %v1863 = vsel %vm517, %v1814, 0
      %v1866 = vsel %vm517, %v1816, 0
      %v1869 = vsel %vm517, %v1818, 0
      %v1872 = vsel %vm517, %v1820, 0
      %v1875 = vsel %vm517, %v1822, 0
      %v1878 = vsel %vm572, %v1781, 0
      %1880 = vmatpush.bf16.msra.mxu0 0
      %1881 = vmatpush.bf16.msra.mxu0 0
      %1882 = vmatpush.bf16.msra.mxu0 0
      %1883 = vmatpush.bf16.msra.mxu0 0
      %1884 = vmatpush.bf16.msra.mxu0 0
      %1885 = vmatpush.bf16.msra.mxu0 0
      %1886 = vmatpush.bf16.msra.mxu0 0
      %1887 = vmatpush.bf16.msra.mxu0 %v1878
      %1888 = vmatmul.bf16.gmra.mxu0 %v1824
      %v1889 = vpop.f32.mrf.mxu0
      %v1890 = vadd.f32 0.0, %v1889
      %v1891 = vpop.f32.mrf.mxu0
      %v1892 = vadd.f32 0.0, %v1891
      %1893 = vmatmul.bf16.gmra.mxu0 %v1827
      %v1894 = vpop.f32.mrf.mxu0
      %v1895 = vadd.f32 0.0, %v1894
      %v1896 = vpop.f32.mrf.mxu0
      %v1897 = vadd.f32 0.0, %v1896
      %1898 = vmatmul.bf16.gmra.mxu0 %v1830
      %v1899 = vpop.f32.mrf.mxu0
      %v1900 = vadd.f32 0.0, %v1899
      %v1901 = vpop.f32.mrf.mxu0
      %v1902 = vadd.f32 0.0, %v1901
      %1903 = vmatmul.bf16.gmra.mxu0 %v1833
      %v1904 = vpop.f32.mrf.mxu0
      %v1905 = vadd.f32 0.0, %v1904
      %v1906 = vpop.f32.mrf.mxu0
      %v1907 = vadd.f32 0.0, %v1906
      %1908 = vmatmul.bf16.gmra.mxu0 %v1836
      %v1909 = vpop.f32.mrf.mxu0
      %v1910 = vadd.f32 0.0, %v1909
      %v1911 = vpop.f32.mrf.mxu0
      %v1912 = vadd.f32 0.0, %v1911
      %1913 = vmatmul.bf16.gmra.mxu0 %v1839
      %v1914 = vpop.f32.mrf.mxu0
      %v1915 = vadd.f32 0.0, %v1914
      %v1916 = vpop.f32.mrf.mxu0
      %v1917 = vadd.f32 0.0, %v1916
      %1918 = vmatmul.bf16.gmra.mxu0 %v1842
      %v1919 = vpop.f32.mrf.mxu0
      %v1920 = vadd.f32 0.0, %v1919
      %v1921 = vpop.f32.mrf.mxu0
      %v1922 = vadd.f32 0.0, %v1921
      %1923 = vmatmul.bf16.gmra.mxu0 %v1845
      %v1924 = vpop.f32.mrf.mxu0
      %v1925 = vadd.f32 0.0, %v1924
      %v1926 = vpop.f32.mrf.mxu0
      %v1927 = vadd.f32 0.0, %v1926
      %1928 = vmatmul.bf16.gmra.mxu0 %v1848
      %v1929 = vpop.f32.mrf.mxu0
      %v1930 = vadd.f32 0.0, %v1929
      %v1931 = vpop.f32.mrf.mxu0
      %v1932 = vadd.f32 0.0, %v1931
      %1933 = vmatmul.bf16.gmra.mxu0 %v1851
      %v1934 = vpop.f32.mrf.mxu0
      %v1935 = vadd.f32 0.0, %v1934
      %v1936 = vpop.f32.mrf.mxu0
      %v1937 = vadd.f32 0.0, %v1936
      %1938 = vmatmul.bf16.gmra.mxu0 %v1854
      %v1939 = vpop.f32.mrf.mxu0
      %v1940 = vadd.f32 0.0, %v1939
      %v1941 = vpop.f32.mrf.mxu0
      %v1942 = vadd.f32 0.0, %v1941
      %1943 = vmatmul.bf16.gmra.mxu0 %v1857
      %v1944 = vpop.f32.mrf.mxu0
      %v1945 = vadd.f32 0.0, %v1944
      %v1946 = vpop.f32.mrf.mxu0
      %v1947 = vadd.f32 0.0, %v1946
      %1948 = vmatmul.bf16.gmra.mxu0 %v1860
      %v1949 = vpop.f32.mrf.mxu0
      %v1950 = vadd.f32 0.0, %v1949
      %v1951 = vpop.f32.mrf.mxu0
      %v1952 = vadd.f32 0.0, %v1951
      %1953 = vmatmul.bf16.gmra.mxu0 %v1863
      %v1954 = vpop.f32.mrf.mxu0
      %v1955 = vadd.f32 0.0, %v1954
      %v1956 = vpop.f32.mrf.mxu0
      %v1957 = vadd.f32 0.0, %v1956
      %1958 = vmatmul.bf16.gmra.mxu0 %v1866
      %v1959 = vpop.f32.mrf.mxu0
      %v1960 = vadd.f32 0.0, %v1959
      %v1961 = vpop.f32.mrf.mxu0
      %v1962 = vadd.f32 0.0, %v1961
      %1963 = vmatmul.bf16.gmra.mxu0 %v1869
      %v1964 = vpop.f32.mrf.mxu0
      %v1965 = vadd.f32 0.0, %v1964
      %v1966 = vpop.f32.mrf.mxu0
      %v1967 = vadd.f32 0.0, %v1966
      %1968 = vmatmul.bf16.gmra.mxu0 %v1872
      %v1969 = vpop.f32.mrf.mxu0
      %v1970 = vadd.f32 0.0, %v1969
      %v1971 = vpop.f32.mrf.mxu0
      %v1972 = vadd.f32 0.0, %v1971
      %1973 = vmatmul.bf16.gmra.mxu0 %v1875
      %v1974 = vpop.f32.mrf.mxu0
      %v1975 = vadd.f32 0.0, %v1974
      %v1976 = vpop.f32.mrf.mxu0
      %v1977 = vadd.f32 0.0, %v1976
      %1978 = vdwg.mxu0
      %v1979 = vadd.f32 %v1743, %v1890
      %v1980 = vadd.f32 %v1744, %v1892
      %v1981 = vadd.f32 %v1745, %v1895
      %v1982 = vadd.f32 %v1746, %v1897
      %v1983 = vadd.f32 %v1747, %v1900
      %v1984 = vadd.f32 %v1748, %v1902
      %v1985 = vadd.f32 %v1749, %v1905
      %v1986 = vadd.f32 %v1750, %v1907
      %v1987 = vadd.f32 %v1751, %v1910
      %v1988 = vadd.f32 %v1752, %v1912
      %v1989 = vadd.f32 %v1753, %v1915
      %v1990 = vadd.f32 %v1754, %v1917
      %v1991 = vadd.f32 %v1755, %v1920
      %v1992 = vadd.f32 %v1756, %v1922
      %v1993 = vadd.f32 %v1757, %v1925
      %v1994 = vadd.f32 %v1758, %v1927
      %v1995 = vadd.f32 %v1759, %v1930
      %v1996 = vadd.f32 %v1760, %v1932
      %v1997 = vadd.f32 %v1761, %v1935
      %v1998 = vadd.f32 %v1762, %v1937
      %v1999 = vadd.f32 %v1763, %v1940
      %v2000 = vadd.f32 %v1764, %v1942
      %v2001 = vadd.f32 %v1765, %v1945
      %v2002 = vadd.f32 %v1766, %v1947
      %v2003 = vadd.f32 %v1767, %v1950
      %v2004 = vadd.f32 %v1768, %v1952
      %v2005 = vadd.f32 %v1769, %v1955
      %v2006 = vadd.f32 %v1770, %v1957
      %v2007 = vadd.f32 %v1771, %v1960
      %v2008 = vadd.f32 %v1772, %v1962
      %v2009 = vadd.f32 %v1773, %v1965
      %v2010 = vadd.f32 %v1774, %v1967
      %v2011 = vadd.f32 %v1775, %v1970
      %v2012 = vadd.f32 %v1776, %v1972
      %v2013 = vadd.f32 %v1777, %v1975
      %v2014 = vadd.f32 %v1778, %v1977
      %v2015 = vld [vmem:[%s224 + $0x10] sm:$0xc]
      %v2016 = vld [vmem:[%s224 + $0x14] sm:$0xf]
      %v2017 = vld [vmem:[%s224 + $0x18] sm:$0xf]
      %v2018 = vld [vmem:[%s224 + $0x1c] sm:$0xf]
      %v2019 = vld [vmem:[%s224 + $0x20] sm:$0xf]
      %v2020 = vld [vmem:[%s224 + $0x24] sm:$0xf]
      %v2021 = vld [vmem:[%s224 + $0x28] sm:$0xf]
      %v2022 = vld [vmem:[%s224 + $0x2c] sm:$0xf]
      %v2023 = vld [vmem:[%s224 + $0x30] sm:$0xf]
      %v2024 = vld [vmem:[%s224 + $0x34] sm:$0xf]
      %v2025 = vld [vmem:[%s224 + $0x38] sm:$0xf]
      %v2026 = vld [vmem:[%s224 + $0x3c] sm:$0xf]
      %v2027 = vld [vmem:[%s224 + $0x40] sm:$0xf]
      %v2028 = vld [vmem:[%s224 + $0x44] sm:$0xf]
      %v2029 = vld [vmem:[%s224 + $0x48] sm:$0xf]
      %v2030 = vld [vmem:[%s224 + $0x4c] sm:$0xf]
      %v2031 = vld [vmem:[%s224 + $0x50] sm:$0xf]
      %v2032 = vld [vmem:[%s224 + $0x54] sm:$0xf]
      %v2033 = vld [vmem:[%s224 + $0x58] sm:$0xf]
      %v2034 = vld [vmem:[%s224 + $0x5c] sm:$0xf]
      %v2035 = vld [vmem:[%s224 + $0x60] sm:$0xf]
      %v2036 = vld [vmem:[%s224 + $0x64] sm:$0xf]
      %v2037 = vld [vmem:[%s224 + $0x68] sm:$0xf]
      %v2038 = vld [vmem:[%s224 + $0x6c] sm:$0xf]
      %v2039 = vld [vmem:[%s224 + $0x70] sm:$0xf]
      %v2040 = vld [vmem:[%s224 + $0x74] sm:$0xf]
      %v2041 = vld [vmem:[%s224 + $0x78] sm:$0xf]
      %v2042 = vld [vmem:[%s224 + $0x7c] sm:$0xf]
      %v2043 = vld [vmem:[%s224 + $0x80] sm:$0xf]
      %v2044 = vld [vmem:[%s224 + $0x84] sm:$0xf]
      %v2045 = vld [vmem:[%s224 + $0x88] sm:$0xf]
      %v2046 = vld [vmem:[%s224 + $0x8c] sm:$0xf]
      %v2047 = vld [vmem:[%s224 + $0x90] sm:$0xf]
      %v2048 = vld [vmem:[%s224 + $0x94] sm:$0xf]
      %v2049 = vld [vmem:[%s224 + $0x98] sm:$0xf]
      %v2050 = vld [vmem:[%s224 + $0x9c] sm:$0xf]
      %v2051 = vld [vmem:[%s224 + $0xa0] sm:$0x3]
      %s2052 = scalar_lea.vmem %s1, 12
      %v2053 = vld [vmem:[%s2052] sm:$0x3]
      %v2091 = vunpack.c.l.b16 %v2015
      %v2092 = vunpack.c.l.b16 %v2016
      %v2093 = vunpack.c.l.b16 %v2017
      %v2094 = vunpack.c.l.b16 %v2018
      %v2095 = vunpack.c.l.b16 %v2019
      %v2096 = vunpack.c.l.b16 %v2020
      %v2097 = vunpack.c.l.b16 %v2021
      %v2098 = vunpack.c.l.b16 %v2022
      %v2099 = vunpack.c.l.b16 %v2023
      %v2100 = vunpack.c.l.b16 %v2024
      %v2101 = vunpack.c.l.b16 %v2025
      %v2102 = vunpack.c.l.b16 %v2026
      %v2103 = vunpack.c.l.b16 %v2027
      %v2104 = vunpack.c.l.b16 %v2028
      %v2105 = vunpack.c.l.b16 %v2029
      %v2106 = vunpack.c.l.b16 %v2030
      %v2107 = vunpack.c.l.b16 %v2031
      %v2108 = vunpack.c.l.b16 %v2032
      %v2109 = vunpack.c.l.b16 %v2033
      %v2110 = vunpack.c.l.b16 %v2034
      %v2111 = vunpack.c.l.b16 %v2035
      %v2112 = vunpack.c.l.b16 %v2036
      %v2113 = vunpack.c.l.b16 %v2037
      %v2114 = vunpack.c.l.b16 %v2038
      %v2115 = vunpack.c.l.b16 %v2039
      %v2116 = vunpack.c.l.b16 %v2040
      %v2117 = vunpack.c.l.b16 %v2041
      %v2118 = vunpack.c.l.b16 %v2042
      %v2119 = vunpack.c.l.b16 %v2043
      %v2120 = vunpack.c.l.b16 %v2044
      %v2121 = vunpack.c.l.b16 %v2045
      %v2122 = vunpack.c.l.b16 %v2046
      %v2123 = vunpack.c.l.b16 %v2047
      %v2124 = vunpack.c.l.b16 %v2048
      %v2125 = vunpack.c.l.b16 %v2049
      %v2126 = vunpack.c.l.b16 %v2050
      %v2127 = vunpack.c.l.b16 %v2051
      %v2128 = vpack.c.b16 %v2092, %v2091
      %v2129 = vpack.c.b16 %v2094, %v2093
      %v2130 = vpack.c.b16 %v2096, %v2095
      %v2131 = vpack.c.b16 %v2098, %v2097
      %v2132 = vpack.c.b16 %v2100, %v2099
      %v2133 = vpack.c.b16 %v2102, %v2101
      %v2134 = vpack.c.b16 %v2104, %v2103
      %v2135 = vpack.c.b16 %v2106, %v2105
      %v2136 = vpack.c.b16 %v2108, %v2107
      %v2137 = vpack.c.b16 %v2110, %v2109
      %v2138 = vpack.c.b16 %v2112, %v2111
      %v2139 = vpack.c.b16 %v2114, %v2113
      %v2140 = vpack.c.b16 %v2116, %v2115
      %v2141 = vpack.c.b16 %v2118, %v2117
      %v2142 = vpack.c.b16 %v2120, %v2119
      %v2143 = vpack.c.b16 %v2122, %v2121
      %v2144 = vpack.c.b16 %v2124, %v2123
      %v2145 = vpack.c.b16 %v2126, %v2125
      %v2146 = vpack.c.b16 %v2127, %v2127
      %v2147 = vrot.slane %v2128, 2
      %v2148 = vrot.slane %v2129, 2
      %v2149 = vsel %vm1785, %v2147, %v2148
      %v2150 = vrot.slane %v2130, 2
      %v2151 = vsel %vm1785, %v2148, %v2150
      %v2152 = vrot.slane %v2131, 2
      %v2153 = vsel %vm1785, %v2150, %v2152
      %v2154 = vrot.slane %v2132, 2
      %v2155 = vsel %vm1785, %v2152, %v2154
      %v2156 = vrot.slane %v2133, 2
      %v2157 = vsel %vm1785, %v2154, %v2156
      %v2158 = vrot.slane %v2134, 2
      %v2159 = vsel %vm1785, %v2156, %v2158
      %v2160 = vrot.slane %v2135, 2
      %v2161 = vsel %vm1785, %v2158, %v2160
      %v2162 = vrot.slane %v2136, 2
      %v2163 = vsel %vm1785, %v2160, %v2162
      %v2164 = vrot.slane %v2137, 2
      %v2165 = vsel %vm1785, %v2162, %v2164
      %v2166 = vrot.slane %v2138, 2
      %v2167 = vsel %vm1785, %v2164, %v2166
      %v2168 = vrot.slane %v2139, 2
      %v2169 = vsel %vm1785, %v2166, %v2168
      %v2170 = vrot.slane %v2140, 2
      %v2171 = vsel %vm1785, %v2168, %v2170
      %v2172 = vrot.slane %v2141, 2
      %v2173 = vsel %vm1785, %v2170, %v2172
      %v2174 = vrot.slane %v2142, 2
      %v2175 = vsel %vm1785, %v2172, %v2174
      %v2176 = vrot.slane %v2143, 2
      %v2177 = vsel %vm1785, %v2174, %v2176
      %v2178 = vrot.slane %v2144, 2
      %v2179 = vsel %vm1785, %v2176, %v2178
      %v2180 = vrot.slane %v2145, 2
      %v2181 = vsel %vm1785, %v2178, %v2180
      %v2182 = vrot.slane %v2146, 2
      %v2183 = vsel %vm1785, %v2180, %v2182
      %v2185 = vsel %vm517, %v2149, 0
      %v2188 = vsel %vm517, %v2151, 0
      %v2191 = vsel %vm517, %v2153, 0
      %v2194 = vsel %vm517, %v2155, 0
      %v2197 = vsel %vm517, %v2157, 0
      %v2200 = vsel %vm517, %v2159, 0
      %v2203 = vsel %vm517, %v2161, 0
      %v2206 = vsel %vm517, %v2163, 0
      %v2209 = vsel %vm517, %v2165, 0
      %v2212 = vsel %vm517, %v2167, 0
      %v2215 = vsel %vm517, %v2169, 0
      %v2218 = vsel %vm517, %v2171, 0
      %v2221 = vsel %vm517, %v2173, 0
      %v2224 = vsel %vm517, %v2175, 0
      %v2227 = vsel %vm517, %v2177, 0
      %v2230 = vsel %vm517, %v2179, 0
      %v2233 = vsel %vm517, %v2181, 0
      %v2236 = vsel %vm517, %v2183, 0
      %v2239 = vsel %vm572, %v2053, 0
      %2241 = vmatpush.bf16.msra.mxu0 0
      %2242 = vmatpush.bf16.msra.mxu0 0
      %2243 = vmatpush.bf16.msra.mxu0 0
      %2244 = vmatpush.bf16.msra.mxu0 0
      %2245 = vmatpush.bf16.msra.mxu0 0
      %2246 = vmatpush.bf16.msra.mxu0 0
      %2247 = vmatpush.bf16.msra.mxu0 0
      %2248 = vmatpush.bf16.msra.mxu0 %v2239
      %2249 = vmatmul.bf16.gmra.mxu0 %v2185
      %v2250 = vpop.f32.mrf.mxu0
      %v2251 = vadd.f32 0.0, %v2250
      %v2252 = vpop.f32.mrf.mxu0
      %v2253 = vadd.f32 0.0, %v2252
      %2254 = vmatmul.bf16.gmra.mxu0 %v2188
      %v2255 = vpop.f32.mrf.mxu0
      %v2256 = vadd.f32 0.0, %v2255
      %v2257 = vpop.f32.mrf.mxu0
      %v2258 = vadd.f32 0.0, %v2257
      %2259 = vmatmul.bf16.gmra.mxu0 %v2191
      %v2260 = vpop.f32.mrf.mxu0
      %v2261 = vadd.f32 0.0, %v2260
      %v2262 = vpop.f32.mrf.mxu0
      %v2263 = vadd.f32 0.0, %v2262
      %2264 = vmatmul.bf16.gmra.mxu0 %v2194
      %v2265 = vpop.f32.mrf.mxu0
      %v2266 = vadd.f32 0.0, %v2265
      %v2267 = vpop.f32.mrf.mxu0
      %v2268 = vadd.f32 0.0, %v2267
      %2269 = vmatmul.bf16.gmra.mxu0 %v2197
      %v2270 = vpop.f32.mrf.mxu0
      %v2271 = vadd.f32 0.0, %v2270
      %v2272 = vpop.f32.mrf.mxu0
      %v2273 = vadd.f32 0.0, %v2272
      %2274 = vmatmul.bf16.gmra.mxu0 %v2200
      %v2275 = vpop.f32.mrf.mxu0
      %v2276 = vadd.f32 0.0, %v2275
      %v2277 = vpop.f32.mrf.mxu0
      %v2278 = vadd.f32 0.0, %v2277
      %2279 = vmatmul.bf16.gmra.mxu0 %v2203
      %v2280 = vpop.f32.mrf.mxu0
      %v2281 = vadd.f32 0.0, %v2280
      %v2282 = vpop.f32.mrf.mxu0
      %v2283 = vadd.f32 0.0, %v2282
      %2284 = vmatmul.bf16.gmra.mxu0 %v2206
      %v2285 = vpop.f32.mrf.mxu0
      %v2286 = vadd.f32 0.0, %v2285
      %v2287 = vpop.f32.mrf.mxu0
      %v2288 = vadd.f32 0.0, %v2287
      %2289 = vmatmul.bf16.gmra.mxu0 %v2209
      %v2290 = vpop.f32.mrf.mxu0
      %v2291 = vadd.f32 0.0, %v2290
      %v2292 = vpop.f32.mrf.mxu0
      %v2293 = vadd.f32 0.0, %v2292
      %2294 = vmatmul.bf16.gmra.mxu0 %v2212
      %v2295 = vpop.f32.mrf.mxu0
      %v2296 = vadd.f32 0.0, %v2295
      %v2297 = vpop.f32.mrf.mxu0
      %v2298 = vadd.f32 0.0, %v2297
      %2299 = vmatmul.bf16.gmra.mxu0 %v2215
      %v2300 = vpop.f32.mrf.mxu0
      %v2301 = vadd.f32 0.0, %v2300
      %v2302 = vpop.f32.mrf.mxu0
      %v2303 = vadd.f32 0.0, %v2302
      %2304 = vmatmul.bf16.gmra.mxu0 %v2218
      %v2305 = vpop.f32.mrf.mxu0
      %v2306 = vadd.f32 0.0, %v2305
      %v2307 = vpop.f32.mrf.mxu0
      %v2308 = vadd.f32 0.0, %v2307
      %2309 = vmatmul.bf16.gmra.mxu0 %v2221
      %v2310 = vpop.f32.mrf.mxu0
      %v2311 = vadd.f32 0.0, %v2310
      %v2312 = vpop.f32.mrf.mxu0
      %v2313 = vadd.f32 0.0, %v2312
      %2314 = vmatmul.bf16.gmra.mxu0 %v2224
      %v2315 = vpop.f32.mrf.mxu0
      %v2316 = vadd.f32 0.0, %v2315
      %v2317 = vpop.f32.mrf.mxu0
      %v2318 = vadd.f32 0.0, %v2317
      %2319 = vmatmul.bf16.gmra.mxu0 %v2227
      %v2320 = vpop.f32.mrf.mxu0
      %v2321 = vadd.f32 0.0, %v2320
      %v2322 = vpop.f32.mrf.mxu0
      %v2323 = vadd.f32 0.0, %v2322
      %2324 = vmatmul.bf16.gmra.mxu0 %v2230
      %v2325 = vpop.f32.mrf.mxu0
      %v2326 = vadd.f32 0.0, %v2325
      %v2327 = vpop.f32.mrf.mxu0
      %v2328 = vadd.f32 0.0, %v2327
      %2329 = vmatmul.bf16.gmra.mxu0 %v2233
      %v2330 = vpop.f32.mrf.mxu0
      %v2331 = vadd.f32 0.0, %v2330
      %v2332 = vpop.f32.mrf.mxu0
      %v2333 = vadd.f32 0.0, %v2332
      %2334 = vmatmul.bf16.gmra.mxu0 %v2236
      %v2335 = vpop.f32.mrf.mxu0
      %v2336 = vadd.f32 0.0, %v2335
      %v2337 = vpop.f32.mrf.mxu0
      %v2338 = vadd.f32 0.0, %v2337
      %2339 = vdwg.mxu0
      %v2340 = vadd.f32 %v1979, %v2251
      %v2341 = vadd.f32 %v1980, %v2253
      %v2342 = vadd.f32 %v1981, %v2256
      %v2343 = vadd.f32 %v1982, %v2258
      %v2344 = vadd.f32 %v1983, %v2261
      %v2345 = vadd.f32 %v1984, %v2263
      %v2346 = vadd.f32 %v1985, %v2266
      %v2347 = vadd.f32 %v1986, %v2268
      %v2348 = vadd.f32 %v1987, %v2271
      %v2349 = vadd.f32 %v1988, %v2273
      %v2350 = vadd.f32 %v1989, %v2276
      %v2351 = vadd.f32 %v1990, %v2278
      %v2352 = vadd.f32 %v1991, %v2281
      %v2353 = vadd.f32 %v1992, %v2283
      %v2354 = vadd.f32 %v1993, %v2286
      %v2355 = vadd.f32 %v1994, %v2288
      %v2356 = vadd.f32 %v1995, %v2291
      %v2357 = vadd.f32 %v1996, %v2293
      %v2358 = vadd.f32 %v1997, %v2296
      %v2359 = vadd.f32 %v1998, %v2298
      %v2360 = vadd.f32 %v1999, %v2301
      %v2361 = vadd.f32 %v2000, %v2303
      %v2362 = vadd.f32 %v2001, %v2306
      %v2363 = vadd.f32 %v2002, %v2308
      %v2364 = vadd.f32 %v2003, %v2311
      %v2365 = vadd.f32 %v2004, %v2313
      %v2366 = vadd.f32 %v2005, %v2316
      %v2367 = vadd.f32 %v2006, %v2318
      %v2368 = vadd.f32 %v2007, %v2321
      %v2369 = vadd.f32 %v2008, %v2323
      %v2370 = vadd.f32 %v2009, %v2326
      %v2371 = vadd.f32 %v2010, %v2328
      %v2372 = vadd.f32 %v2011, %v2331
      %v2373 = vadd.f32 %v2012, %v2333
      %v2374 = vadd.f32 %v2013, %v2336
      %v2375 = vadd.f32 %v2014, %v2338
      %v2376 = vld [vmem:[%s224 + $0xa0] sm:$0x7]
      %s2377 = scalar_lea.vmem %s1, 14
      %v2378 = vld [vmem:[%s2377] sm:$0x3]
      %v2380 = vunpack.c.l.b16 %v2376
      %v2381 = vpack.c.b16 %v2380, %v2380
      %vm2382 = vsmask.f32 5376
      %v2384 = vshrl.u32 %v2128, 16
      %v2386 = vrot.slane %v2384, 2
      %v2387 = vshll.u32 %v2128, 16
      %v2389 = vrot.slane %v2387, 3
      %v2390 = vor.u32 %v2386, %v2389
      %v2392 = vshrl.u32 %v2129, 16
      %v2394 = vrot.slane %v2392, 2
      %v2395 = vshll.u32 %v2129, 16
      %v2397 = vrot.slane %v2395, 3
      %v2398 = vor.u32 %v2394, %v2397
      %v2399 = vsel %vm2382, %v2390, %v2398
      %v2401 = vshrl.u32 %v2130, 16
      %v2403 = vrot.slane %v2401, 2
      %v2404 = vshll.u32 %v2130, 16
      %v2406 = vrot.slane %v2404, 3
      %v2407 = vor.u32 %v2403, %v2406
      %v2408 = vsel %vm2382, %v2398, %v2407
      %v2410 = vshrl.u32 %v2131, 16
      %v2412 = vrot.slane %v2410, 2
      %v2413 = vshll.u32 %v2131, 16
      %v2415 = vrot.slane %v2413, 3
      %v2416 = vor.u32 %v2412, %v2415
      %v2417 = vsel %vm2382, %v2407, %v2416
      %v2419 = vshrl.u32 %v2132, 16
      %v2421 = vrot.slane %v2419, 2
      %v2422 = vshll.u32 %v2132, 16
      %v2424 = vrot.slane %v2422, 3
      %v2425 = vor.u32 %v2421, %v2424
      %v2426 = vsel %vm2382, %v2416, %v2425
      %v2428 = vshrl.u32 %v2133, 16
      %v2430 = vrot.slane %v2428, 2
      %v2431 = vshll.u32 %v2133, 16
      %v2433 = vrot.slane %v2431, 3
      %v2434 = vor.u32 %v2430, %v2433
      %v2435 = vsel %vm2382, %v2425, %v2434
      %v2437 = vshrl.u32 %v2134, 16
      %v2439 = vrot.slane %v2437, 2
      %v2440 = vshll.u32 %v2134, 16
      %v2442 = vrot.slane %v2440, 3
      %v2443 = vor.u32 %v2439, %v2442
      %v2444 = vsel %vm2382, %v2434, %v2443
      %v2446 = vshrl.u32 %v2135, 16
      %v2448 = vrot.slane %v2446, 2
      %v2449 = vshll.u32 %v2135, 16
      %v2451 = vrot.slane %v2449, 3
      %v2452 = vor.u32 %v2448, %v2451
      %v2453 = vsel %vm2382, %v2443, %v2452
      %v2455 = vshrl.u32 %v2136, 16
      %v2457 = vrot.slane %v2455, 2
      %v2458 = vshll.u32 %v2136, 16
      %v2460 = vrot.slane %v2458, 3
      %v2461 = vor.u32 %v2457, %v2460
      %v2462 = vsel %vm2382, %v2452, %v2461
      %v2464 = vshrl.u32 %v2137, 16
      %v2466 = vrot.slane %v2464, 2
      %v2467 = vshll.u32 %v2137, 16
      %v2469 = vrot.slane %v2467, 3
      %v2470 = vor.u32 %v2466, %v2469
      %v2471 = vsel %vm2382, %v2461, %v2470
      %v2473 = vshrl.u32 %v2138, 16
      %v2475 = vrot.slane %v2473, 2
      %v2476 = vshll.u32 %v2138, 16
      %v2478 = vrot.slane %v2476, 3
      %v2479 = vor.u32 %v2475, %v2478
      %v2480 = vsel %vm2382, %v2470, %v2479
      %v2482 = vshrl.u32 %v2139, 16
      %v2484 = vrot.slane %v2482, 2
      %v2485 = vshll.u32 %v2139, 16
      %v2487 = vrot.slane %v2485, 3
      %v2488 = vor.u32 %v2484, %v2487
      %v2489 = vsel %vm2382, %v2479, %v2488
      %v2491 = vshrl.u32 %v2140, 16
      %v2493 = vrot.slane %v2491, 2
      %v2494 = vshll.u32 %v2140, 16
      %v2496 = vrot.slane %v2494, 3
      %v2497 = vor.u32 %v2493, %v2496
      %v2498 = vsel %vm2382, %v2488, %v2497
      %v2500 = vshrl.u32 %v2141, 16
      %v2502 = vrot.slane %v2500, 2
      %v2503 = vshll.u32 %v2141, 16
      %v2505 = vrot.slane %v2503, 3
      %v2506 = vor.u32 %v2502, %v2505
      %v2507 = vsel %vm2382, %v2497, %v2506
      %v2509 = vshrl.u32 %v2142, 16
      %v2511 = vrot.slane %v2509, 2
      %v2512 = vshll.u32 %v2142, 16
      %v2514 = vrot.slane %v2512, 3
      %v2515 = vor.u32 %v2511, %v2514
      %v2516 = vsel %vm2382, %v2506, %v2515
      %v2518 = vshrl.u32 %v2143, 16
      %v2520 = vrot.slane %v2518, 2
      %v2521 = vshll.u32 %v2143, 16
      %v2523 = vrot.slane %v2521, 3
      %v2524 = vor.u32 %v2520, %v2523
      %v2525 = vsel %vm2382, %v2515, %v2524
      %v2527 = vshrl.u32 %v2144, 16
      %v2529 = vrot.slane %v2527, 2
      %v2530 = vshll.u32 %v2144, 16
      %v2532 = vrot.slane %v2530, 3
      %v2533 = vor.u32 %v2529, %v2532
      %v2534 = vsel %vm2382, %v2524, %v2533
      %v2536 = vshrl.u32 %v2145, 16
      %v2538 = vrot.slane %v2536, 2
      %v2539 = vshll.u32 %v2145, 16
      %v2541 = vrot.slane %v2539, 3
      %v2542 = vor.u32 %v2538, %v2541
      %v2543 = vsel %vm2382, %v2533, %v2542
      %v2545 = vshrl.u32 %v2381, 16
      %v2547 = vrot.slane %v2545, 2
      %v2548 = vshll.u32 %v2381, 16
      %v2550 = vrot.slane %v2548, 3
      %v2551 = vor.u32 %v2547, %v2550
      %v2552 = vsel %vm2382, %v2542, %v2551
      %v2554 = vsel %vm517, %v2399, 0
      %v2557 = vsel %vm517, %v2408, 0
      %v2560 = vsel %vm517, %v2417, 0
      %v2563 = vsel %vm517, %v2426, 0
      %v2566 = vsel %vm517, %v2435, 0
      %v2569 = vsel %vm517, %v2444, 0
      %v2572 = vsel %vm517, %v2453, 0
      %v2575 = vsel %vm517, %v2462, 0
      %v2578 = vsel %vm517, %v2471, 0
      %v2581 = vsel %vm517, %v2480, 0
      %v2584 = vsel %vm517, %v2489, 0
      %v2587 = vsel %vm517, %v2498, 0
      %v2590 = vsel %vm517, %v2507, 0
      %v2593 = vsel %vm517, %v2516, 0
      %v2596 = vsel %vm517, %v2525, 0
      %v2599 = vsel %vm517, %v2534, 0
      %v2602 = vsel %vm517, %v2543, 0
      %v2605 = vsel %vm517, %v2552, 0
      %v2608 = vsel %vm572, %v2378, 0
      %2610 = vmatpush.bf16.msra.mxu0 0
      %2611 = vmatpush.bf16.msra.mxu0 0
      %2612 = vmatpush.bf16.msra.mxu0 0
      %2613 = vmatpush.bf16.msra.mxu0 0
      %2614 = vmatpush.bf16.msra.mxu0 0
      %2615 = vmatpush.bf16.msra.mxu0 0
      %2616 = vmatpush.bf16.msra.mxu0 0
      %2617 = vmatpush.bf16.msra.mxu0 %v2608
      %2618 = vmatmul.bf16.gmra.mxu0 %v2554
      %v2619 = vpop.f32.mrf.mxu0
      %v2620 = vadd.f32 0.0, %v2619
      %v2621 = vpop.f32.mrf.mxu0
      %v2622 = vadd.f32 0.0, %v2621
      %2623 = vmatmul.bf16.gmra.mxu0 %v2557
      %v2624 = vpop.f32.mrf.mxu0
      %v2625 = vadd.f32 0.0, %v2624
      %v2626 = vpop.f32.mrf.mxu0
      %v2627 = vadd.f32 0.0, %v2626
      %2628 = vmatmul.bf16.gmra.mxu0 %v2560
      %v2629 = vpop.f32.mrf.mxu0
      %v2630 = vadd.f32 0.0, %v2629
      %v2631 = vpop.f32.mrf.mxu0
      %v2632 = vadd.f32 0.0, %v2631
      %2633 = vmatmul.bf16.gmra.mxu0 %v2563
      %v2634 = vpop.f32.mrf.mxu0
      %v2635 = vadd.f32 0.0, %v2634
      %v2636 = vpop.f32.mrf.mxu0
      %v2637 = vadd.f32 0.0, %v2636
      %2638 = vmatmul.bf16.gmra.mxu0 %v2566
      %v2639 = vpop.f32.mrf.mxu0
      %v2640 = vadd.f32 0.0, %v2639
      %v2641 = vpop.f32.mrf.mxu0
      %v2642 = vadd.f32 0.0, %v2641
      %2643 = vmatmul.bf16.gmra.mxu0 %v2569
      %v2644 = vpop.f32.mrf.mxu0
      %v2645 = vadd.f32 0.0, %v2644
      %v2646 = vpop.f32.mrf.mxu0
      %v2647 = vadd.f32 0.0, %v2646
      %2648 = vmatmul.bf16.gmra.mxu0 %v2572
      %v2649 = vpop.f32.mrf.mxu0
      %v2650 = vadd.f32 0.0, %v2649
      %v2651 = vpop.f32.mrf.mxu0
      %v2652 = vadd.f32 0.0, %v2651
      %2653 = vmatmul.bf16.gmra.mxu0 %v2575
      %v2654 = vpop.f32.mrf.mxu0
      %v2655 = vadd.f32 0.0, %v2654
      %v2656 = vpop.f32.mrf.mxu0
      %v2657 = vadd.f32 0.0, %v2656
      %2658 = vmatmul.bf16.gmra.mxu0 %v2578
      %v2659 = vpop.f32.mrf.mxu0
      %v2660 = vadd.f32 0.0, %v2659
      %v2661 = vpop.f32.mrf.mxu0
      %v2662 = vadd.f32 0.0, %v2661
      %2663 = vmatmul.bf16.gmra.mxu0 %v2581
      %v2664 = vpop.f32.mrf.mxu0
      %v2665 = vadd.f32 0.0, %v2664
      %v2666 = vpop.f32.mrf.mxu0
      %v2667 = vadd.f32 0.0, %v2666
      %2668 = vmatmul.bf16.gmra.mxu0 %v2584
      %v2669 = vpop.f32.mrf.mxu0
      %v2670 = vadd.f32 0.0, %v2669
      %v2671 = vpop.f32.mrf.mxu0
      %v2672 = vadd.f32 0.0, %v2671
      %2673 = vmatmul.bf16.gmra.mxu0 %v2587
      %v2674 = vpop.f32.mrf.mxu0
      %v2675 = vadd.f32 0.0, %v2674
      %v2676 = vpop.f32.mrf.mxu0
      %v2677 = vadd.f32 0.0, %v2676
      %2678 = vmatmul.bf16.gmra.mxu0 %v2590
      %v2679 = vpop.f32.mrf.mxu0
      %v2680 = vadd.f32 0.0, %v2679
      %v2681 = vpop.f32.mrf.mxu0
      %v2682 = vadd.f32 0.0, %v2681
      %2683 = vmatmul.bf16.gmra.mxu0 %v2593
      %v2684 = vpop.f32.mrf.mxu0
      %v2685 = vadd.f32 0.0, %v2684
      %v2686 = vpop.f32.mrf.mxu0
      %v2687 = vadd.f32 0.0, %v2686
      %2688 = vmatmul.bf16.gmra.mxu0 %v2596
      %v2689 = vpop.f32.mrf.mxu0
      %v2690 = vadd.f32 0.0, %v2689
      %v2691 = vpop.f32.mrf.mxu0
      %v2692 = vadd.f32 0.0, %v2691
      %2693 = vmatmul.bf16.gmra.mxu0 %v2599
      %v2694 = vpop.f32.mrf.mxu0
      %v2695 = vadd.f32 0.0, %v2694
      %v2696 = vpop.f32.mrf.mxu0
      %v2697 = vadd.f32 0.0, %v2696
      %2698 = vmatmul.bf16.gmra.mxu0 %v2602
      %v2699 = vpop.f32.mrf.mxu0
      %v2700 = vadd.f32 0.0, %v2699
      %v2701 = vpop.f32.mrf.mxu0
      %v2702 = vadd.f32 0.0, %v2701
      %2703 = vmatmul.bf16.gmra.mxu0 %v2605
      %v2704 = vpop.f32.mrf.mxu0
      %v2705 = vadd.f32 0.0, %v2704
      %v2706 = vpop.f32.mrf.mxu0
      %v2707 = vadd.f32 0.0, %v2706
      %2708 = vdwg.mxu0
      %v2709 = vadd.f32 %v2340, %v2620
      %v2710 = vadd.f32 %v2341, %v2622
      %v2711 = vadd.f32 %v2342, %v2625
      %v2712 = vadd.f32 %v2343, %v2627
      %v2713 = vadd.f32 %v2344, %v2630
      %v2714 = vadd.f32 %v2345, %v2632
      %v2715 = vadd.f32 %v2346, %v2635
      %v2716 = vadd.f32 %v2347, %v2637
      %v2717 = vadd.f32 %v2348, %v2640
      %v2718 = vadd.f32 %v2349, %v2642
      %v2719 = vadd.f32 %v2350, %v2645
      %v2720 = vadd.f32 %v2351, %v2647
      %v2721 = vadd.f32 %v2352, %v2650
      %v2722 = vadd.f32 %v2353, %v2652
      %v2723 = vadd.f32 %v2354, %v2655
      %v2724 = vadd.f32 %v2355, %v2657
      %v2725 = vadd.f32 %v2356, %v2660
      %v2726 = vadd.f32 %v2357, %v2662
      %v2727 = vadd.f32 %v2358, %v2665
      %v2728 = vadd.f32 %v2359, %v2667
      %v2729 = vadd.f32 %v2360, %v2670
      %v2730 = vadd.f32 %v2361, %v2672
      %v2731 = vadd.f32 %v2362, %v2675
      %v2732 = vadd.f32 %v2363, %v2677
      %v2733 = vadd.f32 %v2364, %v2680
      %v2734 = vadd.f32 %v2365, %v2682
      %v2735 = vadd.f32 %v2366, %v2685
      %v2736 = vadd.f32 %v2367, %v2687
      %v2737 = vadd.f32 %v2368, %v2690
      %v2738 = vadd.f32 %v2369, %v2692
      %v2739 = vadd.f32 %v2370, %v2695
      %v2740 = vadd.f32 %v2371, %v2697
      %v2741 = vadd.f32 %v2372, %v2700
      %v2742 = vadd.f32 %v2373, %v2702
      %v2743 = vadd.f32 %v2374, %v2705
      %v2744 = vadd.f32 %v2375, %v2707
      %v2745 = vld [vmem:[%s224 + $0x10] sm:$0x8]
      %s2746 = scalar_lea.vmem %s1, 16
      %v2747 = vld [vmem:[%s2746] sm:$0x3]
      %v2749 = vunpack.c.l.b16 %v2745
      %v2750 = vpack.c.b16 %v2092, %v2749
      %vm2751 = vcmask 1044480
      %v2752 = vrot.slane %v2750, 3
      %v2753 = vrot.slane %v2129, 3
      %v2754 = vsel %vm2751, %v2752, %v2753
      %v2755 = vrot.slane %v2130, 3
      %v2756 = vsel %vm2751, %v2753, %v2755
      %v2757 = vrot.slane %v2131, 3
      %v2758 = vsel %vm2751, %v2755, %v2757
      %v2759 = vrot.slane %v2132, 3
      %v2760 = vsel %vm2751, %v2757, %v2759
      %v2761 = vrot.slane %v2133, 3
      %v2762 = vsel %vm2751, %v2759, %v2761
      %v2763 = vrot.slane %v2134, 3
      %v2764 = vsel %vm2751, %v2761, %v2763
      %v2765 = vrot.slane %v2135, 3
      %v2766 = vsel %vm2751, %v2763, %v2765
      %v2767 = vrot.slane %v2136, 3
      %v2768 = vsel %vm2751, %v2765, %v2767
      %v2769 = vrot.slane %v2137, 3
      %v2770 = vsel %vm2751, %v2767, %v2769
      %v2771 = vrot.slane %v2138, 3
      %v2772 = vsel %vm2751, %v2769, %v2771
      %v2773 = vrot.slane %v2139, 3
      %v2774 = vsel %vm2751, %v2771, %v2773
      %v2775 = vrot.slane %v2140, 3
      %v2776 = vsel %vm2751, %v2773, %v2775
      %v2777 = vrot.slane %v2141, 3
      %v2778 = vsel %vm2751, %v2775, %v2777
      %v2779 = vrot.slane %v2142, 3
      %v2780 = vsel %vm2751, %v2777, %v2779
      %v2781 = vrot.slane %v2143, 3
      %v2782 = vsel %vm2751, %v2779, %v2781
      %v2783 = vrot.slane %v2144, 3
      %v2784 = vsel %vm2751, %v2781, %v2783
      %v2785 = vrot.slane %v2145, 3
      %v2786 = vsel %vm2751, %v2783, %v2785
      %v2787 = vrot.slane %v2381, 3
      %v2788 = vsel %vm2751, %v2785, %v2787
      %v2790 = vsel %vm517, %v2754, 0
      %v2793 = vsel %vm517, %v2756, 0
      %v2796 = vsel %vm517, %v2758, 0
      %v2799 = vsel %vm517, %v2760, 0
      %v2802 = vsel %vm517, %v2762, 0
      %v2805 = vsel %vm517, %v2764, 0
      %v2808 = vsel %vm517, %v2766, 0
      %v2811 = vsel %vm517, %v2768, 0
      %v2814 = vsel %vm517, %v2770, 0
      %v2817 = vsel %vm517, %v2772, 0
      %v2820 = vsel %vm517, %v2774, 0
      %v2823 = vsel %vm517, %v2776, 0
      %v2826 = vsel %vm517, %v2778, 0
      %v2829 = vsel %vm517, %v2780, 0
      %v2832 = vsel %vm517, %v2782, 0
      %v2835 = vsel %vm517, %v2784, 0
      %v2838 = vsel %vm517, %v2786, 0
      %v2841 = vsel %vm517, %v2788, 0
      %v2844 = vsel %vm572, %v2747, 0
      %2846 = vmatpush.bf16.msra.mxu0 0
      %2847 = vmatpush.bf16.msra.mxu0 0
      %2848 = vmatpush.bf16.msra.mxu0 0
      %2849 = vmatpush.bf16.msra.mxu0 0
      %2850 = vmatpush.bf16.msra.mxu0 0
      %2851 = vmatpush.bf16.msra.mxu0 0
      %2852 = vmatpush.bf16.msra.mxu0 0
      %2853 = vmatpush.bf16.msra.mxu0 %v2844
      %2854 = vmatmul.bf16.gmra.mxu0 %v2790
      %v2855 = vpop.f32.mrf.mxu0
      %v2856 = vadd.f32 0.0, %v2855
      %v2857 = vpop.f32.mrf.mxu0
      %v2858 = vadd.f32 0.0, %v2857
      %2859 = vmatmul.bf16.gmra.mxu0 %v2793
      %v2860 = vpop.f32.mrf.mxu0
      %v2861 = vadd.f32 0.0, %v2860
      %v2862 = vpop.f32.mrf.mxu0
      %v2863 = vadd.f32 0.0, %v2862
      %2864 = vmatmul.bf16.gmra.mxu0 %v2796
      %v2865 = vpop.f32.mrf.mxu0
      %v2866 = vadd.f32 0.0, %v2865
      %v2867 = vpop.f32.mrf.mxu0
      %v2868 = vadd.f32 0.0, %v2867
      %2869 = vmatmul.bf16.gmra.mxu0 %v2799
      %v2870 = vpop.f32.mrf.mxu0
      %v2871 = vadd.f32 0.0, %v2870
      %v2872 = vpop.f32.mrf.mxu0
      %v2873 = vadd.f32 0.0, %v2872
      %2874 = vmatmul.bf16.gmra.mxu0 %v2802
      %v2875 = vpop.f32.mrf.mxu0
      %v2876 = vadd.f32 0.0, %v2875
      %v2877 = vpop.f32.mrf.mxu0
      %v2878 = vadd.f32 0.0, %v2877
      %2879 = vmatmul.bf16.gmra.mxu0 %v2805
      %v2880 = vpop.f32.mrf.mxu0
      %v2881 = vadd.f32 0.0, %v2880
      %v2882 = vpop.f32.mrf.mxu0
      %v2883 = vadd.f32 0.0, %v2882
      %2884 = vmatmul.bf16.gmra.mxu0 %v2808
      %v2885 = vpop.f32.mrf.mxu0
      %v2886 = vadd.f32 0.0, %v2885
      %v2887 = vpop.f32.mrf.mxu0
      %v2888 = vadd.f32 0.0, %v2887
      %2889 = vmatmul.bf16.gmra.mxu0 %v2811
      %v2890 = vpop.f32.mrf.mxu0
      %v2891 = vadd.f32 0.0, %v2890
      %v2892 = vpop.f32.mrf.mxu0
      %v2893 = vadd.f32 0.0, %v2892
      %2894 = vmatmul.bf16.gmra.mxu0 %v2814
      %v2895 = vpop.f32.mrf.mxu0
      %v2896 = vadd.f32 0.0, %v2895
      %v2897 = vpop.f32.mrf.mxu0
      %v2898 = vadd.f32 0.0, %v2897
      %2899 = vmatmul.bf16.gmra.mxu0 %v2817
      %v2900 = vpop.f32.mrf.mxu0
      %v2901 = vadd.f32 0.0, %v2900
      %v2902 = vpop.f32.mrf.mxu0
      %v2903 = vadd.f32 0.0, %v2902
      %2904 = vmatmul.bf16.gmra.mxu0 %v2820
      %v2905 = vpop.f32.mrf.mxu0
      %v2906 = vadd.f32 0.0, %v2905
      %v2907 = vpop.f32.mrf.mxu0
      %v2908 = vadd.f32 0.0, %v2907
      %2909 = vmatmul.bf16.gmra.mxu0 %v2823
      %v2910 = vpop.f32.mrf.mxu0
      %v2911 = vadd.f32 0.0, %v2910
      %v2912 = vpop.f32.mrf.mxu0
      %v2913 = vadd.f32 0.0, %v2912
      %2914 = vmatmul.bf16.gmra.mxu0 %v2826
      %v2915 = vpop.f32.mrf.mxu0
      %v2916 = vadd.f32 0.0, %v2915
      %v2917 = vpop.f32.mrf.mxu0
      %v2918 = vadd.f32 0.0, %v2917
      %2919 = vmatmul.bf16.gmra.mxu0 %v2829
      %v2920 = vpop.f32.mrf.mxu0
      %v2921 = vadd.f32 0.0, %v2920
      %v2922 = vpop.f32.mrf.mxu0
      %v2923 = vadd.f32 0.0, %v2922
      %2924 = vmatmul.bf16.gmra.mxu0 %v2832
      %v2925 = vpop.f32.mrf.mxu0
      %v2926 = vadd.f32 0.0, %v2925
      %v2927 = vpop.f32.mrf.mxu0
      %v2928 = vadd.f32 0.0, %v2927
      %2929 = vmatmul.bf16.gmra.mxu0 %v2835
      %v2930 = vpop.f32.mrf.mxu0
      %v2931 = vadd.f32 0.0, %v2930
      %v2932 = vpop.f32.mrf.mxu0
      %v2933 = vadd.f32 0.0, %v2932
      %2934 = vmatmul.bf16.gmra.mxu0 %v2838
      %v2935 = vpop.f32.mrf.mxu0
      %v2936 = vadd.f32 0.0, %v2935
      %v2937 = vpop.f32.mrf.mxu0
      %v2938 = vadd.f32 0.0, %v2937
      %2939 = vmatmul.bf16.gmra.mxu0 %v2841
      %v2940 = vpop.f32.mrf.mxu0
      %v2941 = vadd.f32 0.0, %v2940
      %v2942 = vpop.f32.mrf.mxu0
      %v2943 = vadd.f32 0.0, %v2942
      %2944 = vdwg.mxu0
      %v2945 = vadd.f32 %v2709, %v2856
      %v2946 = vadd.f32 %v2710, %v2858
      %v2947 = vadd.f32 %v2711, %v2861
      %v2948 = vadd.f32 %v2712, %v2863
      %v2949 = vadd.f32 %v2713, %v2866
      %v2950 = vadd.f32 %v2714, %v2868
      %v2951 = vadd.f32 %v2715, %v2871
      %v2952 = vadd.f32 %v2716, %v2873
      %v2953 = vadd.f32 %v2717, %v2876
      %v2954 = vadd.f32 %v2718, %v2878
      %v2955 = vadd.f32 %v2719, %v2881
      %v2956 = vadd.f32 %v2720, %v2883
      %v2957 = vadd.f32 %v2721, %v2886
      %v2958 = vadd.f32 %v2722, %v2888
      %v2959 = vadd.f32 %v2723, %v2891
      %v2960 = vadd.f32 %v2724, %v2893
      %v2961 = vadd.f32 %v2725, %v2896
      %v2962 = vadd.f32 %v2726, %v2898
      %v2963 = vadd.f32 %v2727, %v2901
      %v2964 = vadd.f32 %v2728, %v2903
      %v2965 = vadd.f32 %v2729, %v2906
      %v2966 = vadd.f32 %v2730, %v2908
      %v2967 = vadd.f32 %v2731, %v2911
      %v2968 = vadd.f32 %v2732, %v2913
      %v2969 = vadd.f32 %v2733, %v2916
      %v2970 = vadd.f32 %v2734, %v2918
      %v2971 = vadd.f32 %v2735, %v2921
      %v2972 = vadd.f32 %v2736, %v2923
      %v2973 = vadd.f32 %v2737, %v2926
      %v2974 = vadd.f32 %v2738, %v2928
      %v2975 = vadd.f32 %v2739, %v2931
      %v2976 = vadd.f32 %v2740, %v2933
      %v2977 = vadd.f32 %v2741, %v2936
      %v2978 = vadd.f32 %v2742, %v2938
      %v2979 = vadd.f32 %v2743, %v2941
      %v2980 = vadd.f32 %v2744, %v2943
      %v2981 = vld [vmem:[%s2] sm:$0x1]
      %v2983 = vperm.slane %v2981, 0
      %v2985 = vmul.f32 %v2945, %v2983
      %v2986 = vmul.f32 %v2946, %v2983
      %v2987 = vmul.f32 %v2947, %v2983
      %v2988 = vmul.f32 %v2948, %v2983
      %v2989 = vmul.f32 %v2949, %v2983
      %v2990 = vmul.f32 %v2950, %v2983
      %v2991 = vmul.f32 %v2951, %v2983
      %v2992 = vmul.f32 %v2952, %v2983
      %v2993 = vmul.f32 %v2953, %v2983
      %v2994 = vmul.f32 %v2954, %v2983
      %v2995 = vmul.f32 %v2955, %v2983
      %v2996 = vmul.f32 %v2956, %v2983
      %v2997 = vmul.f32 %v2957, %v2983
      %v2998 = vmul.f32 %v2958, %v2983
      %v2999 = vmul.f32 %v2959, %v2983
      %v3000 = vmul.f32 %v2960, %v2983
      %v3001 = vmul.f32 %v2961, %v2983
      %v3002 = vmul.f32 %v2962, %v2983
      %v3003 = vmul.f32 %v2963, %v2983
      %v3004 = vmul.f32 %v2964, %v2983
      %v3005 = vmul.f32 %v2965, %v2983
      %v3006 = vmul.f32 %v2966, %v2983
      %v3007 = vmul.f32 %v2967, %v2983
      %v3008 = vmul.f32 %v2968, %v2983
      %v3009 = vmul.f32 %v2969, %v2983
      %v3010 = vmul.f32 %v2970, %v2983
      %v3011 = vmul.f32 %v2971, %v2983
      %v3012 = vmul.f32 %v2972, %v2983
      %v3013 = vmul.f32 %v2973, %v2983
      %v3014 = vmul.f32 %v2974, %v2983
      %v3015 = vmul.f32 %v2975, %v2983
      %v3016 = vmul.f32 %v2976, %v2983
      %v3017 = vmul.f32 %v2977, %v2983
      %v3018 = vmul.f32 %v2978, %v2983
      %v3019 = vmul.f32 %v2979, %v2983
      %v3020 = vmul.f32 %v2980, %v2983
      %v3021 = vld [vmem:[%s3] sm:$0x1]
      %v3023 = vperm.slane %v3021, 0
      %v3025 = vadd.f32 %v2985, %v3023
      %v3026 = vadd.f32 %v2986, %v3023
      %v3027 = vadd.f32 %v2987, %v3023
      %v3028 = vadd.f32 %v2988, %v3023
      %v3029 = vadd.f32 %v2989, %v3023
      %v3030 = vadd.f32 %v2990, %v3023
      %v3031 = vadd.f32 %v2991, %v3023
      %v3032 = vadd.f32 %v2992, %v3023
      %v3033 = vadd.f32 %v2993, %v3023
      %v3034 = vadd.f32 %v2994, %v3023
      %v3035 = vadd.f32 %v2995, %v3023
      %v3036 = vadd.f32 %v2996, %v3023
      %v3037 = vadd.f32 %v2997, %v3023
      %v3038 = vadd.f32 %v2998, %v3023
      %v3039 = vadd.f32 %v2999, %v3023
      %v3040 = vadd.f32 %v3000, %v3023
      %v3041 = vadd.f32 %v3001, %v3023
      %v3042 = vadd.f32 %v3002, %v3023
      %v3043 = vadd.f32 %v3003, %v3023
      %v3044 = vadd.f32 %v3004, %v3023
      %v3045 = vadd.f32 %v3005, %v3023
      %v3046 = vadd.f32 %v3006, %v3023
      %v3047 = vadd.f32 %v3007, %v3023
      %v3048 = vadd.f32 %v3008, %v3023
      %v3049 = vadd.f32 %v3009, %v3023
      %v3050 = vadd.f32 %v3010, %v3023
      %v3051 = vadd.f32 %v3011, %v3023
      %v3052 = vadd.f32 %v3012, %v3023
      %v3053 = vadd.f32 %v3013, %v3023
      %v3054 = vadd.f32 %v3014, %v3023
      %v3055 = vadd.f32 %v3015, %v3023
      %v3056 = vadd.f32 %v3016, %v3023
      %v3057 = vadd.f32 %v3017, %v3023
      %v3058 = vadd.f32 %v3018, %v3023
      %v3059 = vadd.f32 %v3019, %v3023
      %v3060 = vadd.f32 %v3020, %v3023
      %vm3061 = vcmp.ge.f32.partialorder %v3025, 0.0
      %vm3062 = vcmp.ge.f32.partialorder %v3026, 0.0
      %vm3063 = vcmp.ge.f32.partialorder %v3027, 0.0
      %vm3064 = vcmp.ge.f32.partialorder %v3028, 0.0
      %vm3065 = vcmp.ge.f32.partialorder %v3029, 0.0
      %vm3066 = vcmp.ge.f32.partialorder %v3030, 0.0
      %vm3067 = vcmp.ge.f32.partialorder %v3031, 0.0
      %vm3068 = vcmp.ge.f32.partialorder %v3032, 0.0
      %vm3069 = vcmp.ge.f32.partialorder %v3033, 0.0
      %vm3070 = vcmp.ge.f32.partialorder %v3034, 0.0
      %vm3071 = vcmp.ge.f32.partialorder %v3035, 0.0
      %vm3072 = vcmp.ge.f32.partialorder %v3036, 0.0
      %vm3073 = vcmp.ge.f32.partialorder %v3037, 0.0
      %vm3074 = vcmp.ge.f32.partialorder %v3038, 0.0
      %vm3075 = vcmp.ge.f32.partialorder %v3039, 0.0
      %vm3076 = vcmp.ge.f32.partialorder %v3040, 0.0
      %vm3077 = vcmp.ge.f32.partialorder %v3041, 0.0
      %vm3078 = vcmp.ge.f32.partialorder %v3042, 0.0
      %vm3079 = vcmp.ge.f32.partialorder %v3043, 0.0
      %vm3080 = vcmp.ge.f32.partialorder %v3044, 0.0
      %vm3081 = vcmp.ge.f32.partialorder %v3045, 0.0
      %vm3082 = vcmp.ge.f32.partialorder %v3046, 0.0
      %vm3083 = vcmp.ge.f32.partialorder %v3047, 0.0
      %vm3084 = vcmp.ge.f32.partialorder %v3048, 0.0
      %vm3085 = vcmp.ge.f32.partialorder %v3049, 0.0
      %vm3086 = vcmp.ge.f32.partialorder %v3050, 0.0
      %vm3087 = vcmp.ge.f32.partialorder %v3051, 0.0
      %vm3088 = vcmp.ge.f32.partialorder %v3052, 0.0
      %vm3089 = vcmp.ge.f32.partialorder %v3053, 0.0
      %vm3090 = vcmp.ge.f32.partialorder %v3054, 0.0
      %vm3091 = vcmp.ge.f32.partialorder %v3055, 0.0
      %vm3092 = vcmp.ge.f32.partialorder %v3056, 0.0
      %vm3093 = vcmp.ge.f32.partialorder %v3057, 0.0
      %vm3094 = vcmp.ge.f32.partialorder %v3058, 0.0
      %vm3095 = vcmp.ge.f32.partialorder %v3059, 0.0
      %vm3096 = vcmp.ge.f32.partialorder %v3060, 0.0
      %v3097 = vmul.f32 %v3025, 0.01
      %v3098 = vmul.f32 %v3026, 0.01
      %v3099 = vmul.f32 %v3027, 0.01
      %v3100 = vmul.f32 %v3028, 0.01
      %v3101 = vmul.f32 %v3029, 0.01
      %v3102 = vmul.f32 %v3030, 0.01
      %v3103 = vmul.f32 %v3031, 0.01
      %v3104 = vmul.f32 %v3032, 0.01
      %v3105 = vmul.f32 %v3033, 0.01
      %v3106 = vmul.f32 %v3034, 0.01
      %v3107 = vmul.f32 %v3035, 0.01
      %v3108 = vmul.f32 %v3036, 0.01
      %v3109 = vmul.f32 %v3037, 0.01
      %v3110 = vmul.f32 %v3038, 0.01
      %v3111 = vmul.f32 %v3039, 0.01
      %v3112 = vmul.f32 %v3040, 0.01
      %v3113 = vmul.f32 %v3041, 0.01
      %v3114 = vmul.f32 %v3042, 0.01
      %v3115 = vmul.f32 %v3043, 0.01
      %v3116 = vmul.f32 %v3044, 0.01
      %v3117 = vmul.f32 %v3045, 0.01
      %v3118 = vmul.f32 %v3046, 0.01
      %v3119 = vmul.f32 %v3047, 0.01
      %v3120 = vmul.f32 %v3048, 0.01
      %v3121 = vmul.f32 %v3049, 0.01
      %v3122 = vmul.f32 %v3050, 0.01
      %v3123 = vmul.f32 %v3051, 0.01
      %v3124 = vmul.f32 %v3052, 0.01
      %v3125 = vmul.f32 %v3053, 0.01
      %v3126 = vmul.f32 %v3054, 0.01
      %v3127 = vmul.f32 %v3055, 0.01
      %v3128 = vmul.f32 %v3056, 0.01
      %v3129 = vmul.f32 %v3057, 0.01
      %v3130 = vmul.f32 %v3058, 0.01
      %v3131 = vmul.f32 %v3059, 0.01
      %v3132 = vmul.f32 %v3060, 0.01
      %v3133 = vsel %vm3061, %v3025, %v3097
      %v3134 = vsel %vm3062, %v3026, %v3098
      %v3135 = vsel %vm3063, %v3027, %v3099
      %v3136 = vsel %vm3064, %v3028, %v3100
      %v3137 = vsel %vm3065, %v3029, %v3101
      %v3138 = vsel %vm3066, %v3030, %v3102
      %v3139 = vsel %vm3067, %v3031, %v3103
      %v3140 = vsel %vm3068, %v3032, %v3104
      %v3141 = vsel %vm3069, %v3033, %v3105
      %v3142 = vsel %vm3070, %v3034, %v3106
      %v3143 = vsel %vm3071, %v3035, %v3107
      %v3144 = vsel %vm3072, %v3036, %v3108
      %v3145 = vsel %vm3073, %v3037, %v3109
      %v3146 = vsel %vm3074, %v3038, %v3110
      %v3147 = vsel %vm3075, %v3039, %v3111
      %v3148 = vsel %vm3076, %v3040, %v3112
      %v3149 = vsel %vm3077, %v3041, %v3113
      %v3150 = vsel %vm3078, %v3042, %v3114
      %v3151 = vsel %vm3079, %v3043, %v3115
      %v3152 = vsel %vm3080, %v3044, %v3116
      %v3153 = vsel %vm3081, %v3045, %v3117
      %v3154 = vsel %vm3082, %v3046, %v3118
      %v3155 = vsel %vm3083, %v3047, %v3119
      %v3156 = vsel %vm3084, %v3048, %v3120
      %v3157 = vsel %vm3085, %v3049, %v3121
      %v3158 = vsel %vm3086, %v3050, %v3122
      %v3159 = vsel %vm3087, %v3051, %v3123
      %v3160 = vsel %vm3088, %v3052, %v3124
      %v3161 = vsel %vm3089, %v3053, %v3125
      %v3162 = vsel %vm3090, %v3054, %v3126
      %v3163 = vsel %vm3091, %v3055, %v3127
      %v3164 = vsel %vm3092, %v3056, %v3128
      %v3165 = vsel %vm3093, %v3057, %v3129
      %v3166 = vsel %vm3094, %v3058, %v3130
      %v3167 = vsel %vm3095, %v3059, %v3131
      %v3168 = vsel %vm3096, %v3060, %v3132
      %v3169 = vpack.c.bf16 %v3133, %v3133
      %v3170 = vpack.c.bf16 %v3134, %v3134
      %v3171 = vpack.c.bf16 %v3135, %v3135
      %v3172 = vpack.c.bf16 %v3136, %v3136
      %v3173 = vpack.c.bf16 %v3137, %v3137
      %v3174 = vpack.c.bf16 %v3138, %v3138
      %v3175 = vpack.c.bf16 %v3139, %v3139
      %v3176 = vpack.c.bf16 %v3140, %v3140
      %v3177 = vpack.c.bf16 %v3141, %v3141
      %v3178 = vpack.c.bf16 %v3142, %v3142
      %v3179 = vpack.c.bf16 %v3143, %v3143
      %v3180 = vpack.c.bf16 %v3144, %v3144
      %v3181 = vpack.c.bf16 %v3145, %v3145
      %v3182 = vpack.c.bf16 %v3146, %v3146
      %v3183 = vpack.c.bf16 %v3147, %v3147
      %v3184 = vpack.c.bf16 %v3148, %v3148
      %v3185 = vpack.c.bf16 %v3149, %v3149
      %v3186 = vpack.c.bf16 %v3150, %v3150
      %v3187 = vpack.c.bf16 %v3151, %v3151
      %v3188 = vpack.c.bf16 %v3152, %v3152
      %v3189 = vpack.c.bf16 %v3153, %v3153
      %v3190 = vpack.c.bf16 %v3154, %v3154
      %v3191 = vpack.c.bf16 %v3155, %v3155
      %v3192 = vpack.c.bf16 %v3156, %v3156
      %v3193 = vpack.c.bf16 %v3157, %v3157
      %v3194 = vpack.c.bf16 %v3158, %v3158
      %v3195 = vpack.c.bf16 %v3159, %v3159
      %v3196 = vpack.c.bf16 %v3160, %v3160
      %v3197 = vpack.c.bf16 %v3161, %v3161
      %v3198 = vpack.c.bf16 %v3162, %v3162
      %v3199 = vpack.c.bf16 %v3163, %v3163
      %v3200 = vpack.c.bf16 %v3164, %v3164
      %v3201 = vpack.c.bf16 %v3165, %v3165
      %v3202 = vpack.c.bf16 %v3166, %v3166
      %v3203 = vpack.c.bf16 %v3167, %v3167
      %v3204 = vpack.c.bf16 %v3168, %v3168
      %vm3205 = vcmask 257024
      %3206 = vst.msk [vmem:[%s233] sm:$0xf] %vm3205, %v3169
      %3207 = vst.msk [vmem:[%s233 + $0x4] sm:$0xf] %vm3205, %v3170
      %3208 = vst.msk [vmem:[%s233 + $0x8] sm:$0xf] %vm3205, %v3171
      %3209 = vst.msk [vmem:[%s233 + $0xc] sm:$0xf] %vm3205, %v3172
      %3210 = vst.msk [vmem:[%s233 + $0x10] sm:$0xf] %vm3205, %v3173
      %3211 = vst.msk [vmem:[%s233 + $0x14] sm:$0xf] %vm3205, %v3174
      %3212 = vst.msk [vmem:[%s233 + $0x18] sm:$0xf] %vm3205, %v3175
      %3213 = vst.msk [vmem:[%s233 + $0x1c] sm:$0xf] %vm3205, %v3176
      %3214 = vst.msk [vmem:[%s233 + $0x20] sm:$0xf] %vm3205, %v3177
      %3215 = vst.msk [vmem:[%s233 + $0x24] sm:$0xf] %vm3205, %v3178
      %3216 = vst.msk [vmem:[%s233 + $0x28] sm:$0xf] %vm3205, %v3179
      %3217 = vst.msk [vmem:[%s233 + $0x2c] sm:$0xf] %vm3205, %v3180
      %3218 = vst.msk [vmem:[%s233 + $0x30] sm:$0xf] %vm3205, %v3181
      %3219 = vst.msk [vmem:[%s233 + $0x34] sm:$0xf] %vm3205, %v3182
      %3220 = vst.msk [vmem:[%s233 + $0x38] sm:$0xf] %vm3205, %v3183
      %3221 = vst.msk [vmem:[%s233 + $0x3c] sm:$0xf] %vm3205, %v3184
      %3222 = vst.msk [vmem:[%s233 + $0x40] sm:$0xf] %vm3205, %v3185
      %3223 = vst.msk [vmem:[%s233 + $0x44] sm:$0xf] %vm3205, %v3186
      %3224 = vst.msk [vmem:[%s233 + $0x48] sm:$0xf] %vm3205, %v3187
      %3225 = vst.msk [vmem:[%s233 + $0x4c] sm:$0xf] %vm3205, %v3188
      %3226 = vst.msk [vmem:[%s233 + $0x50] sm:$0xf] %vm3205, %v3189
      %3227 = vst.msk [vmem:[%s233 + $0x54] sm:$0xf] %vm3205, %v3190
      %3228 = vst.msk [vmem:[%s233 + $0x58] sm:$0xf] %vm3205, %v3191
      %3229 = vst.msk [vmem:[%s233 + $0x5c] sm:$0xf] %vm3205, %v3192
      %3230 = vst.msk [vmem:[%s233 + $0x60] sm:$0xf] %vm3205, %v3193
      %3231 = vst.msk [vmem:[%s233 + $0x64] sm:$0xf] %vm3205, %v3194
      %3232 = vst.msk [vmem:[%s233 + $0x68] sm:$0xf] %vm3205, %v3195
      %3233 = vst.msk [vmem:[%s233 + $0x6c] sm:$0xf] %vm3205, %v3196
      %3234 = vst.msk [vmem:[%s233 + $0x70] sm:$0xf] %vm3205, %v3197
      %3235 = vst.msk [vmem:[%s233 + $0x74] sm:$0xf] %vm3205, %v3198
      %3236 = vst.msk [vmem:[%s233 + $0x78] sm:$0xf] %vm3205, %v3199
      %3237 = vst.msk [vmem:[%s233 + $0x7c] sm:$0xf] %vm3205, %v3200
      %3238 = vst.msk [vmem:[%s233 + $0x80] sm:$0xf] %vm3205, %v3201
      %3239 = vst.msk [vmem:[%s233 + $0x84] sm:$0xf] %vm3205, %v3202
      %3240 = vst.msk [vmem:[%s233 + $0x88] sm:$0xf] %vm3205, %v3203
      %3241 = vst.msk [vmem:[%s233 + $0x8c] sm:$0xf] %vm3205, %v3204
      %p3242 = scmp.lt.s32.totalorder %s19, 1
      %s3243 = scalar_select %p3242, %s19, 1
      %p3244 = scmp.lt.s32.totalorder %s20, 0
      %s3245 = scalar_select %p3244, %s20, 0
      %s3246 = smul.addr %s3245, 36
      %s3247 = smul.addr %s3243, 36
      %s3248 = sadd.s32 %s3246, %s3247
      %s3249 = smul.addr %s3248, 4
      %s3250 = scalar_lea.vmem %s4, %s3249
      // Predicated region
      $region37: #{conv_block_forward.2} parent=35 // pred_check
        %p3251 = pneg %p138
      $region38: #{conv_block_forward.2} parent=35 // pred_check_branch
        %3253 = sbr.rel (%p3251) target = $region40
      $region39: #{conv_block_forward.2} parent=35 // pred_region
        _
      $region40: #{conv_block_forward.2} parent=35 // pred_fallthru
        _
    $region36: #{conv_block_forward.2} parent=5 // pred_fallthru
      _
    %p3254 = scmp.le.s32.totalorder 2, %s10
    // Predicated region
    $region41: #{conv_block_forward.2} parent=5 // pred_check
      %p3255 = pneg %p3254
    $region42: #{conv_block_forward.2} parent=5 // pred_check_branch
      %3257 = sbr.rel (%p3255) target = $region44
    $region43: #{conv_block_forward.2} parent=5 // pred_region
      %s3258 = ssub.s32 %s10, 2
      // Predicated region
      $region45: #{conv_block_forward.2} parent=43 // pred_check
        %p3259 = pneg %p144
      $region46: #{conv_block_forward.2} parent=43 // pred_check_branch
        %3261 = sbr.rel (%p3259) target = $region48
      $region47: #{conv_block_forward.2} parent=43 // pred_region
        %p3262 = scmp.lt.s32.totalorder %s21, 1
        %s3263 = scalar_select %p3262, %s21, 1
        %p3264 = scmp.lt.s32.totalorder %s22, 0
        %s3265 = scalar_select %p3264, %s22, 0
        %s3266 = smul.addr %s3265, 36
        %s3267 = smul.addr %s3263, 36
        %s3268 = sadd.s32 %s3266, %s3267
        %s3269 = smul.addr %s3268, 4
        %s3270 = scalar_lea.vmem %s4, %s3269
      $region48: #{conv_block_forward.2} parent=43 // pred_fallthru
        _
    $region44: #{conv_block_forward.2} parent=5 // pred_fallthru
      _
  $region6: #{conv_block_forward.2} parent=0 // loop_footer
    %s14 = sadd.s32 1, %s10
  $region7: #{conv_block_forward.2} parent=0 // loop_footer_branch
    %9 = sbr.rel target = $region3
  $region8: #{conv_block_forward.2} parent=0 // loop_exit
    _

// kernel: conv_block_forward.3
$region0: #{conv_block_forward.3}
  #allocation0 [shape = 'u32[]', space=smem, size = 0x4, offset = 0x4, fixed_abs, tag = 'smem constant byte address 0x4 - core index']
  #allocation1 [shape = 'u32[72,128]{1,0:T(1,128)}', space=vmem, size = 0x9000, scoped, tag = 'internal scratch']
  %s0 = inlined_call_operand.vmem [shape: bf16[2,1,332,32], index: 0, kind: input, shape index: {}]
  %s1 = inlined_call_operand.vmem [shape: bf16[9,32,32], index: 1, kind: input, shape index: {}]
  %s2 = inlined_call_operand.vmem [shape: f32[1,32], index: 2, kind: input, shape index: {}]
  %s3 = inlined_call_operand.vmem [shape: f32[1,32], index: 3, kind: input, shape index: {}]
  %s4 = inlined_call_operand.vmem [shape: f32[2,1,288,32], index: 4, kind: output, shape index: {}]
  %s5 = sld [smem:[#allocation0]]
  $region49: #{conv_block_forward.3} parent=0
    _
  %s7 = ssub.s32 1, %s5
  %s8 = scalar_select 0, %s7, %s5
  loop: start=0, step=1, limit=4
  $region2: #{conv_block_forward.3} parent=0 // loop_pre_header
    _
  $region3: #{conv_block_forward.3} parent=0 // loop_header
    %s10 = sphi 0, %s14
    %p11 = scmp.ge.s32.totalorder %s10, 4
    %s17 = sphi 0, %s29
    %s18 = sphi 0, %s25
    %s19 = sphi 0, %s17
    %s20 = sphi 0, %s18
    %s21 = sphi 0, %s19
    %s22 = sphi 0, %s20
    %s34 = sphi 0, %s36
    %s37 = sphi 0, %s34
    %s38 = sphi 0, %s37
    %s54 = sphi 0, %s38
    %s58 = sphi 0, %s58
    %s60 = sphi 0, %s58
    %s61 = sphi 0, %s60
    %s75 = sphi 0, %s61
    %s79 = sphi 0, %s79
    %s81 = sphi 0, %s79
    %s82 = sphi 0, %s81
    %s96 = sphi 0, %s82
    %s100 = sphi 0, %s100
    %s102 = sphi 0, %s100
    %s103 = sphi 0, %s102
    %s117 = sphi 0, %s103
    %s125 = sphi 0, %s127
    %s128 = sphi 0, %s125
    %s129 = sphi 0, %s128
    %s145 = sphi 0, %s129
  $region4: #{conv_block_forward.3} parent=0 // loop_header_branch
    %13 = sbr.rel (%p11) target = $region8
  $region5: #{conv_block_forward.3} parent=0 // loop_body
    %s15 = ssub.s32 %s10, 1
    %s16 = ssub.s32 %s10, 2
    %s23 = sadd.s32 1, %s18
    %p24 = scmp.ge.s32.totalorder %s23, 1
    %s25 = scalar_select %p24, 0, %s23
    %s26 = sadd.s32 1, %s17
    %s27 = scalar_select %p24, %s26, %s17
    %p28 = scmp.ge.s32.totalorder %s27, 2
    %s29 = scalar_select %p28, 0, %s27
    %s30 = ssub.s32 %s17, %s29
    %s31 = ssub.s32 %s18, %s25
    %s32 = sor.u32 %s30, %s31
    %p33 = scmp.eq.s32.totalorder %s32, 0
    %s35 = sadd.s32 %s34, 1
    %s36 = scalar_select %p33, %s34, %s35
    %p39 = pneg %p33
    %p40 = scmp.eq.s32.totalorder %s10, 1
    %p41 = por %p39, %p40
    %p42 = scmp.ne.s32.totalorder %s34, %s37
    %p43 = scmp.eq.s32.totalorder %s10, 0
    %p44 = por %p42, %p43
    %p45 = scmp.ne.s32.totalorder %s34, %s37
    %p46 = scmp.eq.s32.totalorder %s15, 1
    %p47 = por %p45, %p46
    %p48 = scmp.ne.s32.totalorder %s37, %s38
    %p49 = scmp.eq.s32.totalorder %s15, 0
    %p50 = por %p48, %p49
    %p51 = scmp.ne.s32.totalorder %s37, %s38
    %p52 = scmp.eq.s32.totalorder %s16, 1
    %p53 = por %p51, %p52
    %p55 = scmp.ne.s32.totalorder %s38, %s54
    %p56 = scmp.eq.s32.totalorder %s16, 0
    %p57 = por %p55, %p56
    %s59 = sadd.s32 %s58, 1
    %p62 = scmp.eq.s32.totalorder %s10, 1
    %p63 = scmp.ne.s32.totalorder %s58, %s60
    %p64 = scmp.eq.s32.totalorder %s10, 0
    %p65 = por %p63, %p64
    %p66 = scmp.ne.s32.totalorder %s58, %s60
    %p67 = scmp.eq.s32.totalorder %s15, 1
    %p68 = por %p66, %p67
    %p69 = scmp.ne.s32.totalorder %s60, %s61
    %p70 = scmp.eq.s32.totalorder %s15, 0
    %p71 = por %p69, %p70
    %p72 = scmp.ne.s32.totalorder %s60, %s61
    %p73 = scmp.eq.s32.totalorder %s16, 1
    %p74 = por %p72, %p73
    %p76 = scmp.ne.s32.totalorder %s61, %s75
    %p77 = scmp.eq.s32.totalorder %s16, 0
    %p78 = por %p76, %p77
    %s80 = sadd.s32 %s79, 1
    %p83 = scmp.eq.s32.totalorder %s10, 1
    %p84 = scmp.ne.s32.totalorder %s79, %s81
    %p85 = scmp.eq.s32.totalorder %s10, 0
    %p86 = por %p84, %p85
    %p87 = scmp.ne.s32.totalorder %s79, %s81
    %p88 = scmp.eq.s32.totalorder %s15, 1
    %p89 = por %p87, %p88
    %p90 = scmp.ne.s32.totalorder %s81, %s82
    %p91 = scmp.eq.s32.totalorder %s15, 0
    %p92 = por %p90, %p91
    %p93 = scmp.ne.s32.totalorder %s81, %s82
    %p94 = scmp.eq.s32.totalorder %s16, 1
    %p95 = por %p93, %p94
    %p97 = scmp.ne.s32.totalorder %s82, %s96
    %p98 = scmp.eq.s32.totalorder %s16, 0
    %p99 = por %p97, %p98
    %s101 = sadd.s32 %s100, 1
    %p104 = scmp.eq.s32.totalorder %s10, 1
    %p105 = scmp.ne.s32.totalorder %s100, %s102
    %p106 = scmp.eq.s32.totalorder %s10, 0
    %p107 = por %p105, %p106
    %p108 = scmp.ne.s32.totalorder %s100, %s102
    %p109 = scmp.eq.s32.totalorder %s15, 1
    %p110 = por %p108, %p109
    %p111 = scmp.ne.s32.totalorder %s102, %s103
    %p112 = scmp.eq.s32.totalorder %s15, 0
    %p113 = por %p111, %p112
    %p114 = scmp.ne.s32.totalorder %s102, %s103
    %p115 = scmp.eq.s32.totalorder %s16, 1
    %p116 = por %p114, %p115
    %p118 = scmp.ne.s32.totalorder %s103, %s117
    %p119 = scmp.eq.s32.totalorder %s16, 0
    %p120 = por %p118, %p119
    %s121 = ssub.s32 %s17, %s29
    %s122 = ssub.s32 %s18, %s25
    %s123 = sor.u32 %s121, %s122
    %p124 = scmp.eq.s32.totalorder %s123, 0
    %s126 = sadd.s32 %s125, 1
    %s127 = scalar_select %p124, %s125, %s126
    %p130 = pneg %p124
    %p131 = scmp.eq.s32.totalorder %s10, 1
    %p132 = por %p130, %p131
    %p133 = scmp.ne.s32.totalorder %s125, %s128
    %p134 = scmp.eq.s32.totalorder %s10, 0
    %p135 = por %p133, %p134
    %p136 = scmp.ne.s32.totalorder %s125, %s128
    %p137 = scmp.eq.s32.totalorder %s15, 1
    %p138 = por %p136, %p137
    %p139 = scmp.ne.s32.totalorder %s128, %s129
    %p140 = scmp.eq.s32.totalorder %s15, 0
    %p141 = por %p139, %p140
    %p142 = scmp.ne.s32.totalorder %s128, %s129
    %p143 = scmp.eq.s32.totalorder %s16, 1
    %p144 = por %p142, %p143
    %p146 = scmp.ne.s32.totalorder %s129, %s145
    %p147 = scmp.eq.s32.totalorder %s16, 0
    %p148 = por %p146, %p147
    %p149 = scmp.le.s32.totalorder 1, %s10
    %p150 = scmp.lt.s32.totalorder %s10, 3
    %p151 = pnand %p149, %p150
    %p152 = pneg %p151
    // Predicated region
    $region9: #{conv_block_forward.3} parent=5 // pred_check
      _
    $region10: #{conv_block_forward.3} parent=5 // pred_check_branch
      %154 = sbr.rel (%p151) target = $region12
    $region11: #{conv_block_forward.3} parent=5 // pred_region
      %s155 = ssub.s32 %s10, 1
      // Predicated region
      $region13: #{conv_block_forward.3} parent=11 // pred_check
        %p156 = pneg %p71
      $region14: #{conv_block_forward.3} parent=11 // pred_check_branch
        %158 = sbr.rel (%p156) target = $region16
      $region15: #{conv_block_forward.3} parent=11 // pred_region
        _
      $region16: #{conv_block_forward.3} parent=11 // pred_fallthru
        _
      // Predicated region
      $region17: #{conv_block_forward.3} parent=11 // pred_check
        %p159 = pneg %p92
      $region18: #{conv_block_forward.3} parent=11 // pred_check_branch
        %161 = sbr.rel (%p159) target = $region20
      $region19: #{conv_block_forward.3} parent=11 // pred_region
        _
      $region20: #{conv_block_forward.3} parent=11 // pred_fallthru
        _
      // Predicated region
      $region21: #{conv_block_forward.3} parent=11 // pred_check
        %p162 = pneg %p113
      $region22: #{conv_block_forward.3} parent=11 // pred_check_branch
        %164 = sbr.rel (%p162) target = $region24
      $region23: #{conv_block_forward.3} parent=11 // pred_region
        _
      $region24: #{conv_block_forward.3} parent=11 // pred_fallthru
        _
    $region12: #{conv_block_forward.3} parent=5 // pred_fallthru
      _
    %p165 = scmp.lt.s32.totalorder %s10, 2
    // Predicated region
    $region25: #{conv_block_forward.3} parent=5 // pred_check
      %p166 = pneg %p165
    $region26: #{conv_block_forward.3} parent=5 // pred_check_branch
      %168 = sbr.rel (%p166) target = $region28
    $region27: #{conv_block_forward.3} parent=5 // pred_region
      // Predicated region
      $region29: #{conv_block_forward.3} parent=27 // pred_check
        %p169 = pneg %p44
      $region30: #{conv_block_forward.3} parent=27 // pred_check_branch
        %171 = sbr.rel (%p169) target = $region32
      $region31: #{conv_block_forward.3} parent=27 // pred_region
        %p172 = scmp.lt.s32.totalorder %s17, 1
        %s173 = scalar_select %p172, %s17, 1
        %p174 = scmp.lt.s32.totalorder %s18, 0
        %s175 = scalar_select %p174, %s18, 0
        %s176 = smul.addr %s175, 42
        %s177 = smul.addr %s173, 42
        %s178 = sadd.s32 %s176, %s177
        %s179 = smul.addr %s178, 4
        %s180 = scalar_lea.vmem %s0, %s179
      $region32: #{conv_block_forward.3} parent=27 // pred_fallthru
        _
    $region28: #{conv_block_forward.3} parent=5 // pred_fallthru
      _
    %p181 = scmp.le.s32.totalorder 1, %s10
    %p182 = scmp.lt.s32.totalorder %s10, 3
    %p183 = pnand %p181, %p182
    %p184 = pneg %p183
    // Predicated region
    $region33: #{conv_block_forward.3} parent=5 // pred_check
      _
    $region34: #{conv_block_forward.3} parent=5 // pred_check_branch
      %186 = sbr.rel (%p183) target = $region36
    $region35: #{conv_block_forward.3} parent=5 // pred_region
      %s187 = ssub.s32 %s10, 1
      %p188 = scmp.lt.s32.totalorder %s19, 1
      %s189 = scalar_select %p188, %s19, 1
      %p190 = scmp.lt.s32.totalorder %s20, 0
      %s191 = scalar_select %p190, %s20, 0
      %s192 = smul.addr %s191, 42
      %s193 = smul.addr %s189, 42
      %s194 = sadd.s32 %s192, %s193
      %s195 = smul.addr %s194, 4
      %s196 = scalar_lea.vmem %s0, %s195
      %p197 = pneg %p50
      %p198 = pneg %p47
      %p199 = pneg %p71
      %p200 = pneg %p68
      %p201 = pneg %p92
      %p202 = pneg %p89
      %p203 = pneg %p113
      %p204 = pneg %p110
      %p205 = pneg %p141
      %p206 = pneg %p138
      %p207 = scmp.lt.s32.totalorder %s19, 1
      %s208 = scalar_select %p207, %s19, 1
      %p209 = scmp.lt.s32.totalorder %s20, 0
      %s210 = scalar_select %p209, %s20, 0
      %s211 = smul.addr %s210, 36
      %s212 = smul.addr %s208, 36
      %s213 = sadd.s32 %s211, %s212
      %s214 = smul.addr %s213, 8
      %s215 = scalar_lea.vmem %s4, %s214
      %p216 = scmp.lt.s32.totalorder %s19, 1
      %s217 = scalar_select %p216, %s19, 1
      %p218 = scmp.lt.s32.totalorder %s20, 0
      %s219 = scalar_select %p218, %s20, 0
      %s220 = smul.addr %s219, 42
      %s221 = smul.addr %s217, 42
      %s222 = sadd.s32 %s220, %s221
      %s223 = smul.addr %s222, 4
      %s224 = scalar_lea.vmem %s0, %s223
      %p225 = scmp.lt.s32.totalorder %s19, 1
      %s226 = scalar_select %p225, %s19, 1
      %p227 = scmp.lt.s32.totalorder %s20, 0
      %s228 = scalar_select %p227, %s20, 0
      %s229 = smul.addr %s228, 36
      %s230 = smul.addr %s226, 36
      %s231 = sadd.s32 %s229, %s230
      %s232 = smul.addr %s231, 8
      %s233 = scalar_lea.vmem %s4, %s232
      %v235 = vld [vmem:[%s224] sm:$0xf]
      %v236 = vld [vmem:[%s224 + $0x4] sm:$0xf]
      %v237 = vld [vmem:[%s224 + $0x8] sm:$0xf]
      %v238 = vld [vmem:[%s224 + $0xc] sm:$0xf]
      %v239 = vld [vmem:[%s224 + $0x10] sm:$0xf]
      %v240 = vld [vmem:[%s224 + $0x14] sm:$0xf]
      %v241 = vld [vmem:[%s224 + $0x18] sm:$0xf]
      %v242 = vld [vmem:[%s224 + $0x1c] sm:$0xf]
      %v243 = vld [vmem:[%s224 + $0x20] sm:$0xf]
      %v244 = vld [vmem:[%s224 + $0x24] sm:$0xf]
      %v245 = vld [vmem:[%s224 + $0x28] sm:$0xf]
      %v246 = vld [vmem:[%s224 + $0x2c] sm:$0xf]
      %v247 = vld [vmem:[%s224 + $0x30] sm:$0xf]
      %v248 = vld [vmem:[%s224 + $0x34] sm:$0xf]
      %v249 = vld [vmem:[%s224 + $0x38] sm:$0xf]
      %v250 = vld [vmem:[%s224 + $0x3c] sm:$0xf]
      %v251 = vld [vmem:[%s224 + $0x40] sm:$0xf]
      %v252 = vld [vmem:[%s224 + $0x44] sm:$0xf]
      %v253 = vld [vmem:[%s224 + $0x48] sm:$0xf]
      %v254 = vld [vmem:[%s224 + $0x4c] sm:$0xf]
      %v255 = vld [vmem:[%s224 + $0x50] sm:$0xf]
      %v256 = vld [vmem:[%s224 + $0x54] sm:$0xf]
      %v257 = vld [vmem:[%s224 + $0x58] sm:$0xf]
      %v258 = vld [vmem:[%s224 + $0x5c] sm:$0xf]
      %v259 = vld [vmem:[%s224 + $0x60] sm:$0xf]
      %v260 = vld [vmem:[%s224 + $0x64] sm:$0xf]
      %v261 = vld [vmem:[%s224 + $0x68] sm:$0xf]
      %v262 = vld [vmem:[%s224 + $0x6c] sm:$0xf]
      %v263 = vld [vmem:[%s224 + $0x70] sm:$0xf]
      %v264 = vld [vmem:[%s224 + $0x74] sm:$0xf]
      %v265 = vld [vmem:[%s224 + $0x78] sm:$0xf]
      %v266 = vld [vmem:[%s224 + $0x7c] sm:$0xf]
      %v267 = vld [vmem:[%s224 + $0x80] sm:$0xf]
      %v268 = vld [vmem:[%s224 + $0x84] sm:$0xf]
      %v269 = vld [vmem:[%s224 + $0x88] sm:$0xf]
      %v270 = vld [vmem:[%s224 + $0x8c] sm:$0xf]
      %v271 = vld [vmem:[%s1] sm:$0xf]
      %v272 = vld [vmem:[%s1 + $0x4] sm:$0xf]
      %v273 = vld [vmem:[%s1 + $0x8] sm:$0xf]
      %v274 = vld [vmem:[%s1 + $0xc] sm:$0xf]
      %v275 = vld [vmem:[%s224 + $0x90] sm:$0x1]
      %s276 = scalar_lea.vmem %s1, 16
      %v277 = vld [vmem:[%s276] sm:$0xf]
      %v278 = vld [vmem:[%s276 + $0x4] sm:$0xf]
      %v279 = vld [vmem:[%s276 + $0x8] sm:$0xf]
      %v280 = vld [vmem:[%s276 + $0xc] sm:$0xf]
      %v318 = vunpack.c.l.b16 %v235
      %v319 = vunpack.c.l.b16 %v236
      %v320 = vunpack.c.l.b16 %v237
      %v321 = vunpack.c.l.b16 %v238
      %v322 = vunpack.c.l.b16 %v239
      %v323 = vunpack.c.l.b16 %v240
      %v324 = vunpack.c.l.b16 %v241
      %v325 = vunpack.c.l.b16 %v242
      %v326 = vunpack.c.l.b16 %v243
      %v327 = vunpack.c.l.b16 %v244
      %v328 = vunpack.c.l.b16 %v245
      %v329 = vunpack.c.l.b16 %v246
      %v330 = vunpack.c.l.b16 %v247
      %v331 = vunpack.c.l.b16 %v248
      %v332 = vunpack.c.l.b16 %v249
      %v333 = vunpack.c.l.b16 %v250
      %v334 = vunpack.c.l.b16 %v251
      %v335 = vunpack.c.l.b16 %v252
      %v336 = vunpack.c.l.b16 %v253
      %v337 = vunpack.c.l.b16 %v254
      %v338 = vunpack.c.l.b16 %v255
      %v339 = vunpack.c.l.b16 %v256
      %v340 = vunpack.c.l.b16 %v257
      %v341 = vunpack.c.l.b16 %v258
      %v342 = vunpack.c.l.b16 %v259
      %v343 = vunpack.c.l.b16 %v260
      %v344 = vunpack.c.l.b16 %v261
      %v345 = vunpack.c.l.b16 %v262
      %v346 = vunpack.c.l.b16 %v263
      %v347 = vunpack.c.l.b16 %v264
      %v348 = vunpack.c.l.b16 %v265
      %v349 = vunpack.c.l.b16 %v266
      %v350 = vunpack.c.l.b16 %v267
      %v351 = vunpack.c.l.b16 %v268
      %v352 = vunpack.c.l.b16 %v269
      %v353 = vunpack.c.l.b16 %v270
      %v354 = vunpack.c.l.b16 %v275
      %v355 = vpack.c.b16 %v319, %v318
      %v356 = vpack.c.b16 %v321, %v320
      %v357 = vpack.c.b16 %v323, %v322
      %v358 = vpack.c.b16 %v325, %v324
      %v359 = vpack.c.b16 %v327, %v326
      %v360 = vpack.c.b16 %v329, %v328
      %v361 = vpack.c.b16 %v331, %v330
      %v362 = vpack.c.b16 %v333, %v332
      %v363 = vpack.c.b16 %v335, %v334
      %v364 = vpack.c.b16 %v337, %v336
      %v365 = vpack.c.b16 %v339, %v338
      %v366 = vpack.c.b16 %v341, %v340
      %v367 = vpack.c.b16 %v343, %v342
      %v368 = vpack.c.b16 %v345, %v344
      %v369 = vpack.c.b16 %v347, %v346
      %v370 = vpack.c.b16 %v349, %v348
      %v371 = vpack.c.b16 %v351, %v350
      %v372 = vpack.c.b16 %v353, %v352
      %v373 = vpack.c.b16 %v354, %v354
      %vm374 = vsmask.f32 7424
      %v376 = vshrl.u32 %v355, 16
      %v378 = vshll.u32 %v355, 16
      %v380 = vrot.slane %v378, 1
      %v381 = vor.u32 %v376, %v380
      %v383 = vshll.u32 %v356, 16
      %v385 = vrot.slane %v383, 1
      %v386 = vsel %vm374, %v381, %v385
      %v387 = vshrl.u32 %v356, 16
      %v389 = vor.u32 %v387, %v385
      %v391 = vshll.u32 %v357, 16
      %v393 = vrot.slane %v391, 1
      %v394 = vsel %vm374, %v389, %v393
      %v395 = vshrl.u32 %v357, 16
      %v397 = vor.u32 %v395, %v393
      %v399 = vshll.u32 %v358, 16
      %v401 = vrot.slane %v399, 1
      %v402 = vsel %vm374, %v397, %v401
      %v403 = vshrl.u32 %v358, 16
      %v405 = vor.u32 %v403, %v401
      %v407 = vshll.u32 %v359, 16
      %v409 = vrot.slane %v407, 1
      %v410 = vsel %vm374, %v405, %v409
      %v411 = vshrl.u32 %v359, 16
      %v413 = vor.u32 %v411, %v409
      %v415 = vshll.u32 %v360, 16
      %v417 = vrot.slane %v415, 1
      %v418 = vsel %vm374, %v413, %v417
      %v419 = vshrl.u32 %v360, 16
      %v421 = vor.u32 %v419, %v417
      %v423 = vshll.u32 %v361, 16
      %v425 = vrot.slane %v423, 1
      %v426 = vsel %vm374, %v421, %v425
      %v427 = vshrl.u32 %v361, 16
      %v429 = vor.u32 %v427, %v425
      %v431 = vshll.u32 %v362, 16
      %v433 = vrot.slane %v431, 1
      %v434 = vsel %vm374, %v429, %v433
      %v435 = vshrl.u32 %v362, 16
      %v437 = vor.u32 %v435, %v433
      %v439 = vshll.u32 %v363, 16
      %v441 = vrot.slane %v439, 1
      %v442 = vsel %vm374, %v437, %v441
      %v443 = vshrl.u32 %v363, 16
      %v445 = vor.u32 %v443, %v441
      %v447 = vshll.u32 %v364, 16
      %v449 = vrot.slane %v447, 1
      %v450 = vsel %vm374, %v445, %v449
      %v451 = vshrl.u32 %v364, 16
      %v453 = vor.u32 %v451, %v449
      %v455 = vshll.u32 %v365, 16
      %v457 = vrot.slane %v455, 1
      %v458 = vsel %vm374, %v453, %v457
      %v459 = vshrl.u32 %v365, 16
      %v461 = vor.u32 %v459, %v457
      %v463 = vshll.u32 %v366, 16
      %v465 = vrot.slane %v463, 1
      %v466 = vsel %vm374, %v461, %v465
      %v467 = vshrl.u32 %v366, 16
      %v469 = vor.u32 %v467, %v465
      %v471 = vshll.u32 %v367, 16
      %v473 = vrot.slane %v471, 1
      %v474 = vsel %vm374, %v469, %v473
      %v475 = vshrl.u32 %v367, 16
      %v477 = vor.u32 %v475, %v473
      %v479 = vshll.u32 %v368, 16
      %v481 = vrot.slane %v479, 1
      %v482 = vsel %vm374, %v477, %v481
      %v483 = vshrl.u32 %v368, 16
      %v485 = vor.u32 %v483, %v481
      %v487 = vshll.u32 %v369, 16
      %v489 = vrot.slane %v487, 1
      %v490 = vsel %vm374, %v485, %v489
      %v491 = vshrl.u32 %v369, 16
      %v493 = vor.u32 %v491, %v489
      %v495 = vshll.u32 %v370, 16
      %v497 = vrot.slane %v495, 1
      %v498 = vsel %vm374, %v493, %v497
      %v499 = vshrl.u32 %v370, 16
      %v501 = vor.u32 %v499, %v497
      %v503 = vshll.u32 %v371, 16
      %v505 = vrot.slane %v503, 1
      %v506 = vsel %vm374, %v501, %v505
      %v507 = vshrl.u32 %v371, 16
      %v509 = vor.u32 %v507, %v505
      %v511 = vshll.u32 %v372, 16
      %v513 = vrot.slane %v511, 1
      %v514 = vsel %vm374, %v509, %v513
      %v515 = vshrl.u32 %v372, 16
      %v517 = vor.u32 %v515, %v513
      %v519 = vshll.u32 %v373, 16
      %v521 = vrot.slane %v519, 1
      %v522 = vsel %vm374, %v517, %v521
      %v527 = vunpack.c.l.b16 %v277
      %v528 = vunpack.c.l.b16 %v278
      %v529 = vunpack.c.l.b16 %v279
      %v530 = vunpack.c.l.b16 %v280
      %v531 = vpack.c.b16 %v528, %v527
      %v532 = vpack.c.b16 %v530, %v529
      %vm535 = vcmask 261120
      %v537 = vsel %vm535, %v386, 0
      %v540 = vsel %vm535, %v394, 0
      %v543 = vsel %vm535, %v402, 0
      %v546 = vsel %vm535, %v410, 0
      %v549 = vsel %vm535, %v418, 0
      %v552 = vsel %vm535, %v426, 0
      %v555 = vsel %vm535, %v434, 0
      %v558 = vsel %vm535, %v442, 0
      %v561 = vsel %vm535, %v450, 0
      %v564 = vsel %vm535, %v458, 0
      %v567 = vsel %vm535, %v466, 0
      %v570 = vsel %vm535, %v474, 0
      %v573 = vsel %vm535, %v482, 0
      %v576 = vsel %vm535, %v490, 0
      %v579 = vsel %vm535, %v498, 0
      %v582 = vsel %vm535, %v506, 0
      %v585 = vsel %vm535, %v514, 0
      %v588 = vsel %vm535, %v522, 0
      %590 = vmatpush.bf16.msra.mxu0 0
      %591 = vmatpush.bf16.msra.mxu0 0
      %592 = vmatpush.bf16.msra.mxu0 0
      %593 = vmatpush.bf16.msra.mxu0 0
      %594 = vmatpush.bf16.msra.mxu0 0
      %595 = vmatpush.bf16.msra.mxu0 0
      %596 = vmatpush.bf16.msra.mxu0 %v532
      %597 = vmatpush.bf16.msra.mxu0 %v531
      %598 = vmatmul.bf16.gmra.mxu0 %v537
      %v599 = vpop.f32.mrf.mxu0
      %v600 = vadd.f32 0.0, %v599
      %v601 = vpop.f32.mrf.mxu0
      %v602 = vadd.f32 0.0, %v601
      %603 = vmatmul.bf16.gmra.mxu0 %v540
      %v604 = vpop.f32.mrf.mxu0
      %v605 = vadd.f32 0.0, %v604
      %v606 = vpop.f32.mrf.mxu0
      %v607 = vadd.f32 0.0, %v606
      %608 = vmatmul.bf16.gmra.mxu0 %v543
      %v609 = vpop.f32.mrf.mxu0
      %v610 = vadd.f32 0.0, %v609
      %v611 = vpop.f32.mrf.mxu0
      %v612 = vadd.f32 0.0, %v611
      %613 = vmatmul.bf16.gmra.mxu0 %v546
      %v614 = vpop.f32.mrf.mxu0
      %v615 = vadd.f32 0.0, %v614
      %v616 = vpop.f32.mrf.mxu0
      %v617 = vadd.f32 0.0, %v616
      %618 = vmatmul.bf16.gmra.mxu0 %v549
      %v619 = vpop.f32.mrf.mxu0
      %v620 = vadd.f32 0.0, %v619
      %v621 = vpop.f32.mrf.mxu0
      %v622 = vadd.f32 0.0, %v621
      %623 = vmatmul.bf16.gmra.mxu0 %v552
      %v624 = vpop.f32.mrf.mxu0
      %v625 = vadd.f32 0.0, %v624
      %v626 = vpop.f32.mrf.mxu0
      %v627 = vadd.f32 0.0, %v626
      %628 = vmatmul.bf16.gmra.mxu0 %v555
      %v629 = vpop.f32.mrf.mxu0
      %v630 = vadd.f32 0.0, %v629
      %v631 = vpop.f32.mrf.mxu0
      %v632 = vadd.f32 0.0, %v631
      %633 = vmatmul.bf16.gmra.mxu0 %v558
      %v634 = vpop.f32.mrf.mxu0
      %v635 = vadd.f32 0.0, %v634
      %v636 = vpop.f32.mrf.mxu0
      %v637 = vadd.f32 0.0, %v636
      %638 = vmatmul.bf16.gmra.mxu0 %v561
      %v639 = vpop.f32.mrf.mxu0
      %v640 = vadd.f32 0.0, %v639
      %v641 = vpop.f32.mrf.mxu0
      %v642 = vadd.f32 0.0, %v641
      %643 = vmatmul.bf16.gmra.mxu0 %v564
      %v644 = vpop.f32.mrf.mxu0
      %v645 = vadd.f32 0.0, %v644
      %v646 = vpop.f32.mrf.mxu0
      %v647 = vadd.f32 0.0, %v646
      %648 = vmatmul.bf16.gmra.mxu0 %v567
      %v649 = vpop.f32.mrf.mxu0
      %v650 = vadd.f32 0.0, %v649
      %v651 = vpop.f32.mrf.mxu0
      %v652 = vadd.f32 0.0, %v651
      %653 = vmatmul.bf16.gmra.mxu0 %v570
      %v654 = vpop.f32.mrf.mxu0
      %v655 = vadd.f32 0.0, %v654
      %v656 = vpop.f32.mrf.mxu0
      %v657 = vadd.f32 0.0, %v656
      %658 = vmatmul.bf16.gmra.mxu0 %v573
      %v659 = vpop.f32.mrf.mxu0
      %v660 = vadd.f32 0.0, %v659
      %v661 = vpop.f32.mrf.mxu0
      %v662 = vadd.f32 0.0, %v661
      %663 = vmatmul.bf16.gmra.mxu0 %v576
      %v664 = vpop.f32.mrf.mxu0
      %v665 = vadd.f32 0.0, %v664
      %v666 = vpop.f32.mrf.mxu0
      %v667 = vadd.f32 0.0, %v666
      %668 = vmatmul.bf16.gmra.mxu0 %v579
      %v669 = vpop.f32.mrf.mxu0
      %v670 = vadd.f32 0.0, %v669
      %v671 = vpop.f32.mrf.mxu0
      %v672 = vadd.f32 0.0, %v671
      %673 = vmatmul.bf16.gmra.mxu0 %v582
      %v674 = vpop.f32.mrf.mxu0
      %v675 = vadd.f32 0.0, %v674
      %v676 = vpop.f32.mrf.mxu0
      %v677 = vadd.f32 0.0, %v676
      %678 = vmatmul.bf16.gmra.mxu0 %v585
      %v679 = vpop.f32.mrf.mxu0
      %v680 = vadd.f32 0.0, %v679
      %v681 = vpop.f32.mrf.mxu0
      %v682 = vadd.f32 0.0, %v681
      %683 = vmatmul.bf16.gmra.mxu0 %v588
      %v684 = vpop.f32.mrf.mxu0
      %v685 = vadd.f32 0.0, %v684
      %v686 = vpop.f32.mrf.mxu0
      %v687 = vadd.f32 0.0, %v686
      %688 = vdwg.mxu0
      %v693 = vunpack.c.l.b16 %v271
      %v694 = vunpack.c.l.b16 %v272
      %v695 = vunpack.c.l.b16 %v273
      %v696 = vunpack.c.l.b16 %v274
      %v697 = vpack.c.b16 %v694, %v693
      %v698 = vpack.c.b16 %v696, %v695
      %v701 = vsel %vm535, %v355, 0
      %v703 = vsel %vm535, %v356, 0
      %v705 = vsel %vm535, %v357, 0
      %v707 = vsel %vm535, %v358, 0
      %v709 = vsel %vm535, %v359, 0
      %v711 = vsel %vm535, %v360, 0
      %v713 = vsel %vm535, %v361, 0
      %v715 = vsel %vm535, %v362, 0
      %v717 = vsel %vm535, %v363, 0
      %v719 = vsel %vm535, %v364, 0
      %v721 = vsel %vm535, %v365, 0
      %v723 = vsel %vm535, %v366, 0
      %v725 = vsel %vm535, %v367, 0
      %v727 = vsel %vm535, %v368, 0
      %v729 = vsel %vm535, %v369, 0
      %v731 = vsel %vm535, %v370, 0
      %v733 = vsel %vm535, %v371, 0
      %v735 = vsel %vm535, %v372, 0
      %737 = vmatpush.bf16.msra.mxu0 0
      %738 = vmatpush.bf16.msra.mxu0 0
      %739 = vmatpush.bf16.msra.mxu0 0
      %740 = vmatpush.bf16.msra.mxu0 0
      %741 = vmatpush.bf16.msra.mxu0 0
      %742 = vmatpush.bf16.msra.mxu0 0
      %743 = vmatpush.bf16.msra.mxu0 %v698
      %744 = vmatpush.bf16.msra.mxu0 %v697
      %745 = vmatmul.bf16.gmra.mxu0 %v701
      %v746 = vpop.f32.mrf.mxu0
      %v747 = vadd.f32 %v600, %v746
      %v748 = vpop.f32.mrf.mxu0
      %v749 = vadd.f32 %v602, %v748
      %750 = vmatmul.bf16.gmra.mxu0 %v703
      %v751 = vpop.f32.mrf.mxu0
      %v752 = vadd.f32 %v605, %v751
      %v753 = vpop.f32.mrf.mxu0
      %v754 = vadd.f32 %v607, %v753
      %755 = vmatmul.bf16.gmra.mxu0 %v705
      %v756 = vpop.f32.mrf.mxu0
      %v757 = vadd.f32 %v610, %v756
      %v758 = vpop.f32.mrf.mxu0
      %v759 = vadd.f32 %v612, %v758
      %760 = vmatmul.bf16.gmra.mxu0 %v707
      %v761 = vpop.f32.mrf.mxu0
      %v762 = vadd.f32 %v615, %v761
      %v763 = vpop.f32.mrf.mxu0
      %v764 = vadd.f32 %v617, %v763
      %765 = vmatmul.bf16.gmra.mxu0 %v709
      %v766 = vpop.f32.mrf.mxu0
      %v767 = vadd.f32 %v620, %v766
      %v768 = vpop.f32.mrf.mxu0
      %v769 = vadd.f32 %v622, %v768
      %770 = vmatmul.bf16.gmra.mxu0 %v711
      %v771 = vpop.f32.mrf.mxu0
      %v772 = vadd.f32 %v625, %v771
      %v773 = vpop.f32.mrf.mxu0
      %v774 = vadd.f32 %v627, %v773
      %775 = vmatmul.bf16.gmra.mxu0 %v713
      %v776 = vpop.f32.mrf.mxu0
      %v777 = vadd.f32 %v630, %v776
      %v778 = vpop.f32.mrf.mxu0
      %v779 = vadd.f32 %v632, %v778
      %780 = vmatmul.bf16.gmra.mxu0 %v715
      %v781 = vpop.f32.mrf.mxu0
      %v782 = vadd.f32 %v635, %v781
      %v783 = vpop.f32.mrf.mxu0
      %v784 = vadd.f32 %v637, %v783
      %785 = vmatmul.bf16.gmra.mxu0 %v717
      %v786 = vpop.f32.mrf.mxu0
      %v787 = vadd.f32 %v640, %v786
      %v788 = vpop.f32.mrf.mxu0
      %v789 = vadd.f32 %v642, %v788
      %790 = vmatmul.bf16.gmra.mxu0 %v719
      %v791 = vpop.f32.mrf.mxu0
      %v792 = vadd.f32 %v645, %v791
      %v793 = vpop.f32.mrf.mxu0
      %v794 = vadd.f32 %v647, %v793
      %795 = vmatmul.bf16.gmra.mxu0 %v721
      %v796 = vpop.f32.mrf.mxu0
      %v797 = vadd.f32 %v650, %v796
      %v798 = vpop.f32.mrf.mxu0
      %v799 = vadd.f32 %v652, %v798
      %800 = vmatmul.bf16.gmra.mxu0 %v723
      %v801 = vpop.f32.mrf.mxu0
      %v802 = vadd.f32 %v655, %v801
      %v803 = vpop.f32.mrf.mxu0
      %v804 = vadd.f32 %v657, %v803
      %805 = vmatmul.bf16.gmra.mxu0 %v725
      %v806 = vpop.f32.mrf.mxu0
      %v807 = vadd.f32 %v660, %v806
      %v808 = vpop.f32.mrf.mxu0
      %v809 = vadd.f32 %v662, %v808
      %810 = vmatmul.bf16.gmra.mxu0 %v727
      %v811 = vpop.f32.mrf.mxu0
      %v812 = vadd.f32 %v665, %v811
      %v813 = vpop.f32.mrf.mxu0
      %v814 = vadd.f32 %v667, %v813
      %815 = vmatmul.bf16.gmra.mxu0 %v729
      %v816 = vpop.f32.mrf.mxu0
      %v817 = vadd.f32 %v670, %v816
      %v818 = vpop.f32.mrf.mxu0
      %v819 = vadd.f32 %v672, %v818
      %820 = vmatmul.bf16.gmra.mxu0 %v731
      %v821 = vpop.f32.mrf.mxu0
      %v822 = vadd.f32 %v675, %v821
      %v823 = vpop.f32.mrf.mxu0
      %v824 = vadd.f32 %v677, %v823
      %825 = vmatmul.bf16.gmra.mxu0 %v733
      %v826 = vpop.f32.mrf.mxu0
      %v827 = vadd.f32 %v680, %v826
      %v828 = vpop.f32.mrf.mxu0
      %v829 = vadd.f32 %v682, %v828
      %830 = vmatmul.bf16.gmra.mxu0 %v735
      %v831 = vpop.f32.mrf.mxu0
      %v832 = vadd.f32 %v685, %v831
      %v833 = vpop.f32.mrf.mxu0
      %v834 = vadd.f32 %v687, %v833
      %835 = vdwg.mxu0
      %v836 = vld [vmem:[%s224] sm:$0xe]
      %s837 = scalar_lea.vmem %s1, 32
      %v838 = vld [vmem:[%s837] sm:$0xf]
      %v839 = vld [vmem:[%s837 + $0x4] sm:$0xf]
      %v840 = vld [vmem:[%s837 + $0x8] sm:$0xf]
      %v841 = vld [vmem:[%s837 + $0xc] sm:$0xf]
      %v843 = vunpack.c.l.b16 %v836
      %v844 = vpack.c.b16 %v319, %v843
      %vm845 = vcmask 1046528
      %v846 = vrot.slane %v844, 1
      %v847 = vrot.slane %v356, 1
      %v848 = vsel %vm845, %v846, %v847
      %v849 = vrot.slane %v357, 1
      %v850 = vsel %vm845, %v847, %v849
      %v851 = vrot.slane %v358, 1
      %v852 = vsel %vm845, %v849, %v851
      %v853 = vrot.slane %v359, 1
      %v854 = vsel %vm845, %v851, %v853
      %v855 = vrot.slane %v360, 1
      %v856 = vsel %vm845, %v853, %v855
      %v857 = vrot.slane %v361, 1
      %v858 = vsel %vm845, %v855, %v857
      %v859 = vrot.slane %v362, 1
      %v860 = vsel %vm845, %v857, %v859
      %v861 = vrot.slane %v363, 1
      %v862 = vsel %vm845, %v859, %v861
      %v863 = vrot.slane %v364, 1
      %v864 = vsel %vm845, %v861, %v863
      %v865 = vrot.slane %v365, 1
      %v866 = vsel %vm845, %v863, %v865
      %v867 = vrot.slane %v366, 1
      %v868 = vsel %vm845, %v865, %v867
      %v869 = vrot.slane %v367, 1
      %v870 = vsel %vm845, %v867, %v869
      %v871 = vrot.slane %v368, 1
      %v872 = vsel %vm845, %v869, %v871
      %v873 = vrot.slane %v369, 1
      %v874 = vsel %vm845, %v871, %v873
      %v875 = vrot.slane %v370, 1
      %v876 = vsel %vm845, %v873, %v875
      %v877 = vrot.slane %v371, 1
      %v878 = vsel %vm845, %v875, %v877
      %v879 = vrot.slane %v372, 1
      %v880 = vsel %vm845, %v877, %v879
      %v881 = vrot.slane %v373, 1
      %v882 = vsel %vm845, %v879, %v881
      %v887 = vunpack.c.l.b16 %v838
      %v888 = vunpack.c.l.b16 %v839
      %v889 = vunpack.c.l.b16 %v840
      %v890 = vunpack.c.l.b16 %v841
      %v891 = vpack.c.b16 %v888, %v887
      %v892 = vpack.c.b16 %v890, %v889
      %v896 = vsel %vm535, %v848, 0
      %v899 = vsel %vm535, %v850, 0
      %v902 = vsel %vm535, %v852, 0
      %v905 = vsel %vm535, %v854, 0
      %v908 = vsel %vm535, %v856, 0
      %v911 = vsel %vm535, %v858, 0
      %v914 = vsel %vm535, %v860, 0
      %v917 = vsel %vm535, %v862, 0
      %v920 = vsel %vm535, %v864, 0
      %v923 = vsel %vm535, %v866, 0
      %v926 = vsel %vm535, %v868, 0
      %v929 = vsel %vm535, %v870, 0
      %v932 = vsel %vm535, %v872, 0
      %v935 = vsel %vm535, %v874, 0
      %v938 = vsel %vm535, %v876, 0
      %v941 = vsel %vm535, %v878, 0
      %v944 = vsel %vm535, %v880, 0
      %v947 = vsel %vm535, %v882, 0
      %949 = vmatpush.bf16.msra.mxu0 0
      %950 = vmatpush.bf16.msra.mxu0 0
      %951 = vmatpush.bf16.msra.mxu0 0
      %952 = vmatpush.bf16.msra.mxu0 0
      %953 = vmatpush.bf16.msra.mxu0 0
      %954 = vmatpush.bf16.msra.mxu0 0
      %955 = vmatpush.bf16.msra.mxu0 %v892
      %956 = vmatpush.bf16.msra.mxu0 %v891
      %957 = vmatmul.bf16.gmra.mxu0 %v896
      %v958 = vpop.f32.mrf.mxu0
      %v959 = vadd.f32 0.0, %v958
      %v960 = vpop.f32.mrf.mxu0
      %v961 = vadd.f32 0.0, %v960
      %962 = vmatmul.bf16.gmra.mxu0 %v899
      %v963 = vpop.f32.mrf.mxu0
      %v964 = vadd.f32 0.0, %v963
      %v965 = vpop.f32.mrf.mxu0
      %v966 = vadd.f32 0.0, %v965
      %967 = vmatmul.bf16.gmra.mxu0 %v902
      %v968 = vpop.f32.mrf.mxu0
      %v969 = vadd.f32 0.0, %v968
      %v970 = vpop.f32.mrf.mxu0
      %v971 = vadd.f32 0.0, %v970
      %972 = vmatmul.bf16.gmra.mxu0 %v905
      %v973 = vpop.f32.mrf.mxu0
      %v974 = vadd.f32 0.0, %v973
      %v975 = vpop.f32.mrf.mxu0
      %v976 = vadd.f32 0.0, %v975
      %977 = vmatmul.bf16.gmra.mxu0 %v908
      %v978 = vpop.f32.mrf.mxu0
      %v979 = vadd.f32 0.0, %v978
      %v980 = vpop.f32.mrf.mxu0
      %v981 = vadd.f32 0.0, %v980
      %982 = vmatmul.bf16.gmra.mxu0 %v911
      %v983 = vpop.f32.mrf.mxu0
      %v984 = vadd.f32 0.0, %v983
      %v985 = vpop.f32.mrf.mxu0
      %v986 = vadd.f32 0.0, %v985
      %987 = vmatmul.bf16.gmra.mxu0 %v914
      %v988 = vpop.f32.mrf.mxu0
      %v989 = vadd.f32 0.0, %v988
      %v990 = vpop.f32.mrf.mxu0
      %v991 = vadd.f32 0.0, %v990
      %992 = vmatmul.bf16.gmra.mxu0 %v917
      %v993 = vpop.f32.mrf.mxu0
      %v994 = vadd.f32 0.0, %v993
      %v995 = vpop.f32.mrf.mxu0
      %v996 = vadd.f32 0.0, %v995
      %997 = vmatmul.bf16.gmra.mxu0 %v920
      %v998 = vpop.f32.mrf.mxu0
      %v999 = vadd.f32 0.0, %v998
      %v1000 = vpop.f32.mrf.mxu0
      %v1001 = vadd.f32 0.0, %v1000
      %1002 = vmatmul.bf16.gmra.mxu0 %v923
      %v1003 = vpop.f32.mrf.mxu0
      %v1004 = vadd.f32 0.0, %v1003
      %v1005 = vpop.f32.mrf.mxu0
      %v1006 = vadd.f32 0.0, %v1005
      %1007 = vmatmul.bf16.gmra.mxu0 %v926
      %v1008 = vpop.f32.mrf.mxu0
      %v1009 = vadd.f32 0.0, %v1008
      %v1010 = vpop.f32.mrf.mxu0
      %v1011 = vadd.f32 0.0, %v1010
      %1012 = vmatmul.bf16.gmra.mxu0 %v929
      %v1013 = vpop.f32.mrf.mxu0
      %v1014 = vadd.f32 0.0, %v1013
      %v1015 = vpop.f32.mrf.mxu0
      %v1016 = vadd.f32 0.0, %v1015
      %1017 = vmatmul.bf16.gmra.mxu0 %v932
      %v1018 = vpop.f32.mrf.mxu0
      %v1019 = vadd.f32 0.0, %v1018
      %v1020 = vpop.f32.mrf.mxu0
      %v1021 = vadd.f32 0.0, %v1020
      %1022 = vmatmul.bf16.gmra.mxu0 %v935
      %v1023 = vpop.f32.mrf.mxu0
      %v1024 = vadd.f32 0.0, %v1023
      %v1025 = vpop.f32.mrf.mxu0
      %v1026 = vadd.f32 0.0, %v1025
      %1027 = vmatmul.bf16.gmra.mxu0 %v938
      %v1028 = vpop.f32.mrf.mxu0
      %v1029 = vadd.f32 0.0, %v1028
      %v1030 = vpop.f32.mrf.mxu0
      %v1031 = vadd.f32 0.0, %v1030
      %1032 = vmatmul.bf16.gmra.mxu0 %v941
      %v1033 = vpop.f32.mrf.mxu0
      %v1034 = vadd.f32 0.0, %v1033
      %v1035 = vpop.f32.mrf.mxu0
      %v1036 = vadd.f32 0.0, %v1035
      %1037 = vmatmul.bf16.gmra.mxu0 %v944
      %v1038 = vpop.f32.mrf.mxu0
      %v1039 = vadd.f32 0.0, %v1038
      %v1040 = vpop.f32.mrf.mxu0
      %v1041 = vadd.f32 0.0, %v1040
      %1042 = vmatmul.bf16.gmra.mxu0 %v947
      %v1043 = vpop.f32.mrf.mxu0
      %v1044 = vadd.f32 0.0, %v1043
      %v1045 = vpop.f32.mrf.mxu0
      %v1046 = vadd.f32 0.0, %v1045
      %1047 = vdwg.mxu0
      %v1048 = vadd.f32 %v747, %v959
      %v1049 = vadd.f32 %v749, %v961
      %v1050 = vadd.f32 %v752, %v964
      %v1051 = vadd.f32 %v754, %v966
      %v1052 = vadd.f32 %v757, %v969
      %v1053 = vadd.f32 %v759, %v971
      %v1054 = vadd.f32 %v762, %v974
      %v1055 = vadd.f32 %v764, %v976
      %v1056 = vadd.f32 %v767, %v979
      %v1057 = vadd.f32 %v769, %v981
      %v1058 = vadd.f32 %v772, %v984
      %v1059 = vadd.f32 %v774, %v986
      %v1060 = vadd.f32 %v777, %v989
      %v1061 = vadd.f32 %v779, %v991
      %v1062 = vadd.f32 %v782, %v994
      %v1063 = vadd.f32 %v784, %v996
      %v1064 = vadd.f32 %v787, %v999
      %v1065 = vadd.f32 %v789, %v1001
      %v1066 = vadd.f32 %v792, %v1004
      %v1067 = vadd.f32 %v794, %v1006
      %v1068 = vadd.f32 %v797, %v1009
      %v1069 = vadd.f32 %v799, %v1011
      %v1070 = vadd.f32 %v802, %v1014
      %v1071 = vadd.f32 %v804, %v1016
      %v1072 = vadd.f32 %v807, %v1019
      %v1073 = vadd.f32 %v809, %v1021
      %v1074 = vadd.f32 %v812, %v1024
      %v1075 = vadd.f32 %v814, %v1026
      %v1076 = vadd.f32 %v817, %v1029
      %v1077 = vadd.f32 %v819, %v1031
      %v1078 = vadd.f32 %v822, %v1034
      %v1079 = vadd.f32 %v824, %v1036
      %v1080 = vadd.f32 %v827, %v1039
      %v1081 = vadd.f32 %v829, %v1041
      %v1082 = vadd.f32 %v832, %v1044
      %v1083 = vadd.f32 %v834, %v1046
      %v1084 = vld [vmem:[%s224 + $0x8] sm:$0xe]
      %v1085 = vld [vmem:[%s224 + $0xc] sm:$0xf]
      %v1086 = vld [vmem:[%s224 + $0x10] sm:$0xf]
      %v1087 = vld [vmem:[%s224 + $0x14] sm:$0xf]
      %v1088 = vld [vmem:[%s224 + $0x18] sm:$0xf]
      %v1089 = vld [vmem:[%s224 + $0x1c] sm:$0xf]
      %v1090 = vld [vmem:[%s224 + $0x20] sm:$0xf]
      %v1091 = vld [vmem:[%s224 + $0x24] sm:$0xf]
      %v1092 = vld [vmem:[%s224 + $0x28] sm:$0xf]
      %v1093 = vld [vmem:[%s224 + $0x2c] sm:$0xf]
      %v1094 = vld [vmem:[%s224 + $0x30] sm:$0xf]
      %v1095 = vld [vmem:[%s224 + $0x34] sm:$0xf]
      %v1096 = vld [vmem:[%s224 + $0x38] sm:$0xf]
      %v1097 = vld [vmem:[%s224 + $0x3c] sm:$0xf]
      %v1098 = vld [vmem:[%s224 + $0x40] sm:$0xf]
      %v1099 = vld [vmem:[%s224 + $0x44] sm:$0xf]
      %v1100 = vld [vmem:[%s224 + $0x48] sm:$0xf]
      %v1101 = vld [vmem:[%s224 + $0x4c] sm:$0xf]
      %v1102 = vld [vmem:[%s224 + $0x50] sm:$0xf]
      %v1103 = vld [vmem:[%s224 + $0x54] sm:$0xf]
      %v1104 = vld [vmem:[%s224 + $0x58] sm:$0xf]
      %v1105 = vld [vmem:[%s224 + $0x5c] sm:$0xf]
      %v1106 = vld [vmem:[%s224 + $0x60] sm:$0xf]
      %v1107 = vld [vmem:[%s224 + $0x64] sm:$0xf]
      %v1108 = vld [vmem:[%s224 + $0x68] sm:$0xf]
      %v1109 = vld [vmem:[%s224 + $0x6c] sm:$0xf]
      %v1110 = vld [vmem:[%s224 + $0x70] sm:$0xf]
      %v1111 = vld [vmem:[%s224 + $0x74] sm:$0xf]
      %v1112 = vld [vmem:[%s224 + $0x78] sm:$0xf]
      %v1113 = vld [vmem:[%s224 + $0x7c] sm:$0xf]
      %v1114 = vld [vmem:[%s224 + $0x80] sm:$0xf]
      %v1115 = vld [vmem:[%s224 + $0x84] sm:$0xf]
      %v1116 = vld [vmem:[%s224 + $0x88] sm:$0xf]
      %v1117 = vld [vmem:[%s224 + $0x8c] sm:$0xf]
      %v1118 = vld [vmem:[%s224 + $0x90] sm:$0xf]
      %v1119 = vld [vmem:[%s224 + $0x94] sm:$0xf]
      %v1120 = vld [vmem:[%s224 + $0x98] sm:$0x1]
      %s1121 = scalar_lea.vmem %s1, 48
      %v1122 = vld [vmem:[%s1121] sm:$0xf]
      %v1123 = vld [vmem:[%s1121 + $0x4] sm:$0xf]
      %v1124 = vld [vmem:[%s1121 + $0x8] sm:$0xf]
      %v1125 = vld [vmem:[%s1121 + $0xc] sm:$0xf]
      %v1163 = vunpack.c.l.b16 %v1084
      %v1164 = vunpack.c.l.b16 %v1085
      %v1165 = vunpack.c.l.b16 %v1086
      %v1166 = vunpack.c.l.b16 %v1087
      %v1167 = vunpack.c.l.b16 %v1088
      %v1168 = vunpack.c.l.b16 %v1089
      %v1169 = vunpack.c.l.b16 %v1090
      %v1170 = vunpack.c.l.b16 %v1091
      %v1171 = vunpack.c.l.b16 %v1092
      %v1172 = vunpack.c.l.b16 %v1093
      %v1173 = vunpack.c.l.b16 %v1094
      %v1174 = vunpack.c.l.b16 %v1095
      %v1175 = vunpack.c.l.b16 %v1096
      %v1176 = vunpack.c.l.b16 %v1097
      %v1177 = vunpack.c.l.b16 %v1098
      %v1178 = vunpack.c.l.b16 %v1099
      %v1179 = vunpack.c.l.b16 %v1100
      %v1180 = vunpack.c.l.b16 %v1101
      %v1181 = vunpack.c.l.b16 %v1102
      %v1182 = vunpack.c.l.b16 %v1103
      %v1183 = vunpack.c.l.b16 %v1104
      %v1184 = vunpack.c.l.b16 %v1105
      %v1185 = vunpack.c.l.b16 %v1106
      %v1186 = vunpack.c.l.b16 %v1107
      %v1187 = vunpack.c.l.b16 %v1108
      %v1188 = vunpack.c.l.b16 %v1109
      %v1189 = vunpack.c.l.b16 %v1110
      %v1190 = vunpack.c.l.b16 %v1111
      %v1191 = vunpack.c.l.b16 %v1112
      %v1192 = vunpack.c.l.b16 %v1113
      %v1193 = vunpack.c.l.b16 %v1114
      %v1194 = vunpack.c.l.b16 %v1115
      %v1195 = vunpack.c.l.b16 %v1116
      %v1196 = vunpack.c.l.b16 %v1117
      %v1197 = vunpack.c.l.b16 %v1118
      %v1198 = vunpack.c.l.b16 %v1119
      %v1199 = vunpack.c.l.b16 %v1120
      %v1200 = vpack.c.b16 %v1164, %v1163
      %v1201 = vpack.c.b16 %v1166, %v1165
      %v1202 = vpack.c.b16 %v1168, %v1167
      %v1203 = vpack.c.b16 %v1170, %v1169
      %v1204 = vpack.c.b16 %v1172, %v1171
      %v1205 = vpack.c.b16 %v1174, %v1173
      %v1206 = vpack.c.b16 %v1176, %v1175
      %v1207 = vpack.c.b16 %v1178, %v1177
      %v1208 = vpack.c.b16 %v1180, %v1179
      %v1209 = vpack.c.b16 %v1182, %v1181
      %v1210 = vpack.c.b16 %v1184, %v1183
      %v1211 = vpack.c.b16 %v1186, %v1185
      %v1212 = vpack.c.b16 %v1188, %v1187
      %v1213 = vpack.c.b16 %v1190, %v1189
      %v1214 = vpack.c.b16 %v1192, %v1191
      %v1215 = vpack.c.b16 %v1194, %v1193
      %v1216 = vpack.c.b16 %v1196, %v1195
      %v1217 = vpack.c.b16 %v1198, %v1197
      %v1218 = vpack.c.b16 %v1199, %v1199
      %v1219 = vrot.slane %v1200, 1
      %v1220 = vrot.slane %v1201, 1
      %v1221 = vsel %vm845, %v1219, %v1220
      %v1222 = vrot.slane %v1202, 1
      %v1223 = vsel %vm845, %v1220, %v1222
      %v1224 = vrot.slane %v1203, 1
      %v1225 = vsel %vm845, %v1222, %v1224
      %v1226 = vrot.slane %v1204, 1
      %v1227 = vsel %vm845, %v1224, %v1226
      %v1228 = vrot.slane %v1205, 1
      %v1229 = vsel %vm845, %v1226, %v1228
      %v1230 = vrot.slane %v1206, 1
      %v1231 = vsel %vm845, %v1228, %v1230
      %v1232 = vrot.slane %v1207, 1
      %v1233 = vsel %vm845, %v1230, %v1232
      %v1234 = vrot.slane %v1208, 1
      %v1235 = vsel %vm845, %v1232, %v1234
      %v1236 = vrot.slane %v1209, 1
      %v1237 = vsel %vm845, %v1234, %v1236
      %v1238 = vrot.slane %v1210, 1
      %v1239 = vsel %vm845, %v1236, %v1238
      %v1240 = vrot.slane %v1211, 1
      %v1241 = vsel %vm845, %v1238, %v1240
      %v1242 = vrot.slane %v1212, 1
      %v1243 = vsel %vm845, %v1240, %v1242
      %v1244 = vrot.slane %v1213, 1
      %v1245 = vsel %vm845, %v1242, %v1244
      %v1246 = vrot.slane %v1214, 1
      %v1247 = vsel %vm845, %v1244, %v1246
      %v1248 = vrot.slane %v1215, 1
      %v1249 = vsel %vm845, %v1246, %v1248
      %v1250 = vrot.slane %v1216, 1
      %v1251 = vsel %vm845, %v1248, %v1250
      %v1252 = vrot.slane %v1217, 1
      %v1253 = vsel %vm845, %v1250, %v1252
      %v1254 = vrot.slane %v1218, 1
      %v1255 = vsel %vm845, %v1252, %v1254
      %v1260 = vunpack.c.l.b16 %v1122
      %v1261 = vunpack.c.l.b16 %v1123
      %v1262 = vunpack.c.l.b16 %v1124
      %v1263 = vunpack.c.l.b16 %v1125
      %v1264 = vpack.c.b16 %v1261, %v1260
      %v1265 = vpack.c.b16 %v1263, %v1262
      %v1269 = vsel %vm535, %v1221, 0
      %v1272 = vsel %vm535, %v1223, 0
      %v1275 = vsel %vm535, %v1225, 0
      %v1278 = vsel %vm535, %v1227, 0
      %v1281 = vsel %vm535, %v1229, 0
      %v1284 = vsel %vm535, %v1231, 0
      %v1287 = vsel %vm535, %v1233, 0
      %v1290 = vsel %vm535, %v1235, 0
      %v1293 = vsel %vm535, %v1237, 0
      %v1296 = vsel %vm535, %v1239, 0
      %v1299 = vsel %vm535, %v1241, 0
      %v1302 = vsel %vm535, %v1243, 0
      %v1305 = vsel %vm535, %v1245, 0
      %v1308 = vsel %vm535, %v1247, 0
      %v1311 = vsel %vm535, %v1249, 0
      %v1314 = vsel %vm535, %v1251, 0
      %v1317 = vsel %vm535, %v1253, 0
      %v1320 = vsel %vm535, %v1255, 0
      %1322 = vmatpush.bf16.msra.mxu0 0
      %1323 = vmatpush.bf16.msra.mxu0 0
      %1324 = vmatpush.bf16.msra.mxu0 0
      %1325 = vmatpush.bf16.msra.mxu0 0
      %1326 = vmatpush.bf16.msra.mxu0 0
      %1327 = vmatpush.bf16.msra.mxu0 0
      %1328 = vmatpush.bf16.msra.mxu0 %v1265
      %1329 = vmatpush.bf16.msra.mxu0 %v1264
      %1330 = vmatmul.bf16.gmra.mxu0 %v1269
      %v1331 = vpop.f32.mrf.mxu0
      %v1332 = vadd.f32 0.0, %v1331
      %v1333 = vpop.f32.mrf.mxu0
      %v1334 = vadd.f32 0.0, %v1333
      %1335 = vmatmul.bf16.gmra.mxu0 %v1272
      %v1336 = vpop.f32.mrf.mxu0
      %v1337 = vadd.f32 0.0, %v1336
      %v1338 = vpop.f32.mrf.mxu0
      %v1339 = vadd.f32 0.0, %v1338
      %1340 = vmatmul.bf16.gmra.mxu0 %v1275
      %v1341 = vpop.f32.mrf.mxu0
      %v1342 = vadd.f32 0.0, %v1341
      %v1343 = vpop.f32.mrf.mxu0
      %v1344 = vadd.f32 0.0, %v1343
      %1345 = vmatmul.bf16.gmra.mxu0 %v1278
      %v1346 = vpop.f32.mrf.mxu0
      %v1347 = vadd.f32 0.0, %v1346
      %v1348 = vpop.f32.mrf.mxu0
      %v1349 = vadd.f32 0.0, %v1348
      %1350 = vmatmul.bf16.gmra.mxu0 %v1281
      %v1351 = vpop.f32.mrf.mxu0
      %v1352 = vadd.f32 0.0, %v1351
      %v1353 = vpop.f32.mrf.mxu0
      %v1354 = vadd.f32 0.0, %v1353
      %1355 = vmatmul.bf16.gmra.mxu0 %v1284
      %v1356 = vpop.f32.mrf.mxu0
      %v1357 = vadd.f32 0.0, %v1356
      %v1358 = vpop.f32.mrf.mxu0
      %v1359 = vadd.f32 0.0, %v1358
      %1360 = vmatmul.bf16.gmra.mxu0 %v1287
      %v1361 = vpop.f32.mrf.mxu0
      %v1362 = vadd.f32 0.0, %v1361
      %v1363 = vpop.f32.mrf.mxu0
      %v1364 = vadd.f32 0.0, %v1363
      %1365 = vmatmul.bf16.gmra.mxu0 %v1290
      %v1366 = vpop.f32.mrf.mxu0
      %v1367 = vadd.f32 0.0, %v1366
      %v1368 = vpop.f32.mrf.mxu0
      %v1369 = vadd.f32 0.0, %v1368
      %1370 = vmatmul.bf16.gmra.mxu0 %v1293
      %v1371 = vpop.f32.mrf.mxu0
      %v1372 = vadd.f32 0.0, %v1371
      %v1373 = vpop.f32.mrf.mxu0
      %v1374 = vadd.f32 0.0, %v1373
      %1375 = vmatmul.bf16.gmra.mxu0 %v1296
      %v1376 = vpop.f32.mrf.mxu0
      %v1377 = vadd.f32 0.0, %v1376
      %v1378 = vpop.f32.mrf.mxu0
      %v1379 = vadd.f32 0.0, %v1378
      %1380 = vmatmul.bf16.gmra.mxu0 %v1299
      %v1381 = vpop.f32.mrf.mxu0
      %v1382 = vadd.f32 0.0, %v1381
      %v1383 = vpop.f32.mrf.mxu0
      %v1384 = vadd.f32 0.0, %v1383
      %1385 = vmatmul.bf16.gmra.mxu0 %v1302
      %v1386 = vpop.f32.mrf.mxu0
      %v1387 = vadd.f32 0.0, %v1386
      %v1388 = vpop.f32.mrf.mxu0
      %v1389 = vadd.f32 0.0, %v1388
      %1390 = vmatmul.bf16.gmra.mxu0 %v1305
      %v1391 = vpop.f32.mrf.mxu0
      %v1392 = vadd.f32 0.0, %v1391
      %v1393 = vpop.f32.mrf.mxu0
      %v1394 = vadd.f32 0.0, %v1393
      %1395 = vmatmul.bf16.gmra.mxu0 %v1308
      %v1396 = vpop.f32.mrf.mxu0
      %v1397 = vadd.f32 0.0, %v1396
      %v1398 = vpop.f32.mrf.mxu0
      %v1399 = vadd.f32 0.0, %v1398
      %1400 = vmatmul.bf16.gmra.mxu0 %v1311
      %v1401 = vpop.f32.mrf.mxu0
      %v1402 = vadd.f32 0.0, %v1401
      %v1403 = vpop.f32.mrf.mxu0
      %v1404 = vadd.f32 0.0, %v1403
      %1405 = vmatmul.bf16.gmra.mxu0 %v1314
      %v1406 = vpop.f32.mrf.mxu0
      %v1407 = vadd.f32 0.0, %v1406
      %v1408 = vpop.f32.mrf.mxu0
      %v1409 = vadd.f32 0.0, %v1408
      %1410 = vmatmul.bf16.gmra.mxu0 %v1317
      %v1411 = vpop.f32.mrf.mxu0
      %v1412 = vadd.f32 0.0, %v1411
      %v1413 = vpop.f32.mrf.mxu0
      %v1414 = vadd.f32 0.0, %v1413
      %1415 = vmatmul.bf16.gmra.mxu0 %v1320
      %v1416 = vpop.f32.mrf.mxu0
      %v1417 = vadd.f32 0.0, %v1416
      %v1418 = vpop.f32.mrf.mxu0
      %v1419 = vadd.f32 0.0, %v1418
      %1420 = vdwg.mxu0
      %v1421 = vadd.f32 %v1048, %v1332
      %v1422 = vadd.f32 %v1049, %v1334
      %v1423 = vadd.f32 %v1050, %v1337
      %v1424 = vadd.f32 %v1051, %v1339
      %v1425 = vadd.f32 %v1052, %v1342
      %v1426 = vadd.f32 %v1053, %v1344
      %v1427 = vadd.f32 %v1054, %v1347
      %v1428 = vadd.f32 %v1055, %v1349
      %v1429 = vadd.f32 %v1056, %v1352
      %v1430 = vadd.f32 %v1057, %v1354
      %v1431 = vadd.f32 %v1058, %v1357
      %v1432 = vadd.f32 %v1059, %v1359
      %v1433 = vadd.f32 %v1060, %v1362
      %v1434 = vadd.f32 %v1061, %v1364
      %v1435 = vadd.f32 %v1062, %v1367
      %v1436 = vadd.f32 %v1063, %v1369
      %v1437 = vadd.f32 %v1064, %v1372
      %v1438 = vadd.f32 %v1065, %v1374
      %v1439 = vadd.f32 %v1066, %v1377
      %v1440 = vadd.f32 %v1067, %v1379
      %v1441 = vadd.f32 %v1068, %v1382
      %v1442 = vadd.f32 %v1069, %v1384
      %v1443 = vadd.f32 %v1070, %v1387
      %v1444 = vadd.f32 %v1071, %v1389
      %v1445 = vadd.f32 %v1072, %v1392
      %v1446 = vadd.f32 %v1073, %v1394
      %v1447 = vadd.f32 %v1074, %v1397
      %v1448 = vadd.f32 %v1075, %v1399
      %v1449 = vadd.f32 %v1076, %v1402
      %v1450 = vadd.f32 %v1077, %v1404
      %v1451 = vadd.f32 %v1078, %v1407
      %v1452 = vadd.f32 %v1079, %v1409
      %v1453 = vadd.f32 %v1080, %v1412
      %v1454 = vadd.f32 %v1081, %v1414
      %v1455 = vadd.f32 %v1082, %v1417
      %v1456 = vadd.f32 %v1083, %v1419
      %v1457 = vld [vmem:[%s224 + $0x98] sm:$0x3]
      %s1458 = scalar_lea.vmem %s1, 64
      %v1459 = vld [vmem:[%s1458] sm:$0xf]
      %v1460 = vld [vmem:[%s1458 + $0x4] sm:$0xf]
      %v1461 = vld [vmem:[%s1458 + $0x8] sm:$0xf]
      %v1462 = vld [vmem:[%s1458 + $0xc] sm:$0xf]
      %v1464 = vunpack.c.l.b16 %v1457
      %v1465 = vpack.c.b16 %v1464, %v1464
      %vm1466 = vsmask.f32 6400
      %v1468 = vshrl.u32 %v1200, 16
      %v1470 = vrot.slane %v1468, 1
      %v1471 = vshll.u32 %v1200, 16
      %v1473 = vrot.slane %v1471, 2
      %v1474 = vor.u32 %v1470, %v1473
      %v1476 = vshrl.u32 %v1201, 16
      %v1478 = vrot.slane %v1476, 1
      %v1479 = vshll.u32 %v1201, 16
      %v1481 = vrot.slane %v1479, 2
      %v1482 = vor.u32 %v1478, %v1481
      %v1483 = vsel %vm1466, %v1474, %v1482
      %v1485 = vshrl.u32 %v1202, 16
      %v1487 = vrot.slane %v1485, 1
      %v1488 = vshll.u32 %v1202, 16
      %v1490 = vrot.slane %v1488, 2
      %v1491 = vor.u32 %v1487, %v1490
      %v1492 = vsel %vm1466, %v1482, %v1491
      %v1494 = vshrl.u32 %v1203, 16
      %v1496 = vrot.slane %v1494, 1
      %v1497 = vshll.u32 %v1203, 16
      %v1499 = vrot.slane %v1497, 2
      %v1500 = vor.u32 %v1496, %v1499
      %v1501 = vsel %vm1466, %v1491, %v1500
      %v1503 = vshrl.u32 %v1204, 16
      %v1505 = vrot.slane %v1503, 1
      %v1506 = vshll.u32 %v1204, 16
      %v1508 = vrot.slane %v1506, 2
      %v1509 = vor.u32 %v1505, %v1508
      %v1510 = vsel %vm1466, %v1500, %v1509
      %v1512 = vshrl.u32 %v1205, 16
      %v1514 = vrot.slane %v1512, 1
      %v1515 = vshll.u32 %v1205, 16
      %v1517 = vrot.slane %v1515, 2
      %v1518 = vor.u32 %v1514, %v1517
      %v1519 = vsel %vm1466, %v1509, %v1518
      %v1521 = vshrl.u32 %v1206, 16
      %v1523 = vrot.slane %v1521, 1
      %v1524 = vshll.u32 %v1206, 16
      %v1526 = vrot.slane %v1524, 2
      %v1527 = vor.u32 %v1523, %v1526
      %v1528 = vsel %vm1466, %v1518, %v1527
      %v1530 = vshrl.u32 %v1207, 16
      %v1532 = vrot.slane %v1530, 1
      %v1533 = vshll.u32 %v1207, 16
      %v1535 = vrot.slane %v1533, 2
      %v1536 = vor.u32 %v1532, %v1535
      %v1537 = vsel %vm1466, %v1527, %v1536
      %v1539 = vshrl.u32 %v1208, 16
      %v1541 = vrot.slane %v1539, 1
      %v1542 = vshll.u32 %v1208, 16
      %v1544 = vrot.slane %v1542, 2
      %v1545 = vor.u32 %v1541, %v1544
      %v1546 = vsel %vm1466, %v1536, %v1545
      %v1548 = vshrl.u32 %v1209, 16
      %v1550 = vrot.slane %v1548, 1
      %v1551 = vshll.u32 %v1209, 16
      %v1553 = vrot.slane %v1551, 2
      %v1554 = vor.u32 %v1550, %v1553
      %v1555 = vsel %vm1466, %v1545, %v1554
      %v1557 = vshrl.u32 %v1210, 16
      %v1559 = vrot.slane %v1557, 1
      %v1560 = vshll.u32 %v1210, 16
      %v1562 = vrot.slane %v1560, 2
      %v1563 = vor.u32 %v1559, %v1562
      %v1564 = vsel %vm1466, %v1554, %v1563
      %v1566 = vshrl.u32 %v1211, 16
      %v1568 = vrot.slane %v1566, 1
      %v1569 = vshll.u32 %v1211, 16
      %v1571 = vrot.slane %v1569, 2
      %v1572 = vor.u32 %v1568, %v1571
      %v1573 = vsel %vm1466, %v1563, %v1572
      %v1575 = vshrl.u32 %v1212, 16
      %v1577 = vrot.slane %v1575, 1
      %v1578 = vshll.u32 %v1212, 16
      %v1580 = vrot.slane %v1578, 2
      %v1581 = vor.u32 %v1577, %v1580
      %v1582 = vsel %vm1466, %v1572, %v1581
      %v1584 = vshrl.u32 %v1213, 16
      %v1586 = vrot.slane %v1584, 1
      %v1587 = vshll.u32 %v1213, 16
      %v1589 = vrot.slane %v1587, 2
      %v1590 = vor.u32 %v1586, %v1589
      %v1591 = vsel %vm1466, %v1581, %v1590
      %v1593 = vshrl.u32 %v1214, 16
      %v1595 = vrot.slane %v1593, 1
      %v1596 = vshll.u32 %v1214, 16
      %v1598 = vrot.slane %v1596, 2
      %v1599 = vor.u32 %v1595, %v1598
      %v1600 = vsel %vm1466, %v1590, %v1599
      %v1602 = vshrl.u32 %v1215, 16
      %v1604 = vrot.slane %v1602, 1
      %v1605 = vshll.u32 %v1215, 16
      %v1607 = vrot.slane %v1605, 2
      %v1608 = vor.u32 %v1604, %v1607
      %v1609 = vsel %vm1466, %v1599, %v1608
      %v1611 = vshrl.u32 %v1216, 16
      %v1613 = vrot.slane %v1611, 1
      %v1614 = vshll.u32 %v1216, 16
      %v1616 = vrot.slane %v1614, 2
      %v1617 = vor.u32 %v1613, %v1616
      %v1618 = vsel %vm1466, %v1608, %v1617
      %v1620 = vshrl.u32 %v1217, 16
      %v1622 = vrot.slane %v1620, 1
      %v1623 = vshll.u32 %v1217, 16
      %v1625 = vrot.slane %v1623, 2
      %v1626 = vor.u32 %v1622, %v1625
      %v1627 = vsel %vm1466, %v1617, %v1626
      %v1629 = vshrl.u32 %v1465, 16
      %v1631 = vrot.slane %v1629, 1
      %v1632 = vshll.u32 %v1465, 16
      %v1634 = vrot.slane %v1632, 2
      %v1635 = vor.u32 %v1631, %v1634
      %v1636 = vsel %vm1466, %v1626, %v1635
      %v1641 = vunpack.c.l.b16 %v1459
      %v1642 = vunpack.c.l.b16 %v1460
      %v1643 = vunpack.c.l.b16 %v1461
      %v1644 = vunpack.c.l.b16 %v1462
      %v1645 = vpack.c.b16 %v1642, %v1641
      %v1646 = vpack.c.b16 %v1644, %v1643
      %v1650 = vsel %vm535, %v1483, 0
      %v1653 = vsel %vm535, %v1492, 0
      %v1656 = vsel %vm535, %v1501, 0
      %v1659 = vsel %vm535, %v1510, 0
      %v1662 = vsel %vm535, %v1519, 0
      %v1665 = vsel %vm535, %v1528, 0
      %v1668 = vsel %vm535, %v1537, 0
      %v1671 = vsel %vm535, %v1546, 0
      %v1674 = vsel %vm535, %v1555, 0
      %v1677 = vsel %vm535, %v1564, 0
      %v1680 = vsel %vm535, %v1573, 0
      %v1683 = vsel %vm535, %v1582, 0
      %v1686 = vsel %vm535, %v1591, 0
      %v1689 = vsel %vm535, %v1600, 0
      %v1692 = vsel %vm535, %v1609, 0
      %v1695 = vsel %vm535, %v1618, 0
      %v1698 = vsel %vm535, %v1627, 0
      %v1701 = vsel %vm535, %v1636, 0
      %1703 = vmatpush.bf16.msra.mxu0 0
      %1704 = vmatpush.bf16.msra.mxu0 0
      %1705 = vmatpush.bf16.msra.mxu0 0
      %1706 = vmatpush.bf16.msra.mxu0 0
      %1707 = vmatpush.bf16.msra.mxu0 0
      %1708 = vmatpush.bf16.msra.mxu0 0
      %1709 = vmatpush.bf16.msra.mxu0 %v1646
      %1710 = vmatpush.bf16.msra.mxu0 %v1645
      %1711 = vmatmul.bf16.gmra.mxu0 %v1650
      %v1712 = vpop.f32.mrf.mxu0
      %v1713 = vadd.f32 0.0, %v1712
      %v1714 = vpop.f32.mrf.mxu0
      %v1715 = vadd.f32 0.0, %v1714
      %1716 = vmatmul.bf16.gmra.mxu0 %v1653
      %v1717 = vpop.f32.mrf.mxu0
      %v1718 = vadd.f32 0.0, %v1717
      %v1719 = vpop.f32.mrf.mxu0
      %v1720 = vadd.f32 0.0, %v1719
      %1721 = vmatmul.bf16.gmra.mxu0 %v1656
      %v1722 = vpop.f32.mrf.mxu0
      %v1723 = vadd.f32 0.0, %v1722
      %v1724 = vpop.f32.mrf.mxu0
      %v1725 = vadd.f32 0.0, %v1724
      %1726 = vmatmul.bf16.gmra.mxu0 %v1659
      %v1727 = vpop.f32.mrf.mxu0
      %v1728 = vadd.f32 0.0, %v1727
      %v1729 = vpop.f32.mrf.mxu0
      %v1730 = vadd.f32 0.0, %v1729
      %1731 = vmatmul.bf16.gmra.mxu0 %v1662
      %v1732 = vpop.f32.mrf.mxu0
      %v1733 = vadd.f32 0.0, %v1732
      %v1734 = vpop.f32.mrf.mxu0
      %v1735 = vadd.f32 0.0, %v1734
      %1736 = vmatmul.bf16.gmra.mxu0 %v1665
      %v1737 = vpop.f32.mrf.mxu0
      %v1738 = vadd.f32 0.0, %v1737
      %v1739 = vpop.f32.mrf.mxu0
      %v1740 = vadd.f32 0.0, %v1739
      %1741 = vmatmul.bf16.gmra.mxu0 %v1668
      %v1742 = vpop.f32.mrf.mxu0
      %v1743 = vadd.f32 0.0, %v1742
      %v1744 = vpop.f32.mrf.mxu0
      %v1745 = vadd.f32 0.0, %v1744
      %1746 = vmatmul.bf16.gmra.mxu0 %v1671
      %v1747 = vpop.f32.mrf.mxu0
      %v1748 = vadd.f32 0.0, %v1747
      %v1749 = vpop.f32.mrf.mxu0
      %v1750 = vadd.f32 0.0, %v1749
      %1751 = vmatmul.bf16.gmra.mxu0 %v1674
      %v1752 = vpop.f32.mrf.mxu0
      %v1753 = vadd.f32 0.0, %v1752
      %v1754 = vpop.f32.mrf.mxu0
      %v1755 = vadd.f32 0.0, %v1754
      %1756 = vmatmul.bf16.gmra.mxu0 %v1677
      %v1757 = vpop.f32.mrf.mxu0
      %v1758 = vadd.f32 0.0, %v1757
      %v1759 = vpop.f32.mrf.mxu0
      %v1760 = vadd.f32 0.0, %v1759
      %1761 = vmatmul.bf16.gmra.mxu0 %v1680
      %v1762 = vpop.f32.mrf.mxu0
      %v1763 = vadd.f32 0.0, %v1762
      %v1764 = vpop.f32.mrf.mxu0
      %v1765 = vadd.f32 0.0, %v1764
      %1766 = vmatmul.bf16.gmra.mxu0 %v1683
      %v1767 = vpop.f32.mrf.mxu0
      %v1768 = vadd.f32 0.0, %v1767
      %v1769 = vpop.f32.mrf.mxu0
      %v1770 = vadd.f32 0.0, %v1769
      %1771 = vmatmul.bf16.gmra.mxu0 %v1686
      %v1772 = vpop.f32.mrf.mxu0
      %v1773 = vadd.f32 0.0, %v1772
      %v1774 = vpop.f32.mrf.mxu0
      %v1775 = vadd.f32 0.0, %v1774
      %1776 = vmatmul.bf16.gmra.mxu0 %v1689
      %v1777 = vpop.f32.mrf.mxu0
      %v1778 = vadd.f32 0.0, %v1777
      %v1779 = vpop.f32.mrf.mxu0
      %v1780 = vadd.f32 0.0, %v1779
      %1781 = vmatmul.bf16.gmra.mxu0 %v1692
      %v1782 = vpop.f32.mrf.mxu0
      %v1783 = vadd.f32 0.0, %v1782
      %v1784 = vpop.f32.mrf.mxu0
      %v1785 = vadd.f32 0.0, %v1784
      %1786 = vmatmul.bf16.gmra.mxu0 %v1695
      %v1787 = vpop.f32.mrf.mxu0
      %v1788 = vadd.f32 0.0, %v1787
      %v1789 = vpop.f32.mrf.mxu0
      %v1790 = vadd.f32 0.0, %v1789
      %1791 = vmatmul.bf16.gmra.mxu0 %v1698
      %v1792 = vpop.f32.mrf.mxu0
      %v1793 = vadd.f32 0.0, %v1792
      %v1794 = vpop.f32.mrf.mxu0
      %v1795 = vadd.f32 0.0, %v1794
      %1796 = vmatmul.bf16.gmra.mxu0 %v1701
      %v1797 = vpop.f32.mrf.mxu0
      %v1798 = vadd.f32 0.0, %v1797
      %v1799 = vpop.f32.mrf.mxu0
      %v1800 = vadd.f32 0.0, %v1799
      %1801 = vdwg.mxu0
      %v1802 = vadd.f32 %v1421, %v1713
      %v1803 = vadd.f32 %v1422, %v1715
      %v1804 = vadd.f32 %v1423, %v1718
      %v1805 = vadd.f32 %v1424, %v1720
      %v1806 = vadd.f32 %v1425, %v1723
      %v1807 = vadd.f32 %v1426, %v1725
      %v1808 = vadd.f32 %v1427, %v1728
      %v1809 = vadd.f32 %v1428, %v1730
      %v1810 = vadd.f32 %v1429, %v1733
      %v1811 = vadd.f32 %v1430, %v1735
      %v1812 = vadd.f32 %v1431, %v1738
      %v1813 = vadd.f32 %v1432, %v1740
      %v1814 = vadd.f32 %v1433, %v1743
      %v1815 = vadd.f32 %v1434, %v1745
      %v1816 = vadd.f32 %v1435, %v1748
      %v1817 = vadd.f32 %v1436, %v1750
      %v1818 = vadd.f32 %v1437, %v1753
      %v1819 = vadd.f32 %v1438, %v1755
      %v1820 = vadd.f32 %v1439, %v1758
      %v1821 = vadd.f32 %v1440, %v1760
      %v1822 = vadd.f32 %v1441, %v1763
      %v1823 = vadd.f32 %v1442, %v1765
      %v1824 = vadd.f32 %v1443, %v1768
      %v1825 = vadd.f32 %v1444, %v1770
      %v1826 = vadd.f32 %v1445, %v1773
      %v1827 = vadd.f32 %v1446, %v1775
      %v1828 = vadd.f32 %v1447, %v1778
      %v1829 = vadd.f32 %v1448, %v1780
      %v1830 = vadd.f32 %v1449, %v1783
      %v1831 = vadd.f32 %v1450, %v1785
      %v1832 = vadd.f32 %v1451, %v1788
      %v1833 = vadd.f32 %v1452, %v1790
      %v1834 = vadd.f32 %v1453, %v1793
      %v1835 = vadd.f32 %v1454, %v1795
      %v1836 = vadd.f32 %v1455, %v1798
      %v1837 = vadd.f32 %v1456, %v1800
      %v1838 = vld [vmem:[%s224 + $0x8] sm:$0xc]
      %s1839 = scalar_lea.vmem %s1, 80
      %v1840 = vld [vmem:[%s1839] sm:$0xf]
      %v1841 = vld [vmem:[%s1839 + $0x4] sm:$0xf]
      %v1842 = vld [vmem:[%s1839 + $0x8] sm:$0xf]
      %v1843 = vld [vmem:[%s1839 + $0xc] sm:$0xf]
      %v1845 = vunpack.c.l.b16 %v1838
      %v1846 = vpack.c.b16 %v1164, %v1845
      %vm1847 = vcmask 1045504
      %v1848 = vrot.slane %v1846, 2
      %v1849 = vrot.slane %v1201, 2
      %v1850 = vsel %vm1847, %v1848, %v1849
      %v1851 = vrot.slane %v1202, 2
      %v1852 = vsel %vm1847, %v1849, %v1851
      %v1853 = vrot.slane %v1203, 2
      %v1854 = vsel %vm1847, %v1851, %v1853
      %v1855 = vrot.slane %v1204, 2
      %v1856 = vsel %vm1847, %v1853, %v1855
      %v1857 = vrot.slane %v1205, 2
      %v1858 = vsel %vm1847, %v1855, %v1857
      %v1859 = vrot.slane %v1206, 2
      %v1860 = vsel %vm1847, %v1857, %v1859
      %v1861 = vrot.slane %v1207, 2
      %v1862 = vsel %vm1847, %v1859, %v1861
      %v1863 = vrot.slane %v1208, 2
      %v1864 = vsel %vm1847, %v1861, %v1863
      %v1865 = vrot.slane %v1209, 2
      %v1866 = vsel %vm1847, %v1863, %v1865
      %v1867 = vrot.slane %v1210, 2
      %v1868 = vsel %vm1847, %v1865, %v1867
      %v1869 = vrot.slane %v1211, 2
      %v1870 = vsel %vm1847, %v1867, %v1869
      %v1871 = vrot.slane %v1212, 2
      %v1872 = vsel %vm1847, %v1869, %v1871
      %v1873 = vrot.slane %v1213, 2
      %v1874 = vsel %vm1847, %v1871, %v1873
      %v1875 = vrot.slane %v1214, 2
      %v1876 = vsel %vm1847, %v1873, %v1875
      %v1877 = vrot.slane %v1215, 2
      %v1878 = vsel %vm1847, %v1875, %v1877
      %v1879 = vrot.slane %v1216, 2
      %v1880 = vsel %vm1847, %v1877, %v1879
      %v1881 = vrot.slane %v1217, 2
      %v1882 = vsel %vm1847, %v1879, %v1881
      %v1883 = vrot.slane %v1465, 2
      %v1884 = vsel %vm1847, %v1881, %v1883
      %v1889 = vunpack.c.l.b16 %v1840
      %v1890 = vunpack.c.l.b16 %v1841
      %v1891 = vunpack.c.l.b16 %v1842
      %v1892 = vunpack.c.l.b16 %v1843
      %v1893 = vpack.c.b16 %v1890, %v1889
      %v1894 = vpack.c.b16 %v1892, %v1891
      %v1898 = vsel %vm535, %v1850, 0
      %v1901 = vsel %vm535, %v1852, 0
      %v1904 = vsel %vm535, %v1854, 0
      %v1907 = vsel %vm535, %v1856, 0
      %v1910 = vsel %vm535, %v1858, 0
      %v1913 = vsel %vm535, %v1860, 0
      %v1916 = vsel %vm535, %v1862, 0
      %v1919 = vsel %vm535, %v1864, 0
      %v1922 = vsel %vm535, %v1866, 0
      %v1925 = vsel %vm535, %v1868, 0
      %v1928 = vsel %vm535, %v1870, 0
      %v1931 = vsel %vm535, %v1872, 0
      %v1934 = vsel %vm535, %v1874, 0
      %v1937 = vsel %vm535, %v1876, 0
      %v1940 = vsel %vm535, %v1878, 0
      %v1943 = vsel %vm535, %v1880, 0
      %v1946 = vsel %vm535, %v1882, 0
      %v1949 = vsel %vm535, %v1884, 0
      %1951 = vmatpush.bf16.msra.mxu0 0
      %1952 = vmatpush.bf16.msra.mxu0 0
      %1953 = vmatpush.bf16.msra.mxu0 0
      %1954 = vmatpush.bf16.msra.mxu0 0
      %1955 = vmatpush.bf16.msra.mxu0 0
      %1956 = vmatpush.bf16.msra.mxu0 0
      %1957 = vmatpush.bf16.msra.mxu0 %v1894
      %1958 = vmatpush.bf16.msra.mxu0 %v1893
      %1959 = vmatmul.bf16.gmra.mxu0 %v1898
      %v1960 = vpop.f32.mrf.mxu0
      %v1961 = vadd.f32 0.0, %v1960
      %v1962 = vpop.f32.mrf.mxu0
      %v1963 = vadd.f32 0.0, %v1962
      %1964 = vmatmul.bf16.gmra.mxu0 %v1901
      %v1965 = vpop.f32.mrf.mxu0
      %v1966 = vadd.f32 0.0, %v1965
      %v1967 = vpop.f32.mrf.mxu0
      %v1968 = vadd.f32 0.0, %v1967
      %1969 = vmatmul.bf16.gmra.mxu0 %v1904
      %v1970 = vpop.f32.mrf.mxu0
      %v1971 = vadd.f32 0.0, %v1970
      %v1972 = vpop.f32.mrf.mxu0
      %v1973 = vadd.f32 0.0, %v1972
      %1974 = vmatmul.bf16.gmra.mxu0 %v1907
      %v1975 = vpop.f32.mrf.mxu0
      %v1976 = vadd.f32 0.0, %v1975
      %v1977 = vpop.f32.mrf.mxu0
      %v1978 = vadd.f32 0.0, %v1977
      %1979 = vmatmul.bf16.gmra.mxu0 %v1910
      %v1980 = vpop.f32.mrf.mxu0
      %v1981 = vadd.f32 0.0, %v1980
      %v1982 = vpop.f32.mrf.mxu0
      %v1983 = vadd.f32 0.0, %v1982
      %1984 = vmatmul.bf16.gmra.mxu0 %v1913
      %v1985 = vpop.f32.mrf.mxu0
      %v1986 = vadd.f32 0.0, %v1985
      %v1987 = vpop.f32.mrf.mxu0
      %v1988 = vadd.f32 0.0, %v1987
      %1989 = vmatmul.bf16.gmra.mxu0 %v1916
      %v1990 = vpop.f32.mrf.mxu0
      %v1991 = vadd.f32 0.0, %v1990
      %v1992 = vpop.f32.mrf.mxu0
      %v1993 = vadd.f32 0.0, %v1992
      %1994 = vmatmul.bf16.gmra.mxu0 %v1919
      %v1995 = vpop.f32.mrf.mxu0
      %v1996 = vadd.f32 0.0, %v1995
      %v1997 = vpop.f32.mrf.mxu0
      %v1998 = vadd.f32 0.0, %v1997
      %1999 = vmatmul.bf16.gmra.mxu0 %v1922
      %v2000 = vpop.f32.mrf.mxu0
      %v2001 = vadd.f32 0.0, %v2000
      %v2002 = vpop.f32.mrf.mxu0
      %v2003 = vadd.f32 0.0, %v2002
      %2004 = vmatmul.bf16.gmra.mxu0 %v1925
      %v2005 = vpop.f32.mrf.mxu0
      %v2006 = vadd.f32 0.0, %v2005
      %v2007 = vpop.f32.mrf.mxu0
      %v2008 = vadd.f32 0.0, %v2007
      %2009 = vmatmul.bf16.gmra.mxu0 %v1928
      %v2010 = vpop.f32.mrf.mxu0
      %v2011 = vadd.f32 0.0, %v2010
      %v2012 = vpop.f32.mrf.mxu0
      %v2013 = vadd.f32 0.0, %v2012
      %2014 = vmatmul.bf16.gmra.mxu0 %v1931
      %v2015 = vpop.f32.mrf.mxu0
      %v2016 = vadd.f32 0.0, %v2015
      %v2017 = vpop.f32.mrf.mxu0
      %v2018 = vadd.f32 0.0, %v2017
      %2019 = vmatmul.bf16.gmra.mxu0 %v1934
      %v2020 = vpop.f32.mrf.mxu0
      %v2021 = vadd.f32 0.0, %v2020
      %v2022 = vpop.f32.mrf.mxu0
      %v2023 = vadd.f32 0.0, %v2022
      %2024 = vmatmul.bf16.gmra.mxu0 %v1937
      %v2025 = vpop.f32.mrf.mxu0
      %v2026 = vadd.f32 0.0, %v2025
      %v2027 = vpop.f32.mrf.mxu0
      %v2028 = vadd.f32 0.0, %v2027
      %2029 = vmatmul.bf16.gmra.mxu0 %v1940
      %v2030 = vpop.f32.mrf.mxu0
      %v2031 = vadd.f32 0.0, %v2030
      %v2032 = vpop.f32.mrf.mxu0
      %v2033 = vadd.f32 0.0, %v2032
      %2034 = vmatmul.bf16.gmra.mxu0 %v1943
      %v2035 = vpop.f32.mrf.mxu0
      %v2036 = vadd.f32 0.0, %v2035
      %v2037 = vpop.f32.mrf.mxu0
      %v2038 = vadd.f32 0.0, %v2037
      %2039 = vmatmul.bf16.gmra.mxu0 %v1946
      %v2040 = vpop.f32.mrf.mxu0
      %v2041 = vadd.f32 0.0, %v2040
      %v2042 = vpop.f32.mrf.mxu0
      %v2043 = vadd.f32 0.0, %v2042
      %2044 = vmatmul.bf16.gmra.mxu0 %v1949
      %v2045 = vpop.f32.mrf.mxu0
      %v2046 = vadd.f32 0.0, %v2045
      %v2047 = vpop.f32.mrf.mxu0
      %v2048 = vadd.f32 0.0, %v2047
      %2049 = vdwg.mxu0
      %v2050 = vadd.f32 %v1802, %v1961
      %v2051 = vadd.f32 %v1803, %v1963
      %v2052 = vadd.f32 %v1804, %v1966
      %v2053 = vadd.f32 %v1805, %v1968
      %v2054 = vadd.f32 %v1806, %v1971
      %v2055 = vadd.f32 %v1807, %v1973
      %v2056 = vadd.f32 %v1808, %v1976
      %v2057 = vadd.f32 %v1809, %v1978
      %v2058 = vadd.f32 %v1810, %v1981
      %v2059 = vadd.f32 %v1811, %v1983
      %v2060 = vadd.f32 %v1812, %v1986
      %v2061 = vadd.f32 %v1813, %v1988
      %v2062 = vadd.f32 %v1814, %v1991
      %v2063 = vadd.f32 %v1815, %v1993
      %v2064 = vadd.f32 %v1816, %v1996
      %v2065 = vadd.f32 %v1817, %v1998
      %v2066 = vadd.f32 %v1818, %v2001
      %v2067 = vadd.f32 %v1819, %v2003
      %v2068 = vadd.f32 %v1820, %v2006
      %v2069 = vadd.f32 %v1821, %v2008
      %v2070 = vadd.f32 %v1822, %v2011
      %v2071 = vadd.f32 %v1823, %v2013
      %v2072 = vadd.f32 %v1824, %v2016
      %v2073 = vadd.f32 %v1825, %v2018
      %v2074 = vadd.f32 %v1826, %v2021
      %v2075 = vadd.f32 %v1827, %v2023
      %v2076 = vadd.f32 %v1828, %v2026
      %v2077 = vadd.f32 %v1829, %v2028
      %v2078 = vadd.f32 %v1830, %v2031
      %v2079 = vadd.f32 %v1831, %v2033
      %v2080 = vadd.f32 %v1832, %v2036
      %v2081 = vadd.f32 %v1833, %v2038
      %v2082 = vadd.f32 %v1834, %v2041
      %v2083 = vadd.f32 %v1835, %v2043
      %v2084 = vadd.f32 %v1836, %v2046
      %v2085 = vadd.f32 %v1837, %v2048
      %v2086 = vld [vmem:[%s224 + $0x10] sm:$0xc]
      %v2087 = vld [vmem:[%s224 + $0x14] sm:$0xf]
      %v2088 = vld [vmem:[%s224 + $0x18] sm:$0xf]
      %v2089 = vld [vmem:[%s224 + $0x1c] sm:$0xf]
      %v2090 = vld [vmem:[%s224 + $0x20] sm:$0xf]
      %v2091 = vld [vmem:[%s224 + $0x24] sm:$0xf]
      %v2092 = vld [vmem:[%s224 + $0x28] sm:$0xf]
      %v2093 = vld [vmem:[%s224 + $0x2c] sm:$0xf]
      %v2094 = vld [vmem:[%s224 + $0x30] sm:$0xf]
      %v2095 = vld [vmem:[%s224 + $0x34] sm:$0xf]
      %v2096 = vld [vmem:[%s224 + $0x38] sm:$0xf]
      %v2097 = vld [vmem:[%s224 + $0x3c] sm:$0xf]
      %v2098 = vld [vmem:[%s224 + $0x40] sm:$0xf]
      %v2099 = vld [vmem:[%s224 + $0x44] sm:$0xf]
      %v2100 = vld [vmem:[%s224 + $0x48] sm:$0xf]
      %v2101 = vld [vmem:[%s224 + $0x4c] sm:$0xf]
      %v2102 = vld [vmem:[%s224 + $0x50] sm:$0xf]
      %v2103 = vld [vmem:[%s224 + $0x54] sm:$0xf]
      %v2104 = vld [vmem:[%s224 + $0x58] sm:$0xf]
      %v2105 = vld [vmem:[%s224 + $0x5c] sm:$0xf]
      %v2106 = vld [vmem:[%s224 + $0x60] sm:$0xf]
      %v2107 = vld [vmem:[%s224 + $0x64] sm:$0xf]
      %v2108 = vld [vmem:[%s224 + $0x68] sm:$0xf]
      %v2109 = vld [vmem:[%s224 + $0x6c] sm:$0xf]
      %v2110 = vld [vmem:[%s224 + $0x70] sm:$0xf]
      %v2111 = vld [vmem:[%s224 + $0x74] sm:$0xf]
      %v2112 = vld [vmem:[%s224 + $0x78] sm:$0xf]
      %v2113 = vld [vmem:[%s224 + $0x7c] sm:$0xf]
      %v2114 = vld [vmem:[%s224 + $0x80] sm:$0xf]
      %v2115 = vld [vmem:[%s224 + $0x84] sm:$0xf]
      %v2116 = vld [vmem:[%s224 + $0x88] sm:$0xf]
      %v2117 = vld [vmem:[%s224 + $0x8c] sm:$0xf]
      %v2118 = vld [vmem:[%s224 + $0x90] sm:$0xf]
      %v2119 = vld [vmem:[%s224 + $0x94] sm:$0xf]
      %v2120 = vld [vmem:[%s224 + $0x98] sm:$0xf]
      %v2121 = vld [vmem:[%s224 + $0x9c] sm:$0xf]
      %v2122 = vld [vmem:[%s224 + $0xa0] sm:$0x3]
      %s2123 = scalar_lea.vmem %s1, 96
      %v2124 = vld [vmem:[%s2123] sm:$0xf]
      %v2125 = vld [vmem:[%s2123 + $0x4] sm:$0xf]
      %v2126 = vld [vmem:[%s2123 + $0x8] sm:$0xf]
      %v2127 = vld [vmem:[%s2123 + $0xc] sm:$0xf]
      %v2165 = vunpack.c.l.b16 %v2086
      %v2166 = vunpack.c.l.b16 %v2087
      %v2167 = vunpack.c.l.b16 %v2088
      %v2168 = vunpack.c.l.b16 %v2089
      %v2169 = vunpack.c.l.b16 %v2090
      %v2170 = vunpack.c.l.b16 %v2091
      %v2171 = vunpack.c.l.b16 %v2092
      %v2172 = vunpack.c.l.b16 %v2093
      %v2173 = vunpack.c.l.b16 %v2094
      %v2174 = vunpack.c.l.b16 %v2095
      %v2175 = vunpack.c.l.b16 %v2096
      %v2176 = vunpack.c.l.b16 %v2097
      %v2177 = vunpack.c.l.b16 %v2098
      %v2178 = vunpack.c.l.b16 %v2099
      %v2179 = vunpack.c.l.b16 %v2100
      %v2180 = vunpack.c.l.b16 %v2101
      %v2181 = vunpack.c.l.b16 %v2102
      %v2182 = vunpack.c.l.b16 %v2103
      %v2183 = vunpack.c.l.b16 %v2104
      %v2184 = vunpack.c.l.b16 %v2105
      %v2185 = vunpack.c.l.b16 %v2106
      %v2186 = vunpack.c.l.b16 %v2107
      %v2187 = vunpack.c.l.b16 %v2108
      %v2188 = vunpack.c.l.b16 %v2109
      %v2189 = vunpack.c.l.b16 %v2110
      %v2190 = vunpack.c.l.b16 %v2111
      %v2191 = vunpack.c.l.b16 %v2112
      %v2192 = vunpack.c.l.b16 %v2113
      %v2193 = vunpack.c.l.b16 %v2114
      %v2194 = vunpack.c.l.b16 %v2115
      %v2195 = vunpack.c.l.b16 %v2116
      %v2196 = vunpack.c.l.b16 %v2117
      %v2197 = vunpack.c.l.b16 %v2118
      %v2198 = vunpack.c.l.b16 %v2119
      %v2199 = vunpack.c.l.b16 %v2120
      %v2200 = vunpack.c.l.b16 %v2121
      %v2201 = vunpack.c.l.b16 %v2122
      %v2202 = vpack.c.b16 %v2166, %v2165
      %v2203 = vpack.c.b16 %v2168, %v2167
      %v2204 = vpack.c.b16 %v2170, %v2169
      %v2205 = vpack.c.b16 %v2172, %v2171
      %v2206 = vpack.c.b16 %v2174, %v2173
      %v2207 = vpack.c.b16 %v2176, %v2175
      %v2208 = vpack.c.b16 %v2178, %v2177
      %v2209 = vpack.c.b16 %v2180, %v2179
      %v2210 = vpack.c.b16 %v2182, %v2181
      %v2211 = vpack.c.b16 %v2184, %v2183
      %v2212 = vpack.c.b16 %v2186, %v2185
      %v2213 = vpack.c.b16 %v2188, %v2187
      %v2214 = vpack.c.b16 %v2190, %v2189
      %v2215 = vpack.c.b16 %v2192, %v2191
      %v2216 = vpack.c.b16 %v2194, %v2193
      %v2217 = vpack.c.b16 %v2196, %v2195
      %v2218 = vpack.c.b16 %v2198, %v2197
      %v2219 = vpack.c.b16 %v2200, %v2199
      %v2220 = vpack.c.b16 %v2201, %v2201
      %v2221 = vrot.slane %v2202, 2
      %v2222 = vrot.slane %v2203, 2
      %v2223 = vsel %vm1847, %v2221, %v2222
      %v2224 = vrot.slane %v2204, 2
      %v2225 = vsel %vm1847, %v2222, %v2224
      %v2226 = vrot.slane %v2205, 2
      %v2227 = vsel %vm1847, %v2224, %v2226
      %v2228 = vrot.slane %v2206, 2
      %v2229 = vsel %vm1847, %v2226, %v2228
      %v2230 = vrot.slane %v2207, 2
      %v2231 = vsel %vm1847, %v2228, %v2230
      %v2232 = vrot.slane %v2208, 2
      %v2233 = vsel %vm1847, %v2230, %v2232
      %v2234 = vrot.slane %v2209, 2
      %v2235 = vsel %vm1847, %v2232, %v2234
      %v2236 = vrot.slane %v2210, 2
      %v2237 = vsel %vm1847, %v2234, %v2236
      %v2238 = vrot.slane %v2211, 2
      %v2239 = vsel %vm1847, %v2236, %v2238
      %v2240 = vrot.slane %v2212, 2
      %v2241 = vsel %vm1847, %v2238, %v2240
      %v2242 = vrot.slane %v2213, 2
      %v2243 = vsel %vm1847, %v2240, %v2242
      %v2244 = vrot.slane %v2214, 2
      %v2245 = vsel %vm1847, %v2242, %v2244
      %v2246 = vrot.slane %v2215, 2
      %v2247 = vsel %vm1847, %v2244, %v2246
      %v2248 = vrot.slane %v2216, 2
      %v2249 = vsel %vm1847, %v2246, %v2248
      %v2250 = vrot.slane %v2217, 2
      %v2251 = vsel %vm1847, %v2248, %v2250
      %v2252 = vrot.slane %v2218, 2
      %v2253 = vsel %vm1847, %v2250, %v2252
      %v2254 = vrot.slane %v2219, 2
      %v2255 = vsel %vm1847, %v2252, %v2254
      %v2256 = vrot.slane %v2220, 2
      %v2257 = vsel %vm1847, %v2254, %v2256
      %v2262 = vunpack.c.l.b16 %v2124
      %v2263 = vunpack.c.l.b16 %v2125
      %v2264 = vunpack.c.l.b16 %v2126
      %v2265 = vunpack.c.l.b16 %v2127
      %v2266 = vpack.c.b16 %v2263, %v2262
      %v2267 = vpack.c.b16 %v2265, %v2264
      %v2271 = vsel %vm535, %v2223, 0
      %v2274 = vsel %vm535, %v2225, 0
      %v2277 = vsel %vm535, %v2227, 0
      %v2280 = vsel %vm535, %v2229, 0
      %v2283 = vsel %vm535, %v2231, 0
      %v2286 = vsel %vm535, %v2233, 0
      %v2289 = vsel %vm535, %v2235, 0
      %v2292 = vsel %vm535, %v2237, 0
      %v2295 = vsel %vm535, %v2239, 0
      %v2298 = vsel %vm535, %v2241, 0
      %v2301 = vsel %vm535, %v2243, 0
      %v2304 = vsel %vm535, %v2245, 0
      %v2307 = vsel %vm535, %v2247, 0
      %v2310 = vsel %vm535, %v2249, 0
      %v2313 = vsel %vm535, %v2251, 0
      %v2316 = vsel %vm535, %v2253, 0
      %v2319 = vsel %vm535, %v2255, 0
      %v2322 = vsel %vm535, %v2257, 0
      %2324 = vmatpush.bf16.msra.mxu0 0
      %2325 = vmatpush.bf16.msra.mxu0 0
      %2326 = vmatpush.bf16.msra.mxu0 0
      %2327 = vmatpush.bf16.msra.mxu0 0
      %2328 = vmatpush.bf16.msra.mxu0 0
      %2329 = vmatpush.bf16.msra.mxu0 0
      %2330 = vmatpush.bf16.msra.mxu0 %v2267
      %2331 = vmatpush.bf16.msra.mxu0 %v2266
      %2332 = vmatmul.bf16.gmra.mxu0 %v2271
      %v2333 = vpop.f32.mrf.mxu0
      %v2334 = vadd.f32 0.0, %v2333
      %v2335 = vpop.f32.mrf.mxu0
      %v2336 = vadd.f32 0.0, %v2335
      %2337 = vmatmul.bf16.gmra.mxu0 %v2274
      %v2338 = vpop.f32.mrf.mxu0
      %v2339 = vadd.f32 0.0, %v2338
      %v2340 = vpop.f32.mrf.mxu0
      %v2341 = vadd.f32 0.0, %v2340
      %2342 = vmatmul.bf16.gmra.mxu0 %v2277
      %v2343 = vpop.f32.mrf.mxu0
      %v2344 = vadd.f32 0.0, %v2343
      %v2345 = vpop.f32.mrf.mxu0
      %v2346 = vadd.f32 0.0, %v2345
      %2347 = vmatmul.bf16.gmra.mxu0 %v2280
      %v2348 = vpop.f32.mrf.mxu0
      %v2349 = vadd.f32 0.0, %v2348
      %v2350 = vpop.f32.mrf.mxu0
      %v2351 = vadd.f32 0.0, %v2350
      %2352 = vmatmul.bf16.gmra.mxu0 %v2283
      %v2353 = vpop.f32.mrf.mxu0
      %v2354 = vadd.f32 0.0, %v2353
      %v2355 = vpop.f32.mrf.mxu0
      %v2356 = vadd.f32 0.0, %v2355
      %2357 = vmatmul.bf16.gmra.mxu0 %v2286
      %v2358 = vpop.f32.mrf.mxu0
      %v2359 = vadd.f32 0.0, %v2358
      %v2360 = vpop.f32.mrf.mxu0
      %v2361 = vadd.f32 0.0, %v2360
      %2362 = vmatmul.bf16.gmra.mxu0 %v2289
      %v2363 = vpop.f32.mrf.mxu0
      %v2364 = vadd.f32 0.0, %v2363
      %v2365 = vpop.f32.mrf.mxu0
      %v2366 = vadd.f32 0.0, %v2365
      %2367 = vmatmul.bf16.gmra.mxu0 %v2292
      %v2368 = vpop.f32.mrf.mxu0
      %v2369 = vadd.f32 0.0, %v2368
      %v2370 = vpop.f32.mrf.mxu0
      %v2371 = vadd.f32 0.0, %v2370
      %2372 = vmatmul.bf16.gmra.mxu0 %v2295
      %v2373 = vpop.f32.mrf.mxu0
      %v2374 = vadd.f32 0.0, %v2373
      %v2375 = vpop.f32.mrf.mxu0
      %v2376 = vadd.f32 0.0, %v2375
      %2377 = vmatmul.bf16.gmra.mxu0 %v2298
      %v2378 = vpop.f32.mrf.mxu0
      %v2379 = vadd.f32 0.0, %v2378
      %v2380 = vpop.f32.mrf.mxu0
      %v2381 = vadd.f32 0.0, %v2380
      %2382 = vmatmul.bf16.gmra.mxu0 %v2301
      %v2383 = vpop.f32.mrf.mxu0
      %v2384 = vadd.f32 0.0, %v2383
      %v2385 = vpop.f32.mrf.mxu0
      %v2386 = vadd.f32 0.0, %v2385
      %2387 = vmatmul.bf16.gmra.mxu0 %v2304
      %v2388 = vpop.f32.mrf.mxu0
      %v2389 = vadd.f32 0.0, %v2388
      %v2390 = vpop.f32.mrf.mxu0
      %v2391 = vadd.f32 0.0, %v2390
      %2392 = vmatmul.bf16.gmra.mxu0 %v2307
      %v2393 = vpop.f32.mrf.mxu0
      %v2394 = vadd.f32 0.0, %v2393
      %v2395 = vpop.f32.mrf.mxu0
      %v2396 = vadd.f32 0.0, %v2395
      %2397 = vmatmul.bf16.gmra.mxu0 %v2310
      %v2398 = vpop.f32.mrf.mxu0
      %v2399 = vadd.f32 0.0, %v2398
      %v2400 = vpop.f32.mrf.mxu0
      %v2401 = vadd.f32 0.0, %v2400
      %2402 = vmatmul.bf16.gmra.mxu0 %v2313
      %v2403 = vpop.f32.mrf.mxu0
      %v2404 = vadd.f32 0.0, %v2403
      %v2405 = vpop.f32.mrf.mxu0
      %v2406 = vadd.f32 0.0, %v2405
      %2407 = vmatmul.bf16.gmra.mxu0 %v2316
      %v2408 = vpop.f32.mrf.mxu0
      %v2409 = vadd.f32 0.0, %v2408
      %v2410 = vpop.f32.mrf.mxu0
      %v2411 = vadd.f32 0.0, %v2410
      %2412 = vmatmul.bf16.gmra.mxu0 %v2319
      %v2413 = vpop.f32.mrf.mxu0
      %v2414 = vadd.f32 0.0, %v2413
      %v2415 = vpop.f32.mrf.mxu0
      %v2416 = vadd.f32 0.0, %v2415
      %2417 = vmatmul.bf16.gmra.mxu0 %v2322
      %v2418 = vpop.f32.mrf.mxu0
      %v2419 = vadd.f32 0.0, %v2418
      %v2420 = vpop.f32.mrf.mxu0
      %v2421 = vadd.f32 0.0, %v2420
      %2422 = vdwg.mxu0
      %v2423 = vadd.f32 %v2050, %v2334
      %v2424 = vadd.f32 %v2051, %v2336
      %v2425 = vadd.f32 %v2052, %v2339
      %v2426 = vadd.f32 %v2053, %v2341
      %v2427 = vadd.f32 %v2054, %v2344
      %v2428 = vadd.f32 %v2055, %v2346
      %v2429 = vadd.f32 %v2056, %v2349
      %v2430 = vadd.f32 %v2057, %v2351
      %v2431 = vadd.f32 %v2058, %v2354
      %v2432 = vadd.f32 %v2059, %v2356
      %v2433 = vadd.f32 %v2060, %v2359
      %v2434 = vadd.f32 %v2061, %v2361
      %v2435 = vadd.f32 %v2062, %v2364
      %v2436 = vadd.f32 %v2063, %v2366
      %v2437 = vadd.f32 %v2064, %v2369
      %v2438 = vadd.f32 %v2065, %v2371
      %v2439 = vadd.f32 %v2066, %v2374
      %v2440 = vadd.f32 %v2067, %v2376
      %v2441 = vadd.f32 %v2068, %v2379
      %v2442 = vadd.f32 %v2069, %v2381
      %v2443 = vadd.f32 %v2070, %v2384
      %v2444 = vadd.f32 %v2071, %v2386
      %v2445 = vadd.f32 %v2072, %v2389
      %v2446 = vadd.f32 %v2073, %v2391
      %v2447 = vadd.f32 %v2074, %v2394
      %v2448 = vadd.f32 %v2075, %v2396
      %v2449 = vadd.f32 %v2076, %v2399
      %v2450 = vadd.f32 %v2077, %v2401
      %v2451 = vadd.f32 %v2078, %v2404
      %v2452 = vadd.f32 %v2079, %v2406
      %v2453 = vadd.f32 %v2080, %v2409
      %v2454 = vadd.f32 %v2081, %v2411
      %v2455 = vadd.f32 %v2082, %v2414
      %v2456 = vadd.f32 %v2083, %v2416
      %v2457 = vadd.f32 %v2084, %v2419
      %v2458 = vadd.f32 %v2085, %v2421
      %v2459 = vld [vmem:[%s224 + $0xa0] sm:$0x7]
      %s2460 = scalar_lea.vmem %s1, 112
      %v2461 = vld [vmem:[%s2460] sm:$0xf]
      %v2462 = vld [vmem:[%s2460 + $0x4] sm:$0xf]
      %v2463 = vld [vmem:[%s2460 + $0x8] sm:$0xf]
      %v2464 = vld [vmem:[%s2460 + $0xc] sm:$0xf]
      %v2466 = vunpack.c.l.b16 %v2459
      %v2467 = vpack.c.b16 %v2466, %v2466
      %vm2468 = vsmask.f32 5376
      %v2470 = vshrl.u32 %v2202, 16
      %v2472 = vrot.slane %v2470, 2
      %v2473 = vshll.u32 %v2202, 16
      %v2475 = vrot.slane %v2473, 3
      %v2476 = vor.u32 %v2472, %v2475
      %v2478 = vshrl.u32 %v2203, 16
      %v2480 = vrot.slane %v2478, 2
      %v2481 = vshll.u32 %v2203, 16
      %v2483 = vrot.slane %v2481, 3
      %v2484 = vor.u32 %v2480, %v2483
      %v2485 = vsel %vm2468, %v2476, %v2484
      %v2487 = vshrl.u32 %v2204, 16
      %v2489 = vrot.slane %v2487, 2
      %v2490 = vshll.u32 %v2204, 16
      %v2492 = vrot.slane %v2490, 3
      %v2493 = vor.u32 %v2489, %v2492
      %v2494 = vsel %vm2468, %v2484, %v2493
      %v2496 = vshrl.u32 %v2205, 16
      %v2498 = vrot.slane %v2496, 2
      %v2499 = vshll.u32 %v2205, 16
      %v2501 = vrot.slane %v2499, 3
      %v2502 = vor.u32 %v2498, %v2501
      %v2503 = vsel %vm2468, %v2493, %v2502
      %v2505 = vshrl.u32 %v2206, 16
      %v2507 = vrot.slane %v2505, 2
      %v2508 = vshll.u32 %v2206, 16
      %v2510 = vrot.slane %v2508, 3
      %v2511 = vor.u32 %v2507, %v2510
      %v2512 = vsel %vm2468, %v2502, %v2511
      %v2514 = vshrl.u32 %v2207, 16
      %v2516 = vrot.slane %v2514, 2
      %v2517 = vshll.u32 %v2207, 16
      %v2519 = vrot.slane %v2517, 3
      %v2520 = vor.u32 %v2516, %v2519
      %v2521 = vsel %vm2468, %v2511, %v2520
      %v2523 = vshrl.u32 %v2208, 16
      %v2525 = vrot.slane %v2523, 2
      %v2526 = vshll.u32 %v2208, 16
      %v2528 = vrot.slane %v2526, 3
      %v2529 = vor.u32 %v2525, %v2528
      %v2530 = vsel %vm2468, %v2520, %v2529
      %v2532 = vshrl.u32 %v2209, 16
      %v2534 = vrot.slane %v2532, 2
      %v2535 = vshll.u32 %v2209, 16
      %v2537 = vrot.slane %v2535, 3
      %v2538 = vor.u32 %v2534, %v2537
      %v2539 = vsel %vm2468, %v2529, %v2538
      %v2541 = vshrl.u32 %v2210, 16
      %v2543 = vrot.slane %v2541, 2
      %v2544 = vshll.u32 %v2210, 16
      %v2546 = vrot.slane %v2544, 3
      %v2547 = vor.u32 %v2543, %v2546
      %v2548 = vsel %vm2468, %v2538, %v2547
      %v2550 = vshrl.u32 %v2211, 16
      %v2552 = vrot.slane %v2550, 2
      %v2553 = vshll.u32 %v2211, 16
      %v2555 = vrot.slane %v2553, 3
      %v2556 = vor.u32 %v2552, %v2555
      %v2557 = vsel %vm2468, %v2547, %v2556
      %v2559 = vshrl.u32 %v2212, 16
      %v2561 = vrot.slane %v2559, 2
      %v2562 = vshll.u32 %v2212, 16
      %v2564 = vrot.slane %v2562, 3
      %v2565 = vor.u32 %v2561, %v2564
      %v2566 = vsel %vm2468, %v2556, %v2565
      %v2568 = vshrl.u32 %v2213, 16
      %v2570 = vrot.slane %v2568, 2
      %v2571 = vshll.u32 %v2213, 16
      %v2573 = vrot.slane %v2571, 3
      %v2574 = vor.u32 %v2570, %v2573
      %v2575 = vsel %vm2468, %v2565, %v2574
      %v2577 = vshrl.u32 %v2214, 16
      %v2579 = vrot.slane %v2577, 2
      %v2580 = vshll.u32 %v2214, 16
      %v2582 = vrot.slane %v2580, 3
      %v2583 = vor.u32 %v2579, %v2582
      %v2584 = vsel %vm2468, %v2574, %v2583
      %v2586 = vshrl.u32 %v2215, 16
      %v2588 = vrot.slane %v2586, 2
      %v2589 = vshll.u32 %v2215, 16
      %v2591 = vrot.slane %v2589, 3
      %v2592 = vor.u32 %v2588, %v2591
      %v2593 = vsel %vm2468, %v2583, %v2592
      %v2595 = vshrl.u32 %v2216, 16
      %v2597 = vrot.slane %v2595, 2
      %v2598 = vshll.u32 %v2216, 16
      %v2600 = vrot.slane %v2598, 3
      %v2601 = vor.u32 %v2597, %v2600
      %v2602 = vsel %vm2468, %v2592, %v2601
      %v2604 = vshrl.u32 %v2217, 16
      %v2606 = vrot.slane %v2604, 2
      %v2607 = vshll.u32 %v2217, 16
      %v2609 = vrot.slane %v2607, 3
      %v2610 = vor.u32 %v2606, %v2609
      %v2611 = vsel %vm2468, %v2601, %v2610
      %v2613 = vshrl.u32 %v2218, 16
      %v2615 = vrot.slane %v2613, 2
      %v2616 = vshll.u32 %v2218, 16
      %v2618 = vrot.slane %v2616, 3
      %v2619 = vor.u32 %v2615, %v2618
      %v2620 = vsel %vm2468, %v2610, %v2619
      %v2622 = vshrl.u32 %v2219, 16
      %v2624 = vrot.slane %v2622, 2
      %v2625 = vshll.u32 %v2219, 16
      %v2627 = vrot.slane %v2625, 3
      %v2628 = vor.u32 %v2624, %v2627
      %v2629 = vsel %vm2468, %v2619, %v2628
      %v2631 = vshrl.u32 %v2467, 16
      %v2633 = vrot.slane %v2631, 2
      %v2634 = vshll.u32 %v2467, 16
      %v2636 = vrot.slane %v2634, 3
      %v2637 = vor.u32 %v2633, %v2636
      %v2638 = vsel %vm2468, %v2628, %v2637
      %v2643 = vunpack.c.l.b16 %v2461
      %v2644 = vunpack.c.l.b16 %v2462
      %v2645 = vunpack.c.l.b16 %v2463
      %v2646 = vunpack.c.l.b16 %v2464
      %v2647 = vpack.c.b16 %v2644, %v2643
      %v2648 = vpack.c.b16 %v2646, %v2645
      %v2652 = vsel %vm535, %v2485, 0
      %v2655 = vsel %vm535, %v2494, 0
      %v2658 = vsel %vm535, %v2503, 0
      %v2661 = vsel %vm535, %v2512, 0
      %v2664 = vsel %vm535, %v2521, 0
      %v2667 = vsel %vm535, %v2530, 0
      %v2670 = vsel %vm535, %v2539, 0
      %v2673 = vsel %vm535, %v2548, 0
      %v2676 = vsel %vm535, %v2557, 0
      %v2679 = vsel %vm535, %v2566, 0
      %v2682 = vsel %vm535, %v2575, 0
      %v2685 = vsel %vm535, %v2584, 0
      %v2688 = vsel %vm535, %v2593, 0
      %v2691 = vsel %vm535, %v2602, 0
      %v2694 = vsel %vm535, %v2611, 0
      %v2697 = vsel %vm535, %v2620, 0
      %v2700 = vsel %vm535, %v2629, 0
      %v2703 = vsel %vm535, %v2638, 0
      %2705 = vmatpush.bf16.msra.mxu0 0
      %2706 = vmatpush.bf16.msra.mxu0 0
      %2707 = vmatpush.bf16.msra.mxu0 0
      %2708 = vmatpush.bf16.msra.mxu0 0
      %2709 = vmatpush.bf16.msra.mxu0 0
      %2710 = vmatpush.bf16.msra.mxu0 0
      %2711 = vmatpush.bf16.msra.mxu0 %v2648
      %2712 = vmatpush.bf16.msra.mxu0 %v2647
      %2713 = vmatmul.bf16.gmra.mxu0 %v2652
      %v2714 = vpop.f32.mrf.mxu0
      %v2715 = vadd.f32 0.0, %v2714
      %v2716 = vpop.f32.mrf.mxu0
      %v2717 = vadd.f32 0.0, %v2716
      %2718 = vmatmul.bf16.gmra.mxu0 %v2655
      %v2719 = vpop.f32.mrf.mxu0
      %v2720 = vadd.f32 0.0, %v2719
      %v2721 = vpop.f32.mrf.mxu0
      %v2722 = vadd.f32 0.0, %v2721
      %2723 = vmatmul.bf16.gmra.mxu0 %v2658
      %v2724 = vpop.f32.mrf.mxu0
      %v2725 = vadd.f32 0.0, %v2724
      %v2726 = vpop.f32.mrf.mxu0
      %v2727 = vadd.f32 0.0, %v2726
      %2728 = vmatmul.bf16.gmra.mxu0 %v2661
      %v2729 = vpop.f32.mrf.mxu0
      %v2730 = vadd.f32 0.0, %v2729
      %v2731 = vpop.f32.mrf.mxu0
      %v2732 = vadd.f32 0.0, %v2731
      %2733 = vmatmul.bf16.gmra.mxu0 %v2664
      %v2734 = vpop.f32.mrf.mxu0
      %v2735 = vadd.f32 0.0, %v2734
      %v2736 = vpop.f32.mrf.mxu0
      %v2737 = vadd.f32 0.0, %v2736
      %2738 = vmatmul.bf16.gmra.mxu0 %v2667
      %v2739 = vpop.f32.mrf.mxu0
      %v2740 = vadd.f32 0.0, %v2739
      %v2741 = vpop.f32.mrf.mxu0
      %v2742 = vadd.f32 0.0, %v2741
      %2743 = vmatmul.bf16.gmra.mxu0 %v2670
      %v2744 = vpop.f32.mrf.mxu0
      %v2745 = vadd.f32 0.0, %v2744
      %v2746 = vpop.f32.mrf.mxu0
      %v2747 = vadd.f32 0.0, %v2746
      %2748 = vmatmul.bf16.gmra.mxu0 %v2673
      %v2749 = vpop.f32.mrf.mxu0
      %v2750 = vadd.f32 0.0, %v2749
      %v2751 = vpop.f32.mrf.mxu0
      %v2752 = vadd.f32 0.0, %v2751
      %2753 = vmatmul.bf16.gmra.mxu0 %v2676
      %v2754 = vpop.f32.mrf.mxu0
      %v2755 = vadd.f32 0.0, %v2754
      %v2756 = vpop.f32.mrf.mxu0
      %v2757 = vadd.f32 0.0, %v2756
      %2758 = vmatmul.bf16.gmra.mxu0 %v2679
      %v2759 = vpop.f32.mrf.mxu0
      %v2760 = vadd.f32 0.0, %v2759
      %v2761 = vpop.f32.mrf.mxu0
      %v2762 = vadd.f32 0.0, %v2761
      %2763 = vmatmul.bf16.gmra.mxu0 %v2682
      %v2764 = vpop.f32.mrf.mxu0
      %v2765 = vadd.f32 0.0, %v2764
      %v2766 = vpop.f32.mrf.mxu0
      %v2767 = vadd.f32 0.0, %v2766
      %2768 = vmatmul.bf16.gmra.mxu0 %v2685
      %v2769 = vpop.f32.mrf.mxu0
      %v2770 = vadd.f32 0.0, %v2769
      %v2771 = vpop.f32.mrf.mxu0
      %v2772 = vadd.f32 0.0, %v2771
      %2773 = vmatmul.bf16.gmra.mxu0 %v2688
      %v2774 = vpop.f32.mrf.mxu0
      %v2775 = vadd.f32 0.0, %v2774
      %v2776 = vpop.f32.mrf.mxu0
      %v2777 = vadd.f32 0.0, %v2776
      %2778 = vmatmul.bf16.gmra.mxu0 %v2691
      %v2779 = vpop.f32.mrf.mxu0
      %v2780 = vadd.f32 0.0, %v2779
      %v2781 = vpop.f32.mrf.mxu0
      %v2782 = vadd.f32 0.0, %v2781
      %2783 = vmatmul.bf16.gmra.mxu0 %v2694
      %v2784 = vpop.f32.mrf.mxu0
      %v2785 = vadd.f32 0.0, %v2784
      %v2786 = vpop.f32.mrf.mxu0
      %v2787 = vadd.f32 0.0, %v2786
      %2788 = vmatmul.bf16.gmra.mxu0 %v2697
      %v2789 = vpop.f32.mrf.mxu0
      %v2790 = vadd.f32 0.0, %v2789
      %v2791 = vpop.f32.mrf.mxu0
      %v2792 = vadd.f32 0.0, %v2791
      %2793 = vmatmul.bf16.gmra.mxu0 %v2700
      %v2794 = vpop.f32.mrf.mxu0
      %v2795 = vadd.f32 0.0, %v2794
      %v2796 = vpop.f32.mrf.mxu0
      %v2797 = vadd.f32 0.0, %v2796
      %2798 = vmatmul.bf16.gmra.mxu0 %v2703
      %v2799 = vpop.f32.mrf.mxu0
      %v2800 = vadd.f32 0.0, %v2799
      %v2801 = vpop.f32.mrf.mxu0
      %v2802 = vadd.f32 0.0, %v2801
      %2803 = vdwg.mxu0
      %v2804 = vadd.f32 %v2423, %v2715
      %v2805 = vadd.f32 %v2424, %v2717
      %v2806 = vadd.f32 %v2425, %v2720
      %v2807 = vadd.f32 %v2426, %v2722
      %v2808 = vadd.f32 %v2427, %v2725
      %v2809 = vadd.f32 %v2428, %v2727
      %v2810 = vadd.f32 %v2429, %v2730
      %v2811 = vadd.f32 %v2430, %v2732
      %v2812 = vadd.f32 %v2431, %v2735
      %v2813 = vadd.f32 %v2432, %v2737
      %v2814 = vadd.f32 %v2433, %v2740
      %v2815 = vadd.f32 %v2434, %v2742
      %v2816 = vadd.f32 %v2435, %v2745
      %v2817 = vadd.f32 %v2436, %v2747
      %v2818 = vadd.f32 %v2437, %v2750
      %v2819 = vadd.f32 %v2438, %v2752
      %v2820 = vadd.f32 %v2439, %v2755
      %v2821 = vadd.f32 %v2440, %v2757
      %v2822 = vadd.f32 %v2441, %v2760
      %v2823 = vadd.f32 %v2442, %v2762
      %v2824 = vadd.f32 %v2443, %v2765
      %v2825 = vadd.f32 %v2444, %v2767
      %v2826 = vadd.f32 %v2445, %v2770
      %v2827 = vadd.f32 %v2446, %v2772
      %v2828 = vadd.f32 %v2447, %v2775
      %v2829 = vadd.f32 %v2448, %v2777
      %v2830 = vadd.f32 %v2449, %v2780
      %v2831 = vadd.f32 %v2450, %v2782
      %v2832 = vadd.f32 %v2451, %v2785
      %v2833 = vadd.f32 %v2452, %v2787
      %v2834 = vadd.f32 %v2453, %v2790
      %v2835 = vadd.f32 %v2454, %v2792
      %v2836 = vadd.f32 %v2455, %v2795
      %v2837 = vadd.f32 %v2456, %v2797
      %v2838 = vadd.f32 %v2457, %v2800
      %v2839 = vadd.f32 %v2458, %v2802
      %v2840 = vld [vmem:[%s224 + $0x10] sm:$0x8]
      %s2841 = scalar_lea.vmem %s1, 128
      %v2842 = vld [vmem:[%s2841] sm:$0xf]
      %v2843 = vld [vmem:[%s2841 + $0x4] sm:$0xf]
      %v2844 = vld [vmem:[%s2841 + $0x8] sm:$0xf]
      %v2845 = vld [vmem:[%s2841 + $0xc] sm:$0xf]
      %v2847 = vunpack.c.l.b16 %v2840
      %v2848 = vpack.c.b16 %v2166, %v2847
      %vm2849 = vcmask 1044480
      %v2850 = vrot.slane %v2848, 3
      %v2851 = vrot.slane %v2203, 3
      %v2852 = vsel %vm2849, %v2850, %v2851
      %v2853 = vrot.slane %v2204, 3
      %v2854 = vsel %vm2849, %v2851, %v2853
      %v2855 = vrot.slane %v2205, 3
      %v2856 = vsel %vm2849, %v2853, %v2855
      %v2857 = vrot.slane %v2206, 3
      %v2858 = vsel %vm2849, %v2855, %v2857
      %v2859 = vrot.slane %v2207, 3
      %v2860 = vsel %vm2849, %v2857, %v2859
      %v2861 = vrot.slane %v2208, 3
      %v2862 = vsel %vm2849, %v2859, %v2861
      %v2863 = vrot.slane %v2209, 3
      %v2864 = vsel %vm2849, %v2861, %v2863
      %v2865 = vrot.slane %v2210, 3
      %v2866 = vsel %vm2849, %v2863, %v2865
      %v2867 = vrot.slane %v2211, 3
      %v2868 = vsel %vm2849, %v2865, %v2867
      %v2869 = vrot.slane %v2212, 3
      %v2870 = vsel %vm2849, %v2867, %v2869
      %v2871 = vrot.slane %v2213, 3
      %v2872 = vsel %vm2849, %v2869, %v2871
      %v2873 = vrot.slane %v2214, 3
      %v2874 = vsel %vm2849, %v2871, %v2873
      %v2875 = vrot.slane %v2215, 3
      %v2876 = vsel %vm2849, %v2873, %v2875
      %v2877 = vrot.slane %v2216, 3
      %v2878 = vsel %vm2849, %v2875, %v2877
      %v2879 = vrot.slane %v2217, 3
      %v2880 = vsel %vm2849, %v2877, %v2879
      %v2881 = vrot.slane %v2218, 3
      %v2882 = vsel %vm2849, %v2879, %v2881
      %v2883 = vrot.slane %v2219, 3
      %v2884 = vsel %vm2849, %v2881, %v2883
      %v2885 = vrot.slane %v2467, 3
      %v2886 = vsel %vm2849, %v2883, %v2885
      %v2891 = vunpack.c.l.b16 %v2842
      %v2892 = vunpack.c.l.b16 %v2843
      %v2893 = vunpack.c.l.b16 %v2844
      %v2894 = vunpack.c.l.b16 %v2845
      %v2895 = vpack.c.b16 %v2892, %v2891
      %v2896 = vpack.c.b16 %v2894, %v2893
      %v2900 = vsel %vm535, %v2852, 0
      %v2903 = vsel %vm535, %v2854, 0
      %v2906 = vsel %vm535, %v2856, 0
      %v2909 = vsel %vm535, %v2858, 0
      %v2912 = vsel %vm535, %v2860, 0
      %v2915 = vsel %vm535, %v2862, 0
      %v2918 = vsel %vm535, %v2864, 0
      %v2921 = vsel %vm535, %v2866, 0
      %v2924 = vsel %vm535, %v2868, 0
      %v2927 = vsel %vm535, %v2870, 0
      %v2930 = vsel %vm535, %v2872, 0
      %v2933 = vsel %vm535, %v2874, 0
      %v2936 = vsel %vm535, %v2876, 0
      %v2939 = vsel %vm535, %v2878, 0
      %v2942 = vsel %vm535, %v2880, 0
      %v2945 = vsel %vm535, %v2882, 0
      %v2948 = vsel %vm535, %v2884, 0
      %v2951 = vsel %vm535, %v2886, 0
      %2953 = vmatpush.bf16.msra.mxu0 0
      %2954 = vmatpush.bf16.msra.mxu0 0
      %2955 = vmatpush.bf16.msra.mxu0 0
      %2956 = vmatpush.bf16.msra.mxu0 0
      %2957 = vmatpush.bf16.msra.mxu0 0
      %2958 = vmatpush.bf16.msra.mxu0 0
      %2959 = vmatpush.bf16.msra.mxu0 %v2896
      %2960 = vmatpush.bf16.msra.mxu0 %v2895
      %2961 = vmatmul.bf16.gmra.mxu0 %v2900
      %v2962 = vpop.f32.mrf.mxu0
      %v2963 = vadd.f32 0.0, %v2962
      %v2964 = vpop.f32.mrf.mxu0
      %v2965 = vadd.f32 0.0, %v2964
      %2966 = vmatmul.bf16.gmra.mxu0 %v2903
      %v2967 = vpop.f32.mrf.mxu0
      %v2968 = vadd.f32 0.0, %v2967
      %v2969 = vpop.f32.mrf.mxu0
      %v2970 = vadd.f32 0.0, %v2969
      %2971 = vmatmul.bf16.gmra.mxu0 %v2906
      %v2972 = vpop.f32.mrf.mxu0
      %v2973 = vadd.f32 0.0, %v2972
      %v2974 = vpop.f32.mrf.mxu0
      %v2975 = vadd.f32 0.0, %v2974
      %2976 = vmatmul.bf16.gmra.mxu0 %v2909
      %v2977 = vpop.f32.mrf.mxu0
      %v2978 = vadd.f32 0.0, %v2977
      %v2979 = vpop.f32.mrf.mxu0
      %v2980 = vadd.f32 0.0, %v2979
      %2981 = vmatmul.bf16.gmra.mxu0 %v2912
      %v2982 = vpop.f32.mrf.mxu0
      %v2983 = vadd.f32 0.0, %v2982
      %v2984 = vpop.f32.mrf.mxu0
      %v2985 = vadd.f32 0.0, %v2984
      %2986 = vmatmul.bf16.gmra.mxu0 %v2915
      %v2987 = vpop.f32.mrf.mxu0
      %v2988 = vadd.f32 0.0, %v2987
      %v2989 = vpop.f32.mrf.mxu0
      %v2990 = vadd.f32 0.0, %v2989
      %2991 = vmatmul.bf16.gmra.mxu0 %v2918
      %v2992 = vpop.f32.mrf.mxu0
      %v2993 = vadd.f32 0.0, %v2992
      %v2994 = vpop.f32.mrf.mxu0
      %v2995 = vadd.f32 0.0, %v2994
      %2996 = vmatmul.bf16.gmra.mxu0 %v2921
      %v2997 = vpop.f32.mrf.mxu0
      %v2998 = vadd.f32 0.0, %v2997
      %v2999 = vpop.f32.mrf.mxu0
      %v3000 = vadd.f32 0.0, %v2999
      %3001 = vmatmul.bf16.gmra.mxu0 %v2924
      %v3002 = vpop.f32.mrf.mxu0
      %v3003 = vadd.f32 0.0, %v3002
      %v3004 = vpop.f32.mrf.mxu0
      %v3005 = vadd.f32 0.0, %v3004
      %3006 = vmatmul.bf16.gmra.mxu0 %v2927
      %v3007 = vpop.f32.mrf.mxu0
      %v3008 = vadd.f32 0.0, %v3007
      %v3009 = vpop.f32.mrf.mxu0
      %v3010 = vadd.f32 0.0, %v3009
      %3011 = vmatmul.bf16.gmra.mxu0 %v2930
      %v3012 = vpop.f32.mrf.mxu0
      %v3013 = vadd.f32 0.0, %v3012
      %v3014 = vpop.f32.mrf.mxu0
      %v3015 = vadd.f32 0.0, %v3014
      %3016 = vmatmul.bf16.gmra.mxu0 %v2933
      %v3017 = vpop.f32.mrf.mxu0
      %v3018 = vadd.f32 0.0, %v3017
      %v3019 = vpop.f32.mrf.mxu0
      %v3020 = vadd.f32 0.0, %v3019
      %3021 = vmatmul.bf16.gmra.mxu0 %v2936
      %v3022 = vpop.f32.mrf.mxu0
      %v3023 = vadd.f32 0.0, %v3022
      %v3024 = vpop.f32.mrf.mxu0
      %v3025 = vadd.f32 0.0, %v3024
      %3026 = vmatmul.bf16.gmra.mxu0 %v2939
      %v3027 = vpop.f32.mrf.mxu0
      %v3028 = vadd.f32 0.0, %v3027
      %v3029 = vpop.f32.mrf.mxu0
      %v3030 = vadd.f32 0.0, %v3029
      %3031 = vmatmul.bf16.gmra.mxu0 %v2942
      %v3032 = vpop.f32.mrf.mxu0
      %v3033 = vadd.f32 0.0, %v3032
      %v3034 = vpop.f32.mrf.mxu0
      %v3035 = vadd.f32 0.0, %v3034
      %3036 = vmatmul.bf16.gmra.mxu0 %v2945
      %v3037 = vpop.f32.mrf.mxu0
      %v3038 = vadd.f32 0.0, %v3037
      %v3039 = vpop.f32.mrf.mxu0
      %v3040 = vadd.f32 0.0, %v3039
      %3041 = vmatmul.bf16.gmra.mxu0 %v2948
      %v3042 = vpop.f32.mrf.mxu0
      %v3043 = vadd.f32 0.0, %v3042
      %v3044 = vpop.f32.mrf.mxu0
      %v3045 = vadd.f32 0.0, %v3044
      %3046 = vmatmul.bf16.gmra.mxu0 %v2951
      %v3047 = vpop.f32.mrf.mxu0
      %v3048 = vadd.f32 0.0, %v3047
      %v3049 = vpop.f32.mrf.mxu0
      %v3050 = vadd.f32 0.0, %v3049
      %3051 = vdwg.mxu0
      %v3052 = vadd.f32 %v2804, %v2963
      %v3053 = vadd.f32 %v2805, %v2965
      %v3054 = vadd.f32 %v2806, %v2968
      %v3055 = vadd.f32 %v2807, %v2970
      %v3056 = vadd.f32 %v2808, %v2973
      %v3057 = vadd.f32 %v2809, %v2975
      %v3058 = vadd.f32 %v2810, %v2978
      %v3059 = vadd.f32 %v2811, %v2980
      %v3060 = vadd.f32 %v2812, %v2983
      %v3061 = vadd.f32 %v2813, %v2985
      %v3062 = vadd.f32 %v2814, %v2988
      %v3063 = vadd.f32 %v2815, %v2990
      %v3064 = vadd.f32 %v2816, %v2993
      %v3065 = vadd.f32 %v2817, %v2995
      %v3066 = vadd.f32 %v2818, %v2998
      %v3067 = vadd.f32 %v2819, %v3000
      %v3068 = vadd.f32 %v2820, %v3003
      %v3069 = vadd.f32 %v2821, %v3005
      %v3070 = vadd.f32 %v2822, %v3008
      %v3071 = vadd.f32 %v2823, %v3010
      %v3072 = vadd.f32 %v2824, %v3013
      %v3073 = vadd.f32 %v2825, %v3015
      %v3074 = vadd.f32 %v2826, %v3018
      %v3075 = vadd.f32 %v2827, %v3020
      %v3076 = vadd.f32 %v2828, %v3023
      %v3077 = vadd.f32 %v2829, %v3025
      %v3078 = vadd.f32 %v2830, %v3028
      %v3079 = vadd.f32 %v2831, %v3030
      %v3080 = vadd.f32 %v2832, %v3033
      %v3081 = vadd.f32 %v2833, %v3035
      %v3082 = vadd.f32 %v2834, %v3038
      %v3083 = vadd.f32 %v2835, %v3040
      %v3084 = vadd.f32 %v2836, %v3043
      %v3085 = vadd.f32 %v2837, %v3045
      %v3086 = vadd.f32 %v2838, %v3048
      %v3087 = vadd.f32 %v2839, %v3050
      %v3088 = vld [vmem:[%s2] sm:$0x1]
      %v3090 = vperm.slane %v3088, 0
      %v3092 = vmul.f32 %v3052, %v3090
      %v3093 = vmul.f32 %v3053, %v3090
      %v3094 = vmul.f32 %v3054, %v3090
      %v3095 = vmul.f32 %v3055, %v3090
      %v3096 = vmul.f32 %v3056, %v3090
      %v3097 = vmul.f32 %v3057, %v3090
      %v3098 = vmul.f32 %v3058, %v3090
      %v3099 = vmul.f32 %v3059, %v3090
      %v3100 = vmul.f32 %v3060, %v3090
      %v3101 = vmul.f32 %v3061, %v3090
      %v3102 = vmul.f32 %v3062, %v3090
      %v3103 = vmul.f32 %v3063, %v3090
      %v3104 = vmul.f32 %v3064, %v3090
      %v3105 = vmul.f32 %v3065, %v3090
      %v3106 = vmul.f32 %v3066, %v3090
      %v3107 = vmul.f32 %v3067, %v3090
      %v3108 = vmul.f32 %v3068, %v3090
      %v3109 = vmul.f32 %v3069, %v3090
      %v3110 = vmul.f32 %v3070, %v3090
      %v3111 = vmul.f32 %v3071, %v3090
      %v3112 = vmul.f32 %v3072, %v3090
      %v3113 = vmul.f32 %v3073, %v3090
      %v3114 = vmul.f32 %v3074, %v3090
      %v3115 = vmul.f32 %v3075, %v3090
      %v3116 = vmul.f32 %v3076, %v3090
      %v3117 = vmul.f32 %v3077, %v3090
      %v3118 = vmul.f32 %v3078, %v3090
      %v3119 = vmul.f32 %v3079, %v3090
      %v3120 = vmul.f32 %v3080, %v3090
      %v3121 = vmul.f32 %v3081, %v3090
      %v3122 = vmul.f32 %v3082, %v3090
      %v3123 = vmul.f32 %v3083, %v3090
      %v3124 = vmul.f32 %v3084, %v3090
      %v3125 = vmul.f32 %v3085, %v3090
      %v3126 = vmul.f32 %v3086, %v3090
      %v3127 = vmul.f32 %v3087, %v3090
      %v3128 = vld [vmem:[%s3] sm:$0x1]
      %v3130 = vperm.slane %v3128, 0
      %v3132 = vadd.f32 %v3092, %v3130
      %v3133 = vadd.f32 %v3093, %v3130
      %v3134 = vadd.f32 %v3094, %v3130
      %v3135 = vadd.f32 %v3095, %v3130
      %v3136 = vadd.f32 %v3096, %v3130
      %v3137 = vadd.f32 %v3097, %v3130
      %v3138 = vadd.f32 %v3098, %v3130
      %v3139 = vadd.f32 %v3099, %v3130
      %v3140 = vadd.f32 %v3100, %v3130
      %v3141 = vadd.f32 %v3101, %v3130
      %v3142 = vadd.f32 %v3102, %v3130
      %v3143 = vadd.f32 %v3103, %v3130
      %v3144 = vadd.f32 %v3104, %v3130
      %v3145 = vadd.f32 %v3105, %v3130
      %v3146 = vadd.f32 %v3106, %v3130
      %v3147 = vadd.f32 %v3107, %v3130
      %v3148 = vadd.f32 %v3108, %v3130
      %v3149 = vadd.f32 %v3109, %v3130
      %v3150 = vadd.f32 %v3110, %v3130
      %v3151 = vadd.f32 %v3111, %v3130
      %v3152 = vadd.f32 %v3112, %v3130
      %v3153 = vadd.f32 %v3113, %v3130
      %v3154 = vadd.f32 %v3114, %v3130
      %v3155 = vadd.f32 %v3115, %v3130
      %v3156 = vadd.f32 %v3116, %v3130
      %v3157 = vadd.f32 %v3117, %v3130
      %v3158 = vadd.f32 %v3118, %v3130
      %v3159 = vadd.f32 %v3119, %v3130
      %v3160 = vadd.f32 %v3120, %v3130
      %v3161 = vadd.f32 %v3121, %v3130
      %v3162 = vadd.f32 %v3122, %v3130
      %v3163 = vadd.f32 %v3123, %v3130
      %v3164 = vadd.f32 %v3124, %v3130
      %v3165 = vadd.f32 %v3125, %v3130
      %v3166 = vadd.f32 %v3126, %v3130
      %v3167 = vadd.f32 %v3127, %v3130
      %vm3168 = vcmp.ge.f32.partialorder %v3132, 0.0
      %vm3169 = vcmp.ge.f32.partialorder %v3133, 0.0
      %vm3170 = vcmp.ge.f32.partialorder %v3134, 0.0
      %vm3171 = vcmp.ge.f32.partialorder %v3135, 0.0
      %vm3172 = vcmp.ge.f32.partialorder %v3136, 0.0
      %vm3173 = vcmp.ge.f32.partialorder %v3137, 0.0
      %vm3174 = vcmp.ge.f32.partialorder %v3138, 0.0
      %vm3175 = vcmp.ge.f32.partialorder %v3139, 0.0
      %vm3176 = vcmp.ge.f32.partialorder %v3140, 0.0
      %vm3177 = vcmp.ge.f32.partialorder %v3141, 0.0
      %vm3178 = vcmp.ge.f32.partialorder %v3142, 0.0
      %vm3179 = vcmp.ge.f32.partialorder %v3143, 0.0
      %vm3180 = vcmp.ge.f32.partialorder %v3144, 0.0
      %vm3181 = vcmp.ge.f32.partialorder %v3145, 0.0
      %vm3182 = vcmp.ge.f32.partialorder %v3146, 0.0
      %vm3183 = vcmp.ge.f32.partialorder %v3147, 0.0
      %vm3184 = vcmp.ge.f32.partialorder %v3148, 0.0
      %vm3185 = vcmp.ge.f32.partialorder %v3149, 0.0
      %vm3186 = vcmp.ge.f32.partialorder %v3150, 0.0
      %vm3187 = vcmp.ge.f32.partialorder %v3151, 0.0
      %vm3188 = vcmp.ge.f32.partialorder %v3152, 0.0
      %vm3189 = vcmp.ge.f32.partialorder %v3153, 0.0
      %vm3190 = vcmp.ge.f32.partialorder %v3154, 0.0
      %vm3191 = vcmp.ge.f32.partialorder %v3155, 0.0
      %vm3192 = vcmp.ge.f32.partialorder %v3156, 0.0
      %vm3193 = vcmp.ge.f32.partialorder %v3157, 0.0
      %vm3194 = vcmp.ge.f32.partialorder %v3158, 0.0
      %vm3195 = vcmp.ge.f32.partialorder %v3159, 0.0
      %vm3196 = vcmp.ge.f32.partialorder %v3160, 0.0
      %vm3197 = vcmp.ge.f32.partialorder %v3161, 0.0
      %vm3198 = vcmp.ge.f32.partialorder %v3162, 0.0
      %vm3199 = vcmp.ge.f32.partialorder %v3163, 0.0
      %vm3200 = vcmp.ge.f32.partialorder %v3164, 0.0
      %vm3201 = vcmp.ge.f32.partialorder %v3165, 0.0
      %vm3202 = vcmp.ge.f32.partialorder %v3166, 0.0
      %vm3203 = vcmp.ge.f32.partialorder %v3167, 0.0
      %v3204 = vmul.f32 %v3132, 0.01
      %v3205 = vmul.f32 %v3133, 0.01
      %v3206 = vmul.f32 %v3134, 0.01
      %v3207 = vmul.f32 %v3135, 0.01
      %v3208 = vmul.f32 %v3136, 0.01
      %v3209 = vmul.f32 %v3137, 0.01
      %v3210 = vmul.f32 %v3138, 0.01
      %v3211 = vmul.f32 %v3139, 0.01
      %v3212 = vmul.f32 %v3140, 0.01
      %v3213 = vmul.f32 %v3141, 0.01
      %v3214 = vmul.f32 %v3142, 0.01
      %v3215 = vmul.f32 %v3143, 0.01
      %v3216 = vmul.f32 %v3144, 0.01
      %v3217 = vmul.f32 %v3145, 0.01
      %v3218 = vmul.f32 %v3146, 0.01
      %v3219 = vmul.f32 %v3147, 0.01
      %v3220 = vmul.f32 %v3148, 0.01
      %v3221 = vmul.f32 %v3149, 0.01
      %v3222 = vmul.f32 %v3150, 0.01
      %v3223 = vmul.f32 %v3151, 0.01
      %v3224 = vmul.f32 %v3152, 0.01
      %v3225 = vmul.f32 %v3153, 0.01
      %v3226 = vmul.f32 %v3154, 0.01
      %v3227 = vmul.f32 %v3155, 0.01
      %v3228 = vmul.f32 %v3156, 0.01
      %v3229 = vmul.f32 %v3157, 0.01
      %v3230 = vmul.f32 %v3158, 0.01
      %v3231 = vmul.f32 %v3159, 0.01
      %v3232 = vmul.f32 %v3160, 0.01
      %v3233 = vmul.f32 %v3161, 0.01
      %v3234 = vmul.f32 %v3162, 0.01
      %v3235 = vmul.f32 %v3163, 0.01
      %v3236 = vmul.f32 %v3164, 0.01
      %v3237 = vmul.f32 %v3165, 0.01
      %v3238 = vmul.f32 %v3166, 0.01
      %v3239 = vmul.f32 %v3167, 0.01
      %v3240 = vsel %vm3168, %v3132, %v3204
      %v3241 = vsel %vm3169, %v3133, %v3205
      %v3242 = vsel %vm3170, %v3134, %v3206
      %v3243 = vsel %vm3171, %v3135, %v3207
      %v3244 = vsel %vm3172, %v3136, %v3208
      %v3245 = vsel %vm3173, %v3137, %v3209
      %v3246 = vsel %vm3174, %v3138, %v3210
      %v3247 = vsel %vm3175, %v3139, %v3211
      %v3248 = vsel %vm3176, %v3140, %v3212
      %v3249 = vsel %vm3177, %v3141, %v3213
      %v3250 = vsel %vm3178, %v3142, %v3214
      %v3251 = vsel %vm3179, %v3143, %v3215
      %v3252 = vsel %vm3180, %v3144, %v3216
      %v3253 = vsel %vm3181, %v3145, %v3217
      %v3254 = vsel %vm3182, %v3146, %v3218
      %v3255 = vsel %vm3183, %v3147, %v3219
      %v3256 = vsel %vm3184, %v3148, %v3220
      %v3257 = vsel %vm3185, %v3149, %v3221
      %v3258 = vsel %vm3186, %v3150, %v3222
      %v3259 = vsel %vm3187, %v3151, %v3223
      %v3260 = vsel %vm3188, %v3152, %v3224
      %v3261 = vsel %vm3189, %v3153, %v3225
      %v3262 = vsel %vm3190, %v3154, %v3226
      %v3263 = vsel %vm3191, %v3155, %v3227
      %v3264 = vsel %vm3192, %v3156, %v3228
      %v3265 = vsel %vm3193, %v3157, %v3229
      %v3266 = vsel %vm3194, %v3158, %v3230
      %v3267 = vsel %vm3195, %v3159, %v3231
      %v3268 = vsel %vm3196, %v3160, %v3232
      %v3269 = vsel %vm3197, %v3161, %v3233
      %v3270 = vsel %vm3198, %v3162, %v3234
      %v3271 = vsel %vm3199, %v3163, %v3235
      %v3272 = vsel %vm3200, %v3164, %v3236
      %v3273 = vsel %vm3201, %v3165, %v3237
      %v3274 = vsel %vm3202, %v3166, %v3238
      %v3275 = vsel %vm3203, %v3167, %v3239
      %3276 = vst.msk [vmem:[%s233] sm:$0xff] %vm535, %v3240
      %3277 = vst.msk [vmem:[%s233 + $0x8] sm:$0xff] %vm535, %v3241
      %3278 = vst.msk [vmem:[%s233 + $0x10] sm:$0xff] %vm535, %v3242
      %3279 = vst.msk [vmem:[%s233 + $0x18] sm:$0xff] %vm535, %v3243
      %3280 = vst.msk [vmem:[%s233 + $0x20] sm:$0xff] %vm535, %v3244
      %3281 = vst.msk [vmem:[%s233 + $0x28] sm:$0xff] %vm535, %v3245
      %3282 = vst.msk [vmem:[%s233 + $0x30] sm:$0xff] %vm535, %v3246
      %3283 = vst.msk [vmem:[%s233 + $0x38] sm:$0xff] %vm535, %v3247
      %3284 = vst.msk [vmem:[%s233 + $0x40] sm:$0xff] %vm535, %v3248
      %3285 = vst.msk [vmem:[%s233 + $0x48] sm:$0xff] %vm535, %v3249
      %3286 = vst.msk [vmem:[%s233 + $0x50] sm:$0xff] %vm535, %v3250
      %3287 = vst.msk [vmem:[%s233 + $0x58] sm:$0xff] %vm535, %v3251
      %3288 = vst.msk [vmem:[%s233 + $0x60] sm:$0xff] %vm535, %v3252
      %3289 = vst.msk [vmem:[%s233 + $0x68] sm:$0xff] %vm535, %v3253
      %3290 = vst.msk [vmem:[%s233 + $0x70] sm:$0xff] %vm535, %v3254
      %3291 = vst.msk [vmem:[%s233 + $0x78] sm:$0xff] %vm535, %v3255
      %3292 = vst.msk [vmem:[%s233 + $0x80] sm:$0xff] %vm535, %v3256
      %3293 = vst.msk [vmem:[%s233 + $0x88] sm:$0xff] %vm535, %v3257
      %3294 = vst.msk [vmem:[%s233 + $0x90] sm:$0xff] %vm535, %v3258
      %3295 = vst.msk [vmem:[%s233 + $0x98] sm:$0xff] %vm535, %v3259
      %3296 = vst.msk [vmem:[%s233 + $0xa0] sm:$0xff] %vm535, %v3260
      %3297 = vst.msk [vmem:[%s233 + $0xa8] sm:$0xff] %vm535, %v3261
      %3298 = vst.msk [vmem:[%s233 + $0xb0] sm:$0xff] %vm535, %v3262
      %3299 = vst.msk [vmem:[%s233 + $0xb8] sm:$0xff] %vm535, %v3263
      %3300 = vst.msk [vmem:[%s233 + $0xc0] sm:$0xff] %vm535, %v3264
      %3301 = vst.msk [vmem:[%s233 + $0xc8] sm:$0xff] %vm535, %v3265
      %3302 = vst.msk [vmem:[%s233 + $0xd0] sm:$0xff] %vm535, %v3266
      %3303 = vst.msk [vmem:[%s233 + $0xd8] sm:$0xff] %vm535, %v3267
      %3304 = vst.msk [vmem:[%s233 + $0xe0] sm:$0xff] %vm535, %v3268
      %3305 = vst.msk [vmem:[%s233 + $0xe8] sm:$0xff] %vm535, %v3269
      %3306 = vst.msk [vmem:[%s233 + $0xf0] sm:$0xff] %vm535, %v3270
      %3307 = vst.msk [vmem:[%s233 + $0xf8] sm:$0xff] %vm535, %v3271
      %3308 = vst.msk [vmem:[%s233 + $0x100] sm:$0xff] %vm535, %v3272
      %3309 = vst.msk [vmem:[%s233 + $0x108] sm:$0xff] %vm535, %v3273
      %3310 = vst.msk [vmem:[%s233 + $0x110] sm:$0xff] %vm535, %v3274
      %3311 = vst.msk [vmem:[%s233 + $0x118] sm:$0xff] %vm535, %v3275
      %p3312 = scmp.lt.s32.totalorder %s19, 1
      %s3313 = scalar_select %p3312, %s19, 1
      %p3314 = scmp.lt.s32.totalorder %s20, 0
      %s3315 = scalar_select %p3314, %s20, 0
      %s3316 = smul.addr %s3315, 36
      %s3317 = smul.addr %s3313, 36
      %s3318 = sadd.s32 %s3316, %s3317
      %s3319 = smul.addr %s3318, 8
      %s3320 = scalar_lea.vmem %s4, %s3319
      // Predicated region
      $region37: #{conv_block_forward.3} parent=35 // pred_check
        %p3321 = pneg %p138
      $region38: #{conv_block_forward.3} parent=35 // pred_check_branch
        %3323 = sbr.rel (%p3321) target = $region40
      $region39: #{conv_block_forward.3} parent=35 // pred_region
        _
      $region40: #{conv_block_forward.3} parent=35 // pred_fallthru
        _
    $region36: #{conv_block_forward.3} parent=5 // pred_fallthru
      _
    %p3324 = scmp.le.s32.totalorder 2, %s10
    // Predicated region
    $region41: #{conv_block_forward.3} parent=5 // pred_check
      %p3325 = pneg %p3324
    $region42: #{conv_block_forward.3} parent=5 // pred_check_branch
      %3327 = sbr.rel (%p3325) target = $region44
    $region43: #{conv_block_forward.3} parent=5 // pred_region
      %s3328 = ssub.s32 %s10, 2
      // Predicated region
      $region45: #{conv_block_forward.3} parent=43 // pred_check
        %p3329 = pneg %p144
      $region46: #{conv_block_forward.3} parent=43 // pred_check_branch
        %3331 = sbr.rel (%p3329) target = $region48
      $region47: #{conv_block_forward.3} parent=43 // pred_region
        %p3332 = scmp.lt.s32.totalorder %s21, 1
        %s3333 = scalar_select %p3332, %s21, 1
        %p3334 = scmp.lt.s32.totalorder %s22, 0
        %s3335 = scalar_select %p3334, %s22, 0
        %s3336 = smul.addr %s3335, 36
        %s3337 = smul.addr %s3333, 36
        %s3338 = sadd.s32 %s3336, %s3337
        %s3339 = smul.addr %s3338, 8
        %s3340 = scalar_lea.vmem %s4, %s3339
      $region48: #{conv_block_forward.3} parent=43 // pred_fallthru
        _
    $region44: #{conv_block_forward.3} parent=5 // pred_fallthru
      _
  $region6: #{conv_block_forward.3} parent=0 // loop_footer
    %s14 = sadd.s32 1, %s10
  $region7: #{conv_block_forward.3} parent=0 // loop_footer_branch
    %9 = sbr.rel target = $region3
  $region8: #{conv_block_forward.3} parent=0 // loop_exit
    _

</llo_original>
